<compile_context>
chip_gen: v7x
topology: tpu7x:2x2x1
jax: 0.10.0
libtpu: 0.0.40
codegen_flags: <defaults>
</compile_context>

<pallas_src>
import math
import jax
import jax.numpy as jnp
from jax import lax
from jax.experimental import pallas as pl
from jax.experimental.pallas import tpu as pltpu


# ------------------------------ model constants -----------------------------

VOCAB = 50
VOCAB_PAD = 128          # lane-dense output width (sliced back to VOCAB outside)
EMBED_DIM = 16
D_MODEL = 32
N_HEAD = 4
HEAD_DIM = D_MODEL // N_HEAD
DIM_FF = 64
NUM_LAYERS = 2
EMBED_SCALE = math.sqrt(D_MODEL)
NEG_INF = -1e30

SEG = 128                # lane-aligned segment stride inside the packed blobs
N_WSEG = 6               # weight segments per layer row in blob_w
N_BSEG = 7               # bias segments per layer row in blob_b


# ------------------------------- fused kernel -------------------------------

def _decoder_kernel(x_ref, enc_ref, sb_ref, cb_ref, hm_ref,
                    w_ref, w2_ref, b_ref, o_ref):
    def mm(a, w, b=None):
        out = lax.dot_general(a, w, (((1,), (0,)), ((), ())),
                              preferred_element_type=jnp.float32)
        return out if b is None else out + b

    def mm_nt(a, w):     # a @ w.T
        return lax.dot_general(a, w, (((1,), (1,)), ((), ())),
                               preferred_element_type=jnp.float32)

    def norm(v):         # LayerNorm; gamma/beta are folded into the next matmul
        mu = jnp.mean(v, axis=-1, keepdims=True)
        var = jnp.mean((v - mu) ** 2, axis=-1, keepdims=True)
        return (v - mu) * lax.rsqrt(var + 1e-5)

    def softmax(s):
        m = jnp.max(s, axis=-1, keepdims=True)
        p = jnp.exp(s - m)
        return p * pl.reciprocal(jnp.sum(p, axis=-1, keepdims=True), approx=True)

    n = x_ref.shape[0]                 # B*T folded query rows
    x = x_ref[...]                     # [n, D]
    enc = enc_ref[...]                 # [M, D] with M = B*S
    head_mask = hm_ref[...]            # [H*n, D]  one-hot head column selector
    self_bias = sb_ref[...]            # [H*n, n]  block-diag causal bias
    cross_bias = cb_ref[...]           # [H*n, M]  block-diag + key-padding bias

    def attend(q, k, v, bias):
        # All heads in one shot: replicate queries per head and zero the other
        # heads' columns, so a single [H*n, *] matmul yields every head's scores.
        qb = jnp.concatenate([q] * N_HEAD, axis=0) * head_mask      # [H*n, D]
        p = softmax(mm_nt(qb, k) + bias)                            # [H*n, M]
        o = mm(p, v) * head_mask                                    # [H*n, D]
        out = o[0:n]
        for h in range(1, N_HEAD):                                  # merge heads
            out = out + o[h * n:(h + 1) * n]
        return out                                                  # [n, D]

    def wseg(l, s, width):
        return w_ref[l, :, s * SEG:s * SEG + width]

    def bseg(l, s, width):
        return b_ref[l, :, s * SEG:s * SEG + width]

    for l in range(NUM_LAYERS):
        # ---------- self attention (pre-LN, residual) ----------
        qkv = mm(norm(x), wseg(l, 0, 3 * D_MODEL), bseg(l, 0, 3 * D_MODEL))   # [n, 3D]
        a = attend(qkv[:, :D_MODEL], qkv[:, D_MODEL:2 * D_MODEL],
                   qkv[:, 2 * D_MODEL:], self_bias)
        x = x + mm(a, wseg(l, 1, D_MODEL), bseg(l, 1, D_MODEL))

        # ---------- cross attention ----------
        q = mm(norm(x), wseg(l, 2, D_MODEL), bseg(l, 2, D_MODEL))             # [n, D]
        kv = mm(enc, wseg(l, 3, 2 * D_MODEL), bseg(l, 3, 2 * D_MODEL))        # [M, 2D]
        a = attend(q, kv[:, :D_MODEL], kv[:, D_MODEL:], cross_bias)
        x = x + mm(a, wseg(l, 4, D_MODEL), bseg(l, 4, D_MODEL))

        # ---------- FFN ----------
        h = jnp.maximum(mm(norm(x), wseg(l, 5, DIM_FF), bseg(l, 5, DIM_FF)), 0.0)
        x = x + mm(h, w2_ref[l], bseg(l, 6, D_MODEL))

    # ---- final LN (folded) + output_fc fused with tied embedding, 128 lanes ----
    o_ref[...] = mm(norm(x), wseg(NUM_LAYERS, 0, VOCAB_PAD),
                    bseg(NUM_LAYERS, 0, VOCAB_PAD))


# ------------------------------ param handling -------------------------------

def _dense(key, out_dim, in_dim):
    kw, kb = jax.random.split(key)
    w = jax.random.normal(kw, (out_dim, in_dim), jnp.float32) * 0.05   # torch [out, in]
    b = jax.random.normal(kb, (out_dim,), jnp.float32) * 0.01
    return w, b


def init_params(key):
    keys = jax.random.split(key, 4 + NUM_LAYERS)
    params = {
        "embed": jax.random.normal(keys[0], (VOCAB, EMBED_DIM), jnp.float32) * 0.1,
        "input_fc": _dense(keys[1], D_MODEL, EMBED_DIM),
        "output_fc": _dense(keys[2], EMBED_DIM, D_MODEL),
        "final_ln": (jnp.ones((D_MODEL,), jnp.float32), jnp.zeros((D_MODEL,), jnp.float32)),
        "layers": [],
    }
    for li in range(NUM_LAYERS):
        lk = jax.random.split(keys[4 + li], 10)
        layer = {
            "self_q": _dense(lk[0], D_MODEL, D_MODEL),
            "self_k": _dense(lk[1], D_MODEL, D_MODEL),
            "self_v": _dense(lk[2], D_MODEL, D_MODEL),
            "self_o": _dense(lk[3], D_MODEL, D_MODEL),
            "ln1": (jnp.ones((D_MODEL,), jnp.float32), jnp.zeros((D_MODEL,), jnp.float32)),
            "cross_q": _dense(lk[4], D_MODEL, D_MODEL),
            "cross_k": _dense(lk[5], D_MODEL, D_MODEL),
            "cross_v": _dense(lk[6], D_MODEL, D_MODEL),
            "cross_o": _dense(lk[7], D_MODEL, D_MODEL),
            "ln2": (jnp.ones((D_MODEL,), jnp.float32), jnp.zeros((D_MODEL,), jnp.float32)),
            "ffn1": _dense(lk[8], DIM_FF, D_MODEL),
            "ffn2": _dense(lk[9], D_MODEL, DIM_FF),
            "ln3": (jnp.ones((D_MODEL,), jnp.float32), jnp.zeros((D_MODEL,), jnp.float32)),
        }
        params["layers"].append(layer)
    return params


def prepare_params(params):
    """One-time host prep: transpose to [K,N], fuse QKV / KV, fold q-scale, fold every
    LayerNorm gamma/beta into the following projection, fuse embed-scale + input_fc
    into a gather table, fuse output_fc with the tied embedding, and pack everything
    into 3 blobs with lane-aligned (128-wide) segments."""
    scale = HEAD_DIM ** -0.5

    def seg(w):                                   # pad [K, n] to a 128-lane segment
        return jnp.pad(w, ((0, 0), (0, SEG - w.shape[1])))

    def fold_ln(g, beta, w, b):                   # LN(x) @ w + b -> norm(x) @ w' + b'
        return g[:, None] * w, beta @ w + b

    # fused input table: EMBED_SCALE * Embed @ W_in + b_in  -> [V, D]
    w_in, b_in = params["input_fc"]               # torch [D, E], [D]
    in_table = EMBED_SCALE * (params["embed"] @ w_in.T) + b_in

    w_rows, b_rows, w2_rows = [], [], []
    for layer in params["layers"]:
        wq, bq = layer["self_q"]; wk, bk = layer["self_k"]; wv, bv = layer["self_v"]
        w_qkv = jnp.concatenate([wq.T * scale, wk.T, wv.T], axis=1)       # [D, 3D]
        b_qkv = jnp.concatenate([bq * scale, bk, bv])
        w_qkv, b_qkv = fold_ln(*layer["ln1"], w_qkv, b_qkv)

        w_so, b_so = layer["self_o"]; w_so = w_so.T                        # [D, D]

        wq, bq = layer["cross_q"]
        w_cq, b_cq = fold_ln(*layer["ln2"], wq.T * scale, bq * scale)
        wk, bk = layer["cross_k"]; wv, bv = layer["cross_v"]
        w_ckv = jnp.concatenate([wk.T, wv.T], axis=1)                      # [D, 2D]
        b_ckv = jnp.concatenate([bk, bv])
        w_co, b_co = layer["cross_o"]; w_co = w_co.T

        w_f1, b_f1 = layer["ffn1"]
        w_f1, b_f1 = fold_ln(*layer["ln3"], w_f1.T, b_f1)                  # [D, FF]
        w_f2, b_f2 = layer["ffn2"]; w_f2 = w_f2.T                          # [FF, D]

        w_rows.append(jnp.concatenate(
            [seg(w_qkv), seg(w_so), seg(w_cq), seg(w_ckv), seg(w_co), seg(w_f1)],
            axis=1))                                                       # [D, 6*128]
        b_rows.append(jnp.concatenate(
            [seg(b[None, :]) for b in (b_qkv, b_so, b_cq, b_ckv, b_co, b_f1, b_f2)],
            axis=1))                                                       # [1, 7*128]
        w2_rows.append(w_f2)

    # output head: final_LN -> output_fc -> tied embedding, padded 50 -> 128 lanes
    w_fc, b_fc = params["output_fc"]              # torch [E, D], [E]
    w_out = w_fc.T @ params["embed"].T            # [D, V]
    b_out = b_fc @ params["embed"].T              # [V]
    w_out, b_out = fold_ln(*params["final_ln"], w_out, b_out)
    w_rows.append(jnp.pad(w_out, ((0, 0), (0, N_WSEG * SEG - VOCAB))))
    b_rows.append(jnp.pad(b_out, (0, N_BSEG * SEG - VOCAB))[None, :])

    return {
        "in_table": in_table,                     # [V, D]
        "blob_w": jnp.stack(w_rows),              # [L+1, D, 6*128]
        "blob_w2": jnp.stack(w2_rows),            # [L, FF, D]
        "blob_b": jnp.stack(b_rows),              # [L+1, 1, 7*128]
    }


# -------------------------------- forward ------------------------------------

def decoder_forward(prep, tokens, encoder_output, encoder_mask):
    """tokens: [B,T] int32; encoder_output: [B,S,D]; encoder_mask: [B,S] (1=attend).
       Returns feats: [B, T, VOCAB]."""
    B, T = tokens.shape
    S = encoder_output.shape[1]
    N, M = B * T, B * S

    # embedding gather on the pre-fused table (embed_scale + input_fc + bias folded)
    # TODO(synk): gather stays in XLA; moving it in-kernel via scalar prefetch is possible.
    x0 = jnp.take(prep["in_table"], tokens.reshape(-1), axis=0)            # [N, D]
    enc = encoder_output.reshape(M, D_MODEL)

    # block-diagonal causal bias over the folded batch, tiled over heads: [H*N, N]
    q_tok = jnp.arange(N)
    same_b = (q_tok[:, None] // T) == (jnp.arange(N)[None, :] // T)
    causal = jnp.arange(N)[None, :] <= q_tok[:, None]
    self_bias = jnp.tile(
        jnp.where(same_b & causal, 0.0, NEG_INF).astype(jnp.float32), (N_HEAD, 1))

    # block-diagonal cross bias + encoder key-padding mask: [H*N, M]
    same_b_kv = (q_tok[:, None] // T) == (jnp.arange(M)[None, :] // S)
    attend_kv = same_b_kv & (encoder_mask.reshape(-1)[None, :] != 0)
    cross_bias = jnp.tile(
        jnp.where(attend_kv, 0.0, NEG_INF).astype(jnp.float32), (N_HEAD, 1))

    # head column selector: row block h keeps only columns [h*HEAD_DIM, (h+1)*HEAD_DIM)
    head_mask = (jnp.repeat(jnp.arange(N_HEAD), N)[:, None]
                 == jnp.arange(D_MODEL)[None, :] // HEAD_DIM).astype(jnp.float32)

    args = (x0, enc, self_bias, cross_bias, head_mask,
            prep["blob_w"], prep["blob_w2"], prep["blob_b"])

    out = pl.pallas_call(
        _decoder_kernel,
        out_shape=jax.ShapeDtypeStruct((N, VOCAB_PAD), jnp.float32),
        grid=(1,),
        in_specs=[pl.BlockSpec(a.shape, lambda i, nd=a.ndim: (0,) * nd) for a in args],
        out_specs=pl.BlockSpec((N, VOCAB_PAD), lambda i: (0, 0)),
        compiler_params=pltpu.CompilerParams(dimension_semantics=("arbitrary",)),
    )(*args)

    return out.reshape(B, T, VOCAB_PAD)[:, :, :VOCAB]


# ----------------------------------- main ------------------------------------

if __name__ == "__main__":
    key = jax.random.PRNGKey(0)
    k_param, k_tok, k_enc = jax.random.split(key, 3)

    B, T, S = 2, 8, 12
    params = init_params(k_param)
    prep = prepare_params(params)   # one-time weight transpose / fusion / packing

    tokens = jax.random.randint(k_tok, (B, T), 0, VOCAB, dtype=jnp.int32)
    encoder_output = jax.random.normal(k_enc, (B, S, D_MODEL), jnp.float32)
    # lengths 12 and 9 -> last 3 positions of batch 1 are padding
    encoder_mask = (jnp.arange(S)[None, :] < jnp.array([[S], [9]])).astype(jnp.int32)

    feats = jax.jit(decoder_forward)(prep, tokens, encoder_output, encoder_mask)
    feats = jax.block_until_ready(feats)

    assert feats.shape == (B, T, VOCAB), feats.shape
    assert bool(jnp.all(jnp.isfinite(feats)))
    print("KERNEL_OK")
</pallas_src>

<mosaic_0001>
module attributes {stable_mosaic.version = 11 : i64} {
  func.func @_decoder_kernel(%arg0: i32, %arg1: memref<16x32xf32, #tpu.memory_space<vmem>>, %arg2: memref<24x32xf32, #tpu.memory_space<vmem>>, %arg3: memref<64x16xf32, #tpu.memory_space<vmem>>, %arg4: memref<64x24xf32, #tpu.memory_space<vmem>>, %arg5: memref<64x32xf32, #tpu.memory_space<vmem>>, %arg6: memref<3x32x768xf32, #tpu.memory_space<vmem>>, %arg7: memref<2x64x32xf32, #tpu.memory_space<vmem>>, %arg8: memref<3x1x896xf32, #tpu.memory_space<vmem>>, %arg9: memref<16x128xf32, #tpu.memory_space<vmem>>) attributes {dimension_semantics = [#tpu.dimension_semantics<arbitrary>], iteration_bounds = array<i64: 1>, scalar_prefetch = 0 : i64, scratch_operands = 0 : i64, tpu.core_type = #tpu.core_type<tc>, window_params = [{pipeline_mode = #tpu.pipeline_mode<synchronous>, transform_indices = @transform_0, window_bounds = array<i64: 16, 32>}, {pipeline_mode = #tpu.pipeline_mode<synchronous>, transform_indices = @transform_1, window_bounds = array<i64: 24, 32>}, {pipeline_mode = #tpu.pipeline_mode<synchronous>, transform_indices = @transform_2, window_bounds = array<i64: 64, 16>}, {pipeline_mode = #tpu.pipeline_mode<synchronous>, transform_indices = @transform_3, window_bounds = array<i64: 64, 24>}, {pipeline_mode = #tpu.pipeline_mode<synchronous>, transform_indices = @transform_4, window_bounds = array<i64: 64, 32>}, {pipeline_mode = #tpu.pipeline_mode<synchronous>, transform_indices = @transform_5, window_bounds = array<i64: 3, 32, 768>}, {pipeline_mode = #tpu.pipeline_mode<synchronous>, transform_indices = @transform_6, window_bounds = array<i64: 2, 64, 32>}, {pipeline_mode = #tpu.pipeline_mode<synchronous>, transform_indices = @transform_7, window_bounds = array<i64: 3, 1, 896>}, {pipeline_mode = #tpu.pipeline_mode<synchronous>, transform_indices = @transform_8, window_bounds = array<i64: 16, 128>}]} {
    %c0 = arith.constant 0 : index
    %c0_0 = arith.constant 0 : index
    %0 = vector.load %arg1[%c0, %c0_0] : memref<16x32xf32, #tpu.memory_space<vmem>>, vector<16x32xf32>
    %c0_1 = arith.constant 0 : index
    %c0_2 = arith.constant 0 : index
    %1 = vector.load %arg2[%c0_1, %c0_2] : memref<24x32xf32, #tpu.memory_space<vmem>>, vector<24x32xf32>
    %c0_3 = arith.constant 0 : index
    %c0_4 = arith.constant 0 : index
    %2 = vector.load %arg5[%c0_3, %c0_4] : memref<64x32xf32, #tpu.memory_space<vmem>>, vector<64x32xf32>
    %c0_5 = arith.constant 0 : index
    %c0_6 = arith.constant 0 : index
    %3 = vector.load %arg3[%c0_5, %c0_6] : memref<64x16xf32, #tpu.memory_space<vmem>>, vector<64x16xf32>
    %c0_7 = arith.constant 0 : index
    %c0_8 = arith.constant 0 : index
    %4 = vector.load %arg4[%c0_7, %c0_8] : memref<64x24xf32, #tpu.memory_space<vmem>>, vector<64x24xf32>
    %cst = arith.constant dense<0.000000e+00> : vector<16xf32>
    %5 = vector.multi_reduction <add>, %0, %cst [1] : vector<16x32xf32> to vector<16xf32>
    %6 = vector.shape_cast %5 : vector<16xf32> to vector<16x1xf32>
    %cst_9 = arith.constant 3.200000e+01 : f32
    %7 = vector.broadcast %cst_9 : f32 to vector<16x1xf32>
    %8 = arith.divf %6, %7 : vector<16x1xf32>
    %9 = vector.broadcast %8 : vector<16x1xf32> to vector<16x32xf32>
    %10 = arith.subf %0, %9 : vector<16x32xf32>
    %11 = arith.mulf %10, %10 : vector<16x32xf32>
    %cst_10 = arith.constant dense<0.000000e+00> : vector<16xf32>
    %12 = vector.multi_reduction <add>, %11, %cst_10 [1] : vector<16x32xf32> to vector<16xf32>
    %13 = vector.shape_cast %12 : vector<16xf32> to vector<16x1xf32>
    %cst_11 = arith.constant 3.200000e+01 : f32
    %14 = vector.broadcast %cst_11 : f32 to vector<16x1xf32>
    %15 = arith.divf %13, %14 : vector<16x1xf32>
    %16 = vector.broadcast %8 : vector<16x1xf32> to vector<16x32xf32>
    %17 = arith.subf %0, %16 : vector<16x32xf32>
    %cst_12 = arith.constant 9.99999974E-6 : f32
    %18 = vector.broadcast %cst_12 : f32 to vector<16x1xf32>
    %19 = arith.addf %15, %18 : vector<16x1xf32>
    %20 = math.rsqrt %19 : vector<16x1xf32>
    %21 = vector.broadcast %20 : vector<16x1xf32> to vector<16x32xf32>
    %22 = arith.mulf %17, %21 : vector<16x32xf32>
    %c0_13 = arith.constant 0 : index
    %c0_14 = arith.constant 0 : index
    %c0_15 = arith.constant 0 : index
    %23 = vector.load %arg6[%c0_13, %c0_14, %c0_15] : memref<3x32x768xf32, #tpu.memory_space<vmem>>, vector<1x32x96xf32>
    %24 = vector.shape_cast %23 : vector<1x32x96xf32> to vector<32x96xf32>
    %c0_16 = arith.constant 0 : index
    %c0_17 = arith.constant 0 : index
    %c0_18 = arith.constant 0 : index
    %25 = vector.load %arg8[%c0_16, %c0_17, %c0_18] : memref<3x1x896xf32, #tpu.memory_space<vmem>>, vector<1x1x96xf32>
    %26 = vector.shape_cast %25 : vector<1x1x96xf32> to vector<1x96xf32>
    %cst_19 = arith.constant dense<0.000000e+00> : vector<16x96xf32>
    %27 = tpu.matmul %22, %24, %cst_19 {dimension_numbers = #tpu.dot_dimension_numbers<[1], [0], [0], [1], [0, 0, 1, 1], [], []>} : vector<16x32xf32>, vector<32x96xf32>, vector<16x96xf32> -> vector<16x96xf32>
    %28 = vector.broadcast %26 : vector<1x96xf32> to vector<16x96xf32>
    %29 = arith.addf %27, %28 : vector<16x96xf32>
    %30 = vector.extract_strided_slice %29 {offsets = [0, 0], sizes = [16, 32], strides = [1, 1]} : vector<16x96xf32> to vector<16x32xf32>
    %31 = vector.extract_strided_slice %29 {offsets = [0, 32], sizes = [16, 32], strides = [1, 1]} : vector<16x96xf32> to vector<16x32xf32>
    %32 = vector.extract_strided_slice %29 {offsets = [0, 64], sizes = [16, 32], strides = [1, 1]} : vector<16x96xf32> to vector<16x32xf32>
    %33 = tpu.concatenate %30, %30, %30, %30 in 0 : vector<16x32xf32>, vector<16x32xf32>, vector<16x32xf32>, vector<16x32xf32> -> vector<64x32xf32>
    %34 = arith.mulf %33, %2 : vector<64x32xf32>
    %cst_20 = arith.constant dense<0.000000e+00> : vector<64x16xf32>
    %35 = tpu.matmul %34, %31, %cst_20 {dimension_numbers = #tpu.dot_dimension_numbers<[1], [1], [0], [0], [0, 0, 1, 0], [], []>} : vector<64x32xf32>, vector<16x32xf32>, vector<64x16xf32> -> vector<64x16xf32>
    %36 = arith.addf %35, %3 : vector<64x16xf32>
    %cst_21 = arith.constant dense<0xFF800000> : vector<64xf32>
    %37 = vector.multi_reduction <maximumf>, %36, %cst_21 [1] : vector<64x16xf32> to vector<64xf32>
    %38 = vector.shape_cast %37 : vector<64xf32> to vector<64x1xf32>
    %39 = vector.broadcast %38 : vector<64x1xf32> to vector<64x16xf32>
    %40 = arith.subf %36, %39 : vector<64x16xf32>
    %41 = math.exp %40 : vector<64x16xf32>
    %cst_22 = arith.constant dense<0.000000e+00> : vector<64xf32>
    %42 = vector.multi_reduction <add>, %41, %cst_22 [1] : vector<64x16xf32> to vector<64xf32>
    %43 = vector.shape_cast %42 : vector<64xf32> to vector<64x1xf32>
    %44 = tpu.reciprocal %43 {approx = true} : vector<64x1xf32> -> vector<64x1xf32>
    %45 = vector.broadcast %44 : vector<64x1xf32> to vector<64x16xf32>
    %46 = arith.mulf %41, %45 : vector<64x16xf32>
    %cst_23 = arith.constant dense<0.000000e+00> : vector<64x32xf32>
    %47 = tpu.matmul %46, %32, %cst_23 {dimension_numbers = #tpu.dot_dimension_numbers<[1], [0], [0], [1], [0, 0, 1, 1], [], []>} : vector<64x16xf32>, vector<16x32xf32>, vector<64x32xf32> -> vector<64x32xf32>
    %48 = arith.mulf %47, %2 : vector<64x32xf32>
    %49 = vector.extract_strided_slice %48 {offsets = [0, 0], sizes = [16, 32], strides = [1, 1]} : vector<64x32xf32> to vector<16x32xf32>
    %50 = vector.extract_strided_slice %48 {offsets = [16, 0], sizes = [16, 32], strides = [1, 1]} : vector<64x32xf32> to vector<16x32xf32>
    %51 = arith.addf %49, %50 : vector<16x32xf32>
    %52 = vector.extract_strided_slice %48 {offsets = [32, 0], sizes = [16, 32], strides = [1, 1]} : vector<64x32xf32> to vector<16x32xf32>
    %53 = arith.addf %51, %52 : vector<16x32xf32>
    %54 = vector.extract_strided_slice %48 {offsets = [48, 0], sizes = [16, 32], strides = [1, 1]} : vector<64x32xf32> to vector<16x32xf32>
    %55 = arith.addf %53, %54 : vector<16x32xf32>
    %c0_24 = arith.constant 0 : index
    %c0_25 = arith.constant 0 : index
    %c128 = arith.constant 128 : index
    %56 = vector.load %arg6[%c0_24, %c0_25, %c128] : memref<3x32x768xf32, #tpu.memory_space<vmem>>, vector<1x32x32xf32>
    %57 = vector.shape_cast %56 : vector<1x32x32xf32> to vector<32x32xf32>
    %c0_26 = arith.constant 0 : index
    %c0_27 = arith.constant 0 : index
    %c128_28 = arith.constant 128 : index
    %58 = vector.load %arg8[%c0_26, %c0_27, %c128_28] : memref<3x1x896xf32, #tpu.memory_space<vmem>>, vector<1x1x32xf32>
    %59 = vector.shape_cast %58 : vector<1x1x32xf32> to vector<1x32xf32>
    %cst_29 = arith.constant dense<0.000000e+00> : vector<16x32xf32>
    %60 = tpu.matmul %55, %57, %cst_29 {dimension_numbers = #tpu.dot_dimension_numbers<[1], [0], [0], [1], [0, 0, 1, 1], [], []>} : vector<16x32xf32>, vector<32x32xf32>, vector<16x32xf32> -> vector<16x32xf32>
    %61 = vector.broadcast %59 : vector<1x32xf32> to vector<16x32xf32>
    %62 = arith.addf %60, %61 : vector<16x32xf32>
    %63 = arith.addf %0, %62 : vector<16x32xf32>
    %cst_30 = arith.constant dense<0.000000e+00> : vector<16xf32>
    %64 = vector.multi_reduction <add>, %63, %cst_30 [1] : vector<16x32xf32> to vector<16xf32>
    %65 = vector.shape_cast %64 : vector<16xf32> to vector<16x1xf32>
    %cst_31 = arith.constant 3.200000e+01 : f32
    %66 = vector.broadcast %cst_31 : f32 to vector<16x1xf32>
    %67 = arith.divf %65, %66 : vector<16x1xf32>
    %68 = vector.broadcast %67 : vector<16x1xf32> to vector<16x32xf32>
    %69 = arith.subf %63, %68 : vector<16x32xf32>
    %70 = arith.mulf %69, %69 : vector<16x32xf32>
    %cst_32 = arith.constant dense<0.000000e+00> : vector<16xf32>
    %71 = vector.multi_reduction <add>, %70, %cst_32 [1] : vector<16x32xf32> to vector<16xf32>
    %72 = vector.shape_cast %71 : vector<16xf32> to vector<16x1xf32>
    %cst_33 = arith.constant 3.200000e+01 : f32
    %73 = vector.broadcast %cst_33 : f32 to vector<16x1xf32>
    %74 = arith.divf %72, %73 : vector<16x1xf32>
    %75 = vector.broadcast %67 : vector<16x1xf32> to vector<16x32xf32>
    %76 = arith.subf %63, %75 : vector<16x32xf32>
    %cst_34 = arith.constant 9.99999974E-6 : f32
    %77 = vector.broadcast %cst_34 : f32 to vector<16x1xf32>
    %78 = arith.addf %74, %77 : vector<16x1xf32>
    %79 = math.rsqrt %78 : vector<16x1xf32>
    %80 = vector.broadcast %79 : vector<16x1xf32> to vector<16x32xf32>
    %81 = arith.mulf %76, %80 : vector<16x32xf32>
    %c0_35 = arith.constant 0 : index
    %c0_36 = arith.constant 0 : index
    %c256 = arith.constant 256 : index
    %82 = vector.load %arg6[%c0_35, %c0_36, %c256] : memref<3x32x768xf32, #tpu.memory_space<vmem>>, vector<1x32x32xf32>
    %83 = vector.shape_cast %82 : vector<1x32x32xf32> to vector<32x32xf32>
    %c0_37 = arith.constant 0 : index
    %c0_38 = arith.constant 0 : index
    %c256_39 = arith.constant 256 : index
    %84 = vector.load %arg8[%c0_37, %c0_38, %c256_39] : memref<3x1x896xf32, #tpu.memory_space<vmem>>, vector<1x1x32xf32>
    %85 = vector.shape_cast %84 : vector<1x1x32xf32> to vector<1x32xf32>
    %cst_40 = arith.constant dense<0.000000e+00> : vector<16x32xf32>
    %86 = tpu.matmul %81, %83, %cst_40 {dimension_numbers = #tpu.dot_dimension_numbers<[1], [0], [0], [1], [0, 0, 1, 1], [], []>} : vector<16x32xf32>, vector<32x32xf32>, vector<16x32xf32> -> vector<16x32xf32>
    %87 = vector.broadcast %85 : vector<1x32xf32> to vector<16x32xf32>
    %88 = arith.addf %86, %87 : vector<16x32xf32>
    %c0_41 = arith.constant 0 : index
    %c0_42 = arith.constant 0 : index
    %c384 = arith.constant 384 : index
    %89 = vector.load %arg6[%c0_41, %c0_42, %c384] : memref<3x32x768xf32, #tpu.memory_space<vmem>>, vector<1x32x64xf32>
    %90 = vector.shape_cast %89 : vector<1x32x64xf32> to vector<32x64xf32>
    %c0_43 = arith.constant 0 : index
    %c0_44 = arith.constant 0 : index
    %c384_45 = arith.constant 384 : index
    %91 = vector.load %arg8[%c0_43, %c0_44, %c384_45] : memref<3x1x896xf32, #tpu.memory_space<vmem>>, vector<1x1x64xf32>
    %92 = vector.shape_cast %91 : vector<1x1x64xf32> to vector<1x64xf32>
    %cst_46 = arith.constant dense<0.000000e+00> : vector<24x64xf32>
    %93 = tpu.matmul %1, %90, %cst_46 {dimension_numbers = #tpu.dot_dimension_numbers<[1], [0], [0], [1], [0, 0, 1, 1], [], []>} : vector<24x32xf32>, vector<32x64xf32>, vector<24x64xf32> -> vector<24x64xf32>
    %94 = vector.broadcast %92 : vector<1x64xf32> to vector<24x64xf32>
    %95 = arith.addf %93, %94 : vector<24x64xf32>
    %96 = vector.extract_strided_slice %95 {offsets = [0, 0], sizes = [24, 32], strides = [1, 1]} : vector<24x64xf32> to vector<24x32xf32>
    %97 = vector.extract_strided_slice %95 {offsets = [0, 32], sizes = [24, 32], strides = [1, 1]} : vector<24x64xf32> to vector<24x32xf32>
    %98 = tpu.concatenate %88, %88, %88, %88 in 0 : vector<16x32xf32>, vector<16x32xf32>, vector<16x32xf32>, vector<16x32xf32> -> vector<64x32xf32>
    %99 = arith.mulf %98, %2 : vector<64x32xf32>
    %cst_47 = arith.constant dense<0.000000e+00> : vector<64x24xf32>
    %100 = tpu.matmul %99, %96, %cst_47 {dimension_numbers = #tpu.dot_dimension_numbers<[1], [1], [0], [0], [0, 0, 1, 0], [], []>} : vector<64x32xf32>, vector<24x32xf32>, vector<64x24xf32> -> vector<64x24xf32>
    %101 = arith.addf %100, %4 : vector<64x24xf32>
    %cst_48 = arith.constant dense<0xFF800000> : vector<64xf32>
    %102 = vector.multi_reduction <maximumf>, %101, %cst_48 [1] : vector<64x24xf32> to vector<64xf32>
    %103 = vector.shape_cast %102 : vector<64xf32> to vector<64x1xf32>
    %104 = vector.broadcast %103 : vector<64x1xf32> to vector<64x24xf32>
    %105 = arith.subf %101, %104 : vector<64x24xf32>
    %106 = math.exp %105 : vector<64x24xf32>
    %cst_49 = arith.constant dense<0.000000e+00> : vector<64xf32>
    %107 = vector.multi_reduction <add>, %106, %cst_49 [1] : vector<64x24xf32> to vector<64xf32>
    %108 = vector.shape_cast %107 : vector<64xf32> to vector<64x1xf32>
    %109 = tpu.reciprocal %108 {approx = true} : vector<64x1xf32> -> vector<64x1xf32>
    %110 = vector.broadcast %109 : vector<64x1xf32> to vector<64x24xf32>
    %111 = arith.mulf %106, %110 : vector<64x24xf32>
    %cst_50 = arith.constant dense<0.000000e+00> : vector<64x32xf32>
    %112 = tpu.matmul %111, %97, %cst_50 {dimension_numbers = #tpu.dot_dimension_numbers<[1], [0], [0], [1], [0, 0, 1, 1], [], []>} : vector<64x24xf32>, vector<24x32xf32>, vector<64x32xf32> -> vector<64x32xf32>
    %113 = arith.mulf %112, %2 : vector<64x32xf32>
    %114 = vector.extract_strided_slice %113 {offsets = [0, 0], sizes = [16, 32], strides = [1, 1]} : vector<64x32xf32> to vector<16x32xf32>
    %115 = vector.extract_strided_slice %113 {offsets = [16, 0], sizes = [16, 32], strides = [1, 1]} : vector<64x32xf32> to vector<16x32xf32>
    %116 = arith.addf %114, %115 : vector<16x32xf32>
    %117 = vector.extract_strided_slice %113 {offsets = [32, 0], sizes = [16, 32], strides = [1, 1]} : vector<64x32xf32> to vector<16x32xf32>
    %118 = arith.addf %116, %117 : vector<16x32xf32>
    %119 = vector.extract_strided_slice %113 {offsets = [48, 0], sizes = [16, 32], strides = [1, 1]} : vector<64x32xf32> to vector<16x32xf32>
    %120 = arith.addf %118, %119 : vector<16x32xf32>
    %c0_51 = arith.constant 0 : index
    %c0_52 = arith.constant 0 : index
    %c512 = arith.constant 512 : index
    %121 = vector.load %arg6[%c0_51, %c0_52, %c512] : memref<3x32x768xf32, #tpu.memory_space<vmem>>, vector<1x32x32xf32>
    %122 = vector.shape_cast %121 : vector<1x32x32xf32> to vector<32x32xf32>
    %c0_53 = arith.constant 0 : index
    %c0_54 = arith.constant 0 : index
    %c512_55 = arith.constant 512 : index
    %123 = vector.load %arg8[%c0_53, %c0_54, %c512_55] : memref<3x1x896xf32, #tpu.memory_space<vmem>>, vector<1x1x32xf32>
    %124 = vector.shape_cast %123 : vector<1x1x32xf32> to vector<1x32xf32>
    %cst_56 = arith.constant dense<0.000000e+00> : vector<16x32xf32>
    %125 = tpu.matmul %120, %122, %cst_56 {dimension_numbers = #tpu.dot_dimension_numbers<[1], [0], [0], [1], [0, 0, 1, 1], [], []>} : vector<16x32xf32>, vector<32x32xf32>, vector<16x32xf32> -> vector<16x32xf32>
    %126 = vector.broadcast %124 : vector<1x32xf32> to vector<16x32xf32>
    %127 = arith.addf %125, %126 : vector<16x32xf32>
    %128 = arith.addf %63, %127 : vector<16x32xf32>
    %cst_57 = arith.constant dense<0.000000e+00> : vector<16xf32>
    %129 = vector.multi_reduction <add>, %128, %cst_57 [1] : vector<16x32xf32> to vector<16xf32>
    %130 = vector.shape_cast %129 : vector<16xf32> to vector<16x1xf32>
    %cst_58 = arith.constant 3.200000e+01 : f32
    %131 = vector.broadcast %cst_58 : f32 to vector<16x1xf32>
    %132 = arith.divf %130, %131 : vector<16x1xf32>
    %133 = vector.broadcast %132 : vector<16x1xf32> to vector<16x32xf32>
    %134 = arith.subf %128, %133 : vector<16x32xf32>
    %135 = arith.mulf %134, %134 : vector<16x32xf32>
    %cst_59 = arith.constant dense<0.000000e+00> : vector<16xf32>
    %136 = vector.multi_reduction <add>, %135, %cst_59 [1] : vector<16x32xf32> to vector<16xf32>
    %137 = vector.shape_cast %136 : vector<16xf32> to vector<16x1xf32>
    %cst_60 = arith.constant 3.200000e+01 : f32
    %138 = vector.broadcast %cst_60 : f32 to vector<16x1xf32>
    %139 = arith.divf %137, %138 : vector<16x1xf32>
    %140 = vector.broadcast %132 : vector<16x1xf32> to vector<16x32xf32>
    %141 = arith.subf %128, %140 : vector<16x32xf32>
    %cst_61 = arith.constant 9.99999974E-6 : f32
    %142 = vector.broadcast %cst_61 : f32 to vector<16x1xf32>
    %143 = arith.addf %139, %142 : vector<16x1xf32>
    %144 = math.rsqrt %143 : vector<16x1xf32>
    %145 = vector.broadcast %144 : vector<16x1xf32> to vector<16x32xf32>
    %146 = arith.mulf %141, %145 : vector<16x32xf32>
    %c0_62 = arith.constant 0 : index
    %c0_63 = arith.constant 0 : index
    %c640 = arith.constant 640 : index
    %147 = vector.load %arg6[%c0_62, %c0_63, %c640] : memref<3x32x768xf32, #tpu.memory_space<vmem>>, vector<1x32x64xf32>
    %148 = vector.shape_cast %147 : vector<1x32x64xf32> to vector<32x64xf32>
    %c0_64 = arith.constant 0 : index
    %c0_65 = arith.constant 0 : index
    %c640_66 = arith.constant 640 : index
    %149 = vector.load %arg8[%c0_64, %c0_65, %c640_66] : memref<3x1x896xf32, #tpu.memory_space<vmem>>, vector<1x1x64xf32>
    %150 = vector.shape_cast %149 : vector<1x1x64xf32> to vector<1x64xf32>
    %cst_67 = arith.constant dense<0.000000e+00> : vector<16x64xf32>
    %151 = tpu.matmul %146, %148, %cst_67 {dimension_numbers = #tpu.dot_dimension_numbers<[1], [0], [0], [1], [0, 0, 1, 1], [], []>} : vector<16x32xf32>, vector<32x64xf32>, vector<16x64xf32> -> vector<16x64xf32>
    %152 = vector.broadcast %150 : vector<1x64xf32> to vector<16x64xf32>
    %153 = arith.addf %151, %152 : vector<16x64xf32>
    %cst_68 = arith.constant 0.000000e+00 : f32
    %154 = vector.broadcast %cst_68 : f32 to vector<16x64xf32>
    %155 = arith.maximumf %153, %154 : vector<16x64xf32>
    %c0_69 = arith.constant 0 : index
    %c0_70 = arith.constant 0 : index
    %c0_71 = arith.constant 0 : index
    %156 = vector.load %arg7[%c0_69, %c0_70, %c0_71] : memref<2x64x32xf32, #tpu.memory_space<vmem>>, vector<1x64x32xf32>
    %157 = vector.shape_cast %156 : vector<1x64x32xf32> to vector<64x32xf32>
    %c0_72 = arith.constant 0 : index
    %c0_73 = arith.constant 0 : index
    %c768 = arith.constant 768 : index
    %158 = vector.load %arg8[%c0_72, %c0_73, %c768] : memref<3x1x896xf32, #tpu.memory_space<vmem>>, vector<1x1x32xf32>
    %159 = vector.shape_cast %158 : vector<1x1x32xf32> to vector<1x32xf32>
    %cst_74 = arith.constant dense<0.000000e+00> : vector<16x32xf32>
    %160 = tpu.matmul %155, %157, %cst_74 {dimension_numbers = #tpu.dot_dimension_numbers<[1], [0], [0], [1], [0, 0, 1, 1], [], []>} : vector<16x64xf32>, vector<64x32xf32>, vector<16x32xf32> -> vector<16x32xf32>
    %161 = vector.broadcast %159 : vector<1x32xf32> to vector<16x32xf32>
    %162 = arith.addf %160, %161 : vector<16x32xf32>
    %163 = arith.addf %128, %162 : vector<16x32xf32>
    %cst_75 = arith.constant dense<0.000000e+00> : vector<16xf32>
    %164 = vector.multi_reduction <add>, %163, %cst_75 [1] : vector<16x32xf32> to vector<16xf32>
    %165 = vector.shape_cast %164 : vector<16xf32> to vector<16x1xf32>
    %cst_76 = arith.constant 3.200000e+01 : f32
    %166 = vector.broadcast %cst_76 : f32 to vector<16x1xf32>
    %167 = arith.divf %165, %166 : vector<16x1xf32>
    %168 = vector.broadcast %167 : vector<16x1xf32> to vector<16x32xf32>
    %169 = arith.subf %163, %168 : vector<16x32xf32>
    %170 = arith.mulf %169, %169 : vector<16x32xf32>
    %cst_77 = arith.constant dense<0.000000e+00> : vector<16xf32>
    %171 = vector.multi_reduction <add>, %170, %cst_77 [1] : vector<16x32xf32> to vector<16xf32>
    %172 = vector.shape_cast %171 : vector<16xf32> to vector<16x1xf32>
    %cst_78 = arith.constant 3.200000e+01 : f32
    %173 = vector.broadcast %cst_78 : f32 to vector<16x1xf32>
    %174 = arith.divf %172, %173 : vector<16x1xf32>
    %175 = vector.broadcast %167 : vector<16x1xf32> to vector<16x32xf32>
    %176 = arith.subf %163, %175 : vector<16x32xf32>
    %cst_79 = arith.constant 9.99999974E-6 : f32
    %177 = vector.broadcast %cst_79 : f32 to vector<16x1xf32>
    %178 = arith.addf %174, %177 : vector<16x1xf32>
    %179 = math.rsqrt %178 : vector<16x1xf32>
    %180 = vector.broadcast %179 : vector<16x1xf32> to vector<16x32xf32>
    %181 = arith.mulf %176, %180 : vector<16x32xf32>
    %c1 = arith.constant 1 : index
    %c0_80 = arith.constant 0 : index
    %c0_81 = arith.constant 0 : index
    %182 = vector.load %arg6[%c1, %c0_80, %c0_81] : memref<3x32x768xf32, #tpu.memory_space<vmem>>, vector<1x32x96xf32>
    %183 = vector.shape_cast %182 : vector<1x32x96xf32> to vector<32x96xf32>
    %c1_82 = arith.constant 1 : index
    %c0_83 = arith.constant 0 : index
    %c0_84 = arith.constant 0 : index
    %184 = vector.load %arg8[%c1_82, %c0_83, %c0_84] : memref<3x1x896xf32, #tpu.memory_space<vmem>>, vector<1x1x96xf32>
    %185 = vector.shape_cast %184 : vector<1x1x96xf32> to vector<1x96xf32>
    %cst_85 = arith.constant dense<0.000000e+00> : vector<16x96xf32>
    %186 = tpu.matmul %181, %183, %cst_85 {dimension_numbers = #tpu.dot_dimension_numbers<[1], [0], [0], [1], [0, 0, 1, 1], [], []>} : vector<16x32xf32>, vector<32x96xf32>, vector<16x96xf32> -> vector<16x96xf32>
    %187 = vector.broadcast %185 : vector<1x96xf32> to vector<16x96xf32>
    %188 = arith.addf %186, %187 : vector<16x96xf32>
    %189 = vector.extract_strided_slice %188 {offsets = [0, 0], sizes = [16, 32], strides = [1, 1]} : vector<16x96xf32> to vector<16x32xf32>
    %190 = vector.extract_strided_slice %188 {offsets = [0, 32], sizes = [16, 32], strides = [1, 1]} : vector<16x96xf32> to vector<16x32xf32>
    %191 = vector.extract_strided_slice %188 {offsets = [0, 64], sizes = [16, 32], strides = [1, 1]} : vector<16x96xf32> to vector<16x32xf32>
    %192 = tpu.concatenate %189, %189, %189, %189 in 0 : vector<16x32xf32>, vector<16x32xf32>, vector<16x32xf32>, vector<16x32xf32> -> vector<64x32xf32>
    %193 = arith.mulf %192, %2 : vector<64x32xf32>
    %cst_86 = arith.constant dense<0.000000e+00> : vector<64x16xf32>
    %194 = tpu.matmul %193, %190, %cst_86 {dimension_numbers = #tpu.dot_dimension_numbers<[1], [1], [0], [0], [0, 0, 1, 0], [], []>} : vector<64x32xf32>, vector<16x32xf32>, vector<64x16xf32> -> vector<64x16xf32>
    %195 = arith.addf %194, %3 : vector<64x16xf32>
    %cst_87 = arith.constant dense<0xFF800000> : vector<64xf32>
    %196 = vector.multi_reduction <maximumf>, %195, %cst_87 [1] : vector<64x16xf32> to vector<64xf32>
    %197 = vector.shape_cast %196 : vector<64xf32> to vector<64x1xf32>
    %198 = vector.broadcast %197 : vector<64x1xf32> to vector<64x16xf32>
    %199 = arith.subf %195, %198 : vector<64x16xf32>
    %200 = math.exp %199 : vector<64x16xf32>
    %cst_88 = arith.constant dense<0.000000e+00> : vector<64xf32>
    %201 = vector.multi_reduction <add>, %200, %cst_88 [1] : vector<64x16xf32> to vector<64xf32>
    %202 = vector.shape_cast %201 : vector<64xf32> to vector<64x1xf32>
    %203 = tpu.reciprocal %202 {approx = true} : vector<64x1xf32> -> vector<64x1xf32>
    %204 = vector.broadcast %203 : vector<64x1xf32> to vector<64x16xf32>
    %205 = arith.mulf %200, %204 : vector<64x16xf32>
    %cst_89 = arith.constant dense<0.000000e+00> : vector<64x32xf32>
    %206 = tpu.matmul %205, %191, %cst_89 {dimension_numbers = #tpu.dot_dimension_numbers<[1], [0], [0], [1], [0, 0, 1, 1], [], []>} : vector<64x16xf32>, vector<16x32xf32>, vector<64x32xf32> -> vector<64x32xf32>
    %207 = arith.mulf %206, %2 : vector<64x32xf32>
    %208 = vector.extract_strided_slice %207 {offsets = [0, 0], sizes = [16, 32], strides = [1, 1]} : vector<64x32xf32> to vector<16x32xf32>
    %209 = vector.extract_strided_slice %207 {offsets = [16, 0], sizes = [16, 32], strides = [1, 1]} : vector<64x32xf32> to vector<16x32xf32>
    %210 = arith.addf %208, %209 : vector<16x32xf32>
    %211 = vector.extract_strided_slice %207 {offsets = [32, 0], sizes = [16, 32], strides = [1, 1]} : vector<64x32xf32> to vector<16x32xf32>
    %212 = arith.addf %210, %211 : vector<16x32xf32>
    %213 = vector.extract_strided_slice %207 {offsets = [48, 0], sizes = [16, 32], strides = [1, 1]} : vector<64x32xf32> to vector<16x32xf32>
    %214 = arith.addf %212, %213 : vector<16x32xf32>
    %c1_90 = arith.constant 1 : index
    %c0_91 = arith.constant 0 : index
    %c128_92 = arith.constant 128 : index
    %215 = vector.load %arg6[%c1_90, %c0_91, %c128_92] : memref<3x32x768xf32, #tpu.memory_space<vmem>>, vector<1x32x32xf32>
    %216 = vector.shape_cast %215 : vector<1x32x32xf32> to vector<32x32xf32>
    %c1_93 = arith.constant 1 : index
    %c0_94 = arith.constant 0 : index
    %c128_95 = arith.constant 128 : index
    %217 = vector.load %arg8[%c1_93, %c0_94, %c128_95] : memref<3x1x896xf32, #tpu.memory_space<vmem>>, vector<1x1x32xf32>
    %218 = vector.shape_cast %217 : vector<1x1x32xf32> to vector<1x32xf32>
    %cst_96 = arith.constant dense<0.000000e+00> : vector<16x32xf32>
    %219 = tpu.matmul %214, %216, %cst_96 {dimension_numbers = #tpu.dot_dimension_numbers<[1], [0], [0], [1], [0, 0, 1, 1], [], []>} : vector<16x32xf32>, vector<32x32xf32>, vector<16x32xf32> -> vector<16x32xf32>
    %220 = vector.broadcast %218 : vector<1x32xf32> to vector<16x32xf32>
    %221 = arith.addf %219, %220 : vector<16x32xf32>
    %222 = arith.addf %163, %221 : vector<16x32xf32>
    %cst_97 = arith.constant dense<0.000000e+00> : vector<16xf32>
    %223 = vector.multi_reduction <add>, %222, %cst_97 [1] : vector<16x32xf32> to vector<16xf32>
    %224 = vector.shape_cast %223 : vector<16xf32> to vector<16x1xf32>
    %cst_98 = arith.constant 3.200000e+01 : f32
    %225 = vector.broadcast %cst_98 : f32 to vector<16x1xf32>
    %226 = arith.divf %224, %225 : vector<16x1xf32>
    %227 = vector.broadcast %226 : vector<16x1xf32> to vector<16x32xf32>
    %228 = arith.subf %222, %227 : vector<16x32xf32>
    %229 = arith.mulf %228, %228 : vector<16x32xf32>
    %cst_99 = arith.constant dense<0.000000e+00> : vector<16xf32>
    %230 = vector.multi_reduction <add>, %229, %cst_99 [1] : vector<16x32xf32> to vector<16xf32>
    %231 = vector.shape_cast %230 : vector<16xf32> to vector<16x1xf32>
    %cst_100 = arith.constant 3.200000e+01 : f32
    %232 = vector.broadcast %cst_100 : f32 to vector<16x1xf32>
    %233 = arith.divf %231, %232 : vector<16x1xf32>
    %234 = vector.broadcast %226 : vector<16x1xf32> to vector<16x32xf32>
    %235 = arith.subf %222, %234 : vector<16x32xf32>
    %cst_101 = arith.constant 9.99999974E-6 : f32
    %236 = vector.broadcast %cst_101 : f32 to vector<16x1xf32>
    %237 = arith.addf %233, %236 : vector<16x1xf32>
    %238 = math.rsqrt %237 : vector<16x1xf32>
    %239 = vector.broadcast %238 : vector<16x1xf32> to vector<16x32xf32>
    %240 = arith.mulf %235, %239 : vector<16x32xf32>
    %c1_102 = arith.constant 1 : index
    %c0_103 = arith.constant 0 : index
    %c256_104 = arith.constant 256 : index
    %241 = vector.load %arg6[%c1_102, %c0_103, %c256_104] : memref<3x32x768xf32, #tpu.memory_space<vmem>>, vector<1x32x32xf32>
    %242 = vector.shape_cast %241 : vector<1x32x32xf32> to vector<32x32xf32>
    %c1_105 = arith.constant 1 : index
    %c0_106 = arith.constant 0 : index
    %c256_107 = arith.constant 256 : index
    %243 = vector.load %arg8[%c1_105, %c0_106, %c256_107] : memref<3x1x896xf32, #tpu.memory_space<vmem>>, vector<1x1x32xf32>
    %244 = vector.shape_cast %243 : vector<1x1x32xf32> to vector<1x32xf32>
    %cst_108 = arith.constant dense<0.000000e+00> : vector<16x32xf32>
    %245 = tpu.matmul %240, %242, %cst_108 {dimension_numbers = #tpu.dot_dimension_numbers<[1], [0], [0], [1], [0, 0, 1, 1], [], []>} : vector<16x32xf32>, vector<32x32xf32>, vector<16x32xf32> -> vector<16x32xf32>
    %246 = vector.broadcast %244 : vector<1x32xf32> to vector<16x32xf32>
    %247 = arith.addf %245, %246 : vector<16x32xf32>
    %c1_109 = arith.constant 1 : index
    %c0_110 = arith.constant 0 : index
    %c384_111 = arith.constant 384 : index
    %248 = vector.load %arg6[%c1_109, %c0_110, %c384_111] : memref<3x32x768xf32, #tpu.memory_space<vmem>>, vector<1x32x64xf32>
    %249 = vector.shape_cast %248 : vector<1x32x64xf32> to vector<32x64xf32>
    %c1_112 = arith.constant 1 : index
    %c0_113 = arith.constant 0 : index
    %c384_114 = arith.constant 384 : index
    %250 = vector.load %arg8[%c1_112, %c0_113, %c384_114] : memref<3x1x896xf32, #tpu.memory_space<vmem>>, vector<1x1x64xf32>
    %251 = vector.shape_cast %250 : vector<1x1x64xf32> to vector<1x64xf32>
    %cst_115 = arith.constant dense<0.000000e+00> : vector<24x64xf32>
    %252 = tpu.matmul %1, %249, %cst_115 {dimension_numbers = #tpu.dot_dimension_numbers<[1], [0], [0], [1], [0, 0, 1, 1], [], []>} : vector<24x32xf32>, vector<32x64xf32>, vector<24x64xf32> -> vector<24x64xf32>
    %253 = vector.broadcast %251 : vector<1x64xf32> to vector<24x64xf32>
    %254 = arith.addf %252, %253 : vector<24x64xf32>
    %255 = vector.extract_strided_slice %254 {offsets = [0, 0], sizes = [24, 32], strides = [1, 1]} : vector<24x64xf32> to vector<24x32xf32>
    %256 = vector.extract_strided_slice %254 {offsets = [0, 32], sizes = [24, 32], strides = [1, 1]} : vector<24x64xf32> to vector<24x32xf32>
    %257 = tpu.concatenate %247, %247, %247, %247 in 0 : vector<16x32xf32>, vector<16x32xf32>, vector<16x32xf32>, vector<16x32xf32> -> vector<64x32xf32>
    %258 = arith.mulf %257, %2 : vector<64x32xf32>
    %cst_116 = arith.constant dense<0.000000e+00> : vector<64x24xf32>
    %259 = tpu.matmul %258, %255, %cst_116 {dimension_numbers = #tpu.dot_dimension_numbers<[1], [1], [0], [0], [0, 0, 1, 0], [], []>} : vector<64x32xf32>, vector<24x32xf32>, vector<64x24xf32> -> vector<64x24xf32>
    %260 = arith.addf %259, %4 : vector<64x24xf32>
    %cst_117 = arith.constant dense<0xFF800000> : vector<64xf32>
    %261 = vector.multi_reduction <maximumf>, %260, %cst_117 [1] : vector<64x24xf32> to vector<64xf32>
    %262 = vector.shape_cast %261 : vector<64xf32> to vector<64x1xf32>
    %263 = vector.broadcast %262 : vector<64x1xf32> to vector<64x24xf32>
    %264 = arith.subf %260, %263 : vector<64x24xf32>
    %265 = math.exp %264 : vector<64x24xf32>
    %cst_118 = arith.constant dense<0.000000e+00> : vector<64xf32>
    %266 = vector.multi_reduction <add>, %265, %cst_118 [1] : vector<64x24xf32> to vector<64xf32>
    %267 = vector.shape_cast %266 : vector<64xf32> to vector<64x1xf32>
    %268 = tpu.reciprocal %267 {approx = true} : vector<64x1xf32> -> vector<64x1xf32>
    %269 = vector.broadcast %268 : vector<64x1xf32> to vector<64x24xf32>
    %270 = arith.mulf %265, %269 : vector<64x24xf32>
    %cst_119 = arith.constant dense<0.000000e+00> : vector<64x32xf32>
    %271 = tpu.matmul %270, %256, %cst_119 {dimension_numbers = #tpu.dot_dimension_numbers<[1], [0], [0], [1], [0, 0, 1, 1], [], []>} : vector<64x24xf32>, vector<24x32xf32>, vector<64x32xf32> -> vector<64x32xf32>
    %272 = arith.mulf %271, %2 : vector<64x32xf32>
    %273 = vector.extract_strided_slice %272 {offsets = [0, 0], sizes = [16, 32], strides = [1, 1]} : vector<64x32xf32> to vector<16x32xf32>
    %274 = vector.extract_strided_slice %272 {offsets = [16, 0], sizes = [16, 32], strides = [1, 1]} : vector<64x32xf32> to vector<16x32xf32>
    %275 = arith.addf %273, %274 : vector<16x32xf32>
    %276 = vector.extract_strided_slice %272 {offsets = [32, 0], sizes = [16, 32], strides = [1, 1]} : vector<64x32xf32> to vector<16x32xf32>
    %277 = arith.addf %275, %276 : vector<16x32xf32>
    %278 = vector.extract_strided_slice %272 {offsets = [48, 0], sizes = [16, 32], strides = [1, 1]} : vector<64x32xf32> to vector<16x32xf32>
    %279 = arith.addf %277, %278 : vector<16x32xf32>
    %c1_120 = arith.constant 1 : index
    %c0_121 = arith.constant 0 : index
    %c512_122 = arith.constant 512 : index
    %280 = vector.load %arg6[%c1_120, %c0_121, %c512_122] : memref<3x32x768xf32, #tpu.memory_space<vmem>>, vector<1x32x32xf32>
    %281 = vector.shape_cast %280 : vector<1x32x32xf32> to vector<32x32xf32>
    %c1_123 = arith.constant 1 : index
    %c0_124 = arith.constant 0 : index
    %c512_125 = arith.constant 512 : index
    %282 = vector.load %arg8[%c1_123, %c0_124, %c512_125] : memref<3x1x896xf32, #tpu.memory_space<vmem>>, vector<1x1x32xf32>
    %283 = vector.shape_cast %282 : vector<1x1x32xf32> to vector<1x32xf32>
    %cst_126 = arith.constant dense<0.000000e+00> : vector<16x32xf32>
    %284 = tpu.matmul %279, %281, %cst_126 {dimension_numbers = #tpu.dot_dimension_numbers<[1], [0], [0], [1], [0, 0, 1, 1], [], []>} : vector<16x32xf32>, vector<32x32xf32>, vector<16x32xf32> -> vector<16x32xf32>
    %285 = vector.broadcast %283 : vector<1x32xf32> to vector<16x32xf32>
    %286 = arith.addf %284, %285 : vector<16x32xf32>
    %287 = arith.addf %222, %286 : vector<16x32xf32>
    %cst_127 = arith.constant dense<0.000000e+00> : vector<16xf32>
    %288 = vector.multi_reduction <add>, %287, %cst_127 [1] : vector<16x32xf32> to vector<16xf32>
    %289 = vector.shape_cast %288 : vector<16xf32> to vector<16x1xf32>
    %cst_128 = arith.constant 3.200000e+01 : f32
    %290 = vector.broadcast %cst_128 : f32 to vector<16x1xf32>
    %291 = arith.divf %289, %290 : vector<16x1xf32>
    %292 = vector.broadcast %291 : vector<16x1xf32> to vector<16x32xf32>
    %293 = arith.subf %287, %292 : vector<16x32xf32>
    %294 = arith.mulf %293, %293 : vector<16x32xf32>
    %cst_129 = arith.constant dense<0.000000e+00> : vector<16xf32>
    %295 = vector.multi_reduction <add>, %294, %cst_129 [1] : vector<16x32xf32> to vector<16xf32>
    %296 = vector.shape_cast %295 : vector<16xf32> to vector<16x1xf32>
    %cst_130 = arith.constant 3.200000e+01 : f32
    %297 = vector.broadcast %cst_130 : f32 to vector<16x1xf32>
    %298 = arith.divf %296, %297 : vector<16x1xf32>
    %299 = vector.broadcast %291 : vector<16x1xf32> to vector<16x32xf32>
    %300 = arith.subf %287, %299 : vector<16x32xf32>
    %cst_131 = arith.constant 9.99999974E-6 : f32
    %301 = vector.broadcast %cst_131 : f32 to vector<16x1xf32>
    %302 = arith.addf %298, %301 : vector<16x1xf32>
    %303 = math.rsqrt %302 : vector<16x1xf32>
    %304 = vector.broadcast %303 : vector<16x1xf32> to vector<16x32xf32>
    %305 = arith.mulf %300, %304 : vector<16x32xf32>
    %c1_132 = arith.constant 1 : index
    %c0_133 = arith.constant 0 : index
    %c640_134 = arith.constant 640 : index
    %306 = vector.load %arg6[%c1_132, %c0_133, %c640_134] : memref<3x32x768xf32, #tpu.memory_space<vmem>>, vector<1x32x64xf32>
    %307 = vector.shape_cast %306 : vector<1x32x64xf32> to vector<32x64xf32>
    %c1_135 = arith.constant 1 : index
    %c0_136 = arith.constant 0 : index
    %c640_137 = arith.constant 640 : index
    %308 = vector.load %arg8[%c1_135, %c0_136, %c640_137] : memref<3x1x896xf32, #tpu.memory_space<vmem>>, vector<1x1x64xf32>
    %309 = vector.shape_cast %308 : vector<1x1x64xf32> to vector<1x64xf32>
    %cst_138 = arith.constant dense<0.000000e+00> : vector<16x64xf32>
    %310 = tpu.matmul %305, %307, %cst_138 {dimension_numbers = #tpu.dot_dimension_numbers<[1], [0], [0], [1], [0, 0, 1, 1], [], []>} : vector<16x32xf32>, vector<32x64xf32>, vector<16x64xf32> -> vector<16x64xf32>
    %311 = vector.broadcast %309 : vector<1x64xf32> to vector<16x64xf32>
    %312 = arith.addf %310, %311 : vector<16x64xf32>
    %cst_139 = arith.constant 0.000000e+00 : f32
    %313 = vector.broadcast %cst_139 : f32 to vector<16x64xf32>
    %314 = arith.maximumf %312, %313 : vector<16x64xf32>
    %c1_140 = arith.constant 1 : index
    %c0_141 = arith.constant 0 : index
    %c0_142 = arith.constant 0 : index
    %315 = vector.load %arg7[%c1_140, %c0_141, %c0_142] : memref<2x64x32xf32, #tpu.memory_space<vmem>>, vector<1x64x32xf32>
    %316 = vector.shape_cast %315 : vector<1x64x32xf32> to vector<64x32xf32>
    %c1_143 = arith.constant 1 : index
    %c0_144 = arith.constant 0 : index
    %c768_145 = arith.constant 768 : index
    %317 = vector.load %arg8[%c1_143, %c0_144, %c768_145] : memref<3x1x896xf32, #tpu.memory_space<vmem>>, vector<1x1x32xf32>
    %318 = vector.shape_cast %317 : vector<1x1x32xf32> to vector<1x32xf32>
    %cst_146 = arith.constant dense<0.000000e+00> : vector<16x32xf32>
    %319 = tpu.matmul %314, %316, %cst_146 {dimension_numbers = #tpu.dot_dimension_numbers<[1], [0], [0], [1], [0, 0, 1, 1], [], []>} : vector<16x64xf32>, vector<64x32xf32>, vector<16x32xf32> -> vector<16x32xf32>
    %320 = vector.broadcast %318 : vector<1x32xf32> to vector<16x32xf32>
    %321 = arith.addf %319, %320 : vector<16x32xf32>
    %322 = arith.addf %287, %321 : vector<16x32xf32>
    %cst_147 = arith.constant dense<0.000000e+00> : vector<16xf32>
    %323 = vector.multi_reduction <add>, %322, %cst_147 [1] : vector<16x32xf32> to vector<16xf32>
    %324 = vector.shape_cast %323 : vector<16xf32> to vector<16x1xf32>
    %cst_148 = arith.constant 3.200000e+01 : f32
    %325 = vector.broadcast %cst_148 : f32 to vector<16x1xf32>
    %326 = arith.divf %324, %325 : vector<16x1xf32>
    %327 = vector.broadcast %326 : vector<16x1xf32> to vector<16x32xf32>
    %328 = arith.subf %322, %327 : vector<16x32xf32>
    %329 = arith.mulf %328, %328 : vector<16x32xf32>
    %cst_149 = arith.constant dense<0.000000e+00> : vector<16xf32>
    %330 = vector.multi_reduction <add>, %329, %cst_149 [1] : vector<16x32xf32> to vector<16xf32>
    %331 = vector.shape_cast %330 : vector<16xf32> to vector<16x1xf32>
    %cst_150 = arith.constant 3.200000e+01 : f32
    %332 = vector.broadcast %cst_150 : f32 to vector<16x1xf32>
    %333 = arith.divf %331, %332 : vector<16x1xf32>
    %334 = vector.broadcast %326 : vector<16x1xf32> to vector<16x32xf32>
    %335 = arith.subf %322, %334 : vector<16x32xf32>
    %cst_151 = arith.constant 9.99999974E-6 : f32
    %336 = vector.broadcast %cst_151 : f32 to vector<16x1xf32>
    %337 = arith.addf %333, %336 : vector<16x1xf32>
    %338 = math.rsqrt %337 : vector<16x1xf32>
    %339 = vector.broadcast %338 : vector<16x1xf32> to vector<16x32xf32>
    %340 = arith.mulf %335, %339 : vector<16x32xf32>
    %c2 = arith.constant 2 : index
    %c0_152 = arith.constant 0 : index
    %c0_153 = arith.constant 0 : index
    %341 = vector.load %arg6[%c2, %c0_152, %c0_153] : memref<3x32x768xf32, #tpu.memory_space<vmem>>, vector<1x32x128xf32>
    %342 = vector.shape_cast %341 : vector<1x32x128xf32> to vector<32x128xf32>
    %c2_154 = arith.constant 2 : index
    %c0_155 = arith.constant 0 : index
    %c0_156 = arith.constant 0 : index
    %343 = vector.load %arg8[%c2_154, %c0_155, %c0_156] : memref<3x1x896xf32, #tpu.memory_space<vmem>>, vector<1x1x128xf32>
    %344 = vector.shape_cast %343 : vector<1x1x128xf32> to vector<1x128xf32>
    %cst_157 = arith.constant dense<0.000000e+00> : vector<16x128xf32>
    %345 = tpu.matmul %340, %342, %cst_157 {dimension_numbers = #tpu.dot_dimension_numbers<[1], [0], [0], [1], [0, 0, 1, 1], [], []>} : vector<16x32xf32>, vector<32x128xf32>, vector<16x128xf32> -> vector<16x128xf32>
    %346 = vector.broadcast %344 : vector<1x128xf32> to vector<16x128xf32>
    %347 = arith.addf %345, %346 : vector<16x128xf32>
    %c0_158 = arith.constant 0 : index
    %c0_159 = arith.constant 0 : index
    %348 = vector.load %arg9[%c0_158, %c0_159] : memref<16x128xf32, #tpu.memory_space<vmem>>, vector<16x128xf32>
    tpu.vector_store %arg9[%c0_158, %c0_159], %347 {strides = array<i32>} : memref<16x128xf32, #tpu.memory_space<vmem>>, vector<16x128xf32>,
    return
  }
  func.func @transform_0(%arg0: i32) -> (i32, i32) {
    %c0_i32 = arith.constant 0 : i32
    %c0_i32_0 = arith.constant 0 : i32
    %c0_i32_1 = arith.constant 0 : i32
    return %c0_i32, %c0_i32_0 : i32, i32
  }
  func.func @transform_1(%arg0: i32) -> (i32, i32) {
    %c0_i32 = arith.constant 0 : i32
    %c0_i32_0 = arith.constant 0 : i32
    %c0_i32_1 = arith.constant 0 : i32
    return %c0_i32, %c0_i32_0 : i32, i32
  }
  func.func @transform_2(%arg0: i32) -> (i32, i32) {
    %c0_i32 = arith.constant 0 : i32
    %c0_i32_0 = arith.constant 0 : i32
    %c0_i32_1 = arith.constant 0 : i32
    return %c0_i32, %c0_i32_0 : i32, i32
  }
  func.func @transform_3(%arg0: i32) -> (i32, i32) {
    %c0_i32 = arith.constant 0 : i32
    %c0_i32_0 = arith.constant 0 : i32
    %c0_i32_1 = arith.constant 0 : i32
    return %c0_i32, %c0_i32_0 : i32, i32
  }
  func.func @transform_4(%arg0: i32) -> (i32, i32) {
    %c0_i32 = arith.constant 0 : i32
    %c0_i32_0 = arith.constant 0 : i32
    %c0_i32_1 = arith.constant 0 : i32
    return %c0_i32, %c0_i32_0 : i32, i32
  }
  func.func @transform_5(%arg0: i32) -> (i32, i32, i32) {
    %c0_i32 = arith.constant 0 : i32
    %c0_i32_0 = arith.constant 0 : i32
    %c0_i32_1 = arith.constant 0 : i32
    %c0_i32_2 = arith.constant 0 : i32
    return %c0_i32, %c0_i32_0, %c0_i32_1 : i32, i32, i32
  }
  func.func @transform_6(%arg0: i32) -> (i32, i32, i32) {
    %c0_i32 = arith.constant 0 : i32
    %c0_i32_0 = arith.constant 0 : i32
    %c0_i32_1 = arith.constant 0 : i32
    %c0_i32_2 = arith.constant 0 : i32
    return %c0_i32, %c0_i32_0, %c0_i32_1 : i32, i32, i32
  }
  func.func @transform_7(%arg0: i32) -> (i32, i32, i32) {
    %c0_i32 = arith.constant 0 : i32
    %c0_i32_0 = arith.constant 0 : i32
    %c0_i32_1 = arith.constant 0 : i32
    %c0_i32_2 = arith.constant 0 : i32
    return %c0_i32, %c0_i32_0, %c0_i32_1 : i32, i32, i32
  }
  func.func @transform_8(%arg0: i32) -> (i32, i32) {
    %c0_i32 = arith.constant 0 : i32
    %c0_i32_0 = arith.constant 0 : i32
    %c0_i32_1 = arith.constant 0 : i32
    return %c0_i32, %c0_i32_0 : i32, i32
  }
}

</mosaic_0001>

<llo_original>
// kernel: eq.36
$region0: #{eq.36}
  %s0 = inlined_call_operand.vmem [shape: s32[4,16], index: 0, kind: input, shape index: {}]
  %s1 = inlined_call_operand.vmem [shape: s32[64], index: 1, kind: output, shape index: {}]
  $region1: #{eq.36} parent=0
    #allocation0 [shape = 'u8[4096]{0}', space=vmem, size = 0x1000, scoped, tag = 'scoped mem for output reshape']
    #allocation1 [shape = 'u8[4096]{0}', space=vmem, size = 0x1000, scoped, tag = 'scoped mem for input reshape']
    %s3 = sshllo.u32 0, 4
    %v4 = vld [vmem:[%s0] sm:%s3]
    %5 = vst [vmem:[#allocation1] sm:%s3] %v4
    %v6 = vld [vmem:[#allocation1] sm:$0x1]
    %vm7 = vcmask 130048
    %8 = vst.msk [vmem:[#allocation0] sm:$0x1] %vm7, %v6
    %s9 = scalar_lea.vmem [#allocation1], 3
    %v10 = vld [vmem:[%s9] sm:$0x1]
    %11 = vrot.lane.b32.xlu0 %v10, 48
    %v12 = vpop.permute.xlu0 %11
    %vm13 = vcmask 523648
    %14 = vst.msk [vmem:[#allocation0] sm:$0x1] %vm13, %v12
    %s15 = scalar_lea.vmem [#allocation1], 2
    %v16 = vld [vmem:[%s15] sm:$0x1]
    %17 = vrot.lane.b32.xlu0 %v16, 32
    %v18 = vpop.permute.xlu0 %17
    %vm19 = vcmask 392448
    %20 = vst.msk [vmem:[#allocation0] sm:$0x1] %vm19, %v18
    %s21 = scalar_lea.vmem [#allocation1], 1
    %v22 = vld [vmem:[%s21] sm:$0x1]
    %23 = vrot.lane.b32.xlu0 %v22, 16
    %v24 = vpop.permute.xlu0 %23
    %vm25 = vcmask 261248
    %26 = vst.msk [vmem:[#allocation0] sm:$0x1] %vm25, %v24
    %s28 = sshllo.u32 0, 1
    %v30 = vld [vmem:[#allocation0] sm:%s28]
    %s31 = sshllo.u32 0, 1
    %32 = vst [vmem:[%s1] sm:%s31] %v30

// kernel: decoder_forward.1
$region0: #{decoder_forward.1}
  #allocation0 [shape = 'u32[]', space=smem, size = 0x4, offset = 0x4, fixed_abs, tag = 'smem constant byte address 0x4 - core index']
  #allocation1 [shape = 'u32[144,128]{1,0:T(1,128)}', space=vmem, size = 0x12000, scoped, tag = 'internal scratch']
  %s0 = inlined_call_operand.vmem [shape: f32[16,32], index: 0, kind: input, shape index: {}]
  %s1 = inlined_call_operand.vmem [shape: f32[24,32], index: 1, kind: input, shape index: {}]
  %s2 = inlined_call_operand.vmem [shape: f32[64,16], index: 2, kind: input, shape index: {}]
  %s3 = inlined_call_operand.vmem [shape: f32[64,24], index: 3, kind: input, shape index: {}]
  %s4 = inlined_call_operand.vmem [shape: f32[64,32], index: 4, kind: input, shape index: {}]
  %s5 = inlined_call_operand.vmem [shape: f32[3,32,768], index: 5, kind: input, shape index: {}]
  %s6 = inlined_call_operand.vmem [shape: f32[2,64,32], index: 6, kind: input, shape index: {}]
  %s7 = inlined_call_operand.vmem [shape: f32[3,1,896], index: 7, kind: input, shape index: {}]
  %s8 = inlined_call_operand.hbm [shape: f32[16,128], index: 8, kind: output, shape index: {}]
  %s9 = sld [smem:[#allocation0]]
  $region42: #{decoder_forward.1} parent=0
    _
  %s11 = ssub.s32 1, %s9
  %s12 = scalar_select 0, %s11, %s9
  $region1: #{decoder_forward.1} parent=0
    #allocation2 [shape = 'u8[8192]{0}', space=vmem, size = 0x2000, scoped, tag = 'output window, operand 0, single buffered']
    #allocation3 [shape = 's32[1]{0}', space=sflag, size = 0x4, scoped, tag = 'scoped memory for decoder_forward.1']
    %13 = vsyncpa [#allocation3], 0
    // Predicated region
    $region2: #{decoder_forward.1} parent=1 // pred_check
      _
    $region3: #{decoder_forward.1} parent=1 // pred_check_branch
      %15 = sbr.rel (0) target = $region5
    $region4: #{decoder_forward.1} parent=1 // pred_region
      _
    $region5: #{decoder_forward.1} parent=1 // pred_fallthru
      _
    // Predicated region
    $region6: #{decoder_forward.1} parent=1 // pred_check
      _
    $region7: #{decoder_forward.1} parent=1 // pred_check_branch
      %17 = sbr.rel (0) target = $region9
    $region8: #{decoder_forward.1} parent=1 // pred_region
      _
    $region9: #{decoder_forward.1} parent=1 // pred_fallthru
      _
    // Predicated region
    $region10: #{decoder_forward.1} parent=1 // pred_check
      _
    $region11: #{decoder_forward.1} parent=1 // pred_check_branch
      %19 = sbr.rel (0) target = $region13
    $region12: #{decoder_forward.1} parent=1 // pred_region
      _
    $region13: #{decoder_forward.1} parent=1 // pred_fallthru
      _
    // Predicated region
    $region14: #{decoder_forward.1} parent=1 // pred_check
      _
    $region15: #{decoder_forward.1} parent=1 // pred_check_branch
      %21 = sbr.rel (0) target = $region17
    $region16: #{decoder_forward.1} parent=1 // pred_region
      _
    $region17: #{decoder_forward.1} parent=1 // pred_fallthru
      _
    // Predicated region
    $region18: #{decoder_forward.1} parent=1 // pred_check
      _
    $region19: #{decoder_forward.1} parent=1 // pred_check_branch
      %23 = sbr.rel (0) target = $region21
    $region20: #{decoder_forward.1} parent=1 // pred_region
      _
    $region21: #{decoder_forward.1} parent=1 // pred_fallthru
      _
    // Predicated region
    $region22: #{decoder_forward.1} parent=1 // pred_check
      _
    $region23: #{decoder_forward.1} parent=1 // pred_check_branch
      %25 = sbr.rel (0) target = $region25
    $region24: #{decoder_forward.1} parent=1 // pred_region
      _
    $region25: #{decoder_forward.1} parent=1 // pred_fallthru
      _
    // Predicated region
    $region26: #{decoder_forward.1} parent=1 // pred_check
      _
    $region27: #{decoder_forward.1} parent=1 // pred_check_branch
      %27 = sbr.rel (0) target = $region29
    $region28: #{decoder_forward.1} parent=1 // pred_region
      _
    $region29: #{decoder_forward.1} parent=1 // pred_fallthru
      _
    // Predicated region
    $region30: #{decoder_forward.1} parent=1 // pred_check
      _
    $region31: #{decoder_forward.1} parent=1 // pred_check_branch
      %29 = sbr.rel (0) target = $region33
    $region32: #{decoder_forward.1} parent=1 // pred_region
      _
    $region33: #{decoder_forward.1} parent=1 // pred_fallthru
      _
    %v30 = vld [vmem:[%s0] sm:$0xff]
    %v31 = vld [vmem:[%s0 + $0x8] sm:$0xff]
    %v32 = vld [vmem:[%s1] sm:$0xff]
    %v33 = vld [vmem:[%s1 + $0x8] sm:$0xff]
    %v34 = vld [vmem:[%s1 + $0x10] sm:$0xff]
    %v35 = vld [vmem:[%s4] sm:$0xff]
    %v36 = vld [vmem:[%s4 + $0x8] sm:$0xff]
    %v37 = vld [vmem:[%s4 + $0x10] sm:$0xff]
    %v38 = vld [vmem:[%s4 + $0x18] sm:$0xff]
    %v39 = vld [vmem:[%s4 + $0x20] sm:$0xff]
    %v40 = vld [vmem:[%s4 + $0x28] sm:$0xff]
    %v41 = vld [vmem:[%s4 + $0x30] sm:$0xff]
    %v42 = vld [vmem:[%s4 + $0x38] sm:$0xff]
    %v43 = vld [vmem:[%s2] sm:$0xff]
    %v44 = vld [vmem:[%s2 + $0x8] sm:$0xff]
    %v45 = vld [vmem:[%s2 + $0x10] sm:$0xff]
    %v46 = vld [vmem:[%s2 + $0x18] sm:$0xff]
    %v47 = vld [vmem:[%s2 + $0x20] sm:$0xff]
    %v48 = vld [vmem:[%s2 + $0x28] sm:$0xff]
    %v49 = vld [vmem:[%s2 + $0x30] sm:$0xff]
    %v50 = vld [vmem:[%s2 + $0x38] sm:$0xff]
    %v51 = vld [vmem:[%s3] sm:$0xff]
    %v52 = vld [vmem:[%s3 + $0x8] sm:$0xff]
    %v53 = vld [vmem:[%s3 + $0x10] sm:$0xff]
    %v54 = vld [vmem:[%s3 + $0x18] sm:$0xff]
    %v55 = vld [vmem:[%s3 + $0x20] sm:$0xff]
    %v56 = vld [vmem:[%s3 + $0x28] sm:$0xff]
    %v57 = vld [vmem:[%s3 + $0x30] sm:$0xff]
    %v58 = vld [vmem:[%s3 + $0x38] sm:$0xff]
    %vm59 = vcmask 261120
    %v60 = vsel %vm59, %v30, 0.0
    %61 = vadd.xlane.f32.xlu0 %v60
    %v62 = vpop.xlane.xlu0 %61
    %v63 = vsel %vm59, %v31, 0.0
    %64 = vadd.xlane.f32.xlu0 %v63
    %v65 = vpop.xlane.xlu0 %64
    %v66 = vrcp.pop 32.0
    %v67 = vmul.f32 %v62, %v66
    %v68 = vmul.f32 %v65, %v66
    %v69 = vsub.f32 %v30, %v67
    %v70 = vsub.f32 %v31, %v68
    %v71 = vmul.f32 %v69, %v69
    %v72 = vmul.f32 %v70, %v70
    %v73 = vsel %vm59, %v71, 0.0
    %74 = vadd.xlane.f32.xlu0 %v73
    %v75 = vpop.xlane.xlu0 %74
    %v76 = vsel %vm59, %v72, 0.0
    %77 = vadd.xlane.f32.xlu0 %v76
    %v78 = vpop.xlane.xlu0 %77
    %v79 = vmul.f32 %v75, %v66
    %v80 = vmul.f32 %v78, %v66
    %v81 = vadd.f32 %v79, 1e-05
    %v82 = vadd.f32 %v80, 1e-05
    %v83 = vrsqrt.pop %v81
    %v84 = vrsqrt.pop %v82
    %v85 = vmul.f32 %v69, %v83
    %v86 = vmul.f32 %v70, %v84
    %v87 = vld [vmem:[%s5] sm:$0xff]
    %v88 = vld [vmem:[%s5 + $0x30] sm:$0xff]
    %v89 = vld [vmem:[%s5 + $0x60] sm:$0xff]
    %v90 = vld [vmem:[%s5 + $0x90] sm:$0xff]
    %v91 = vld [vmem:[%s7] sm:$0x1]
    %v93 = vlaneseq
    %v94 = vshrl.u32 %v93, 7
    %v95 = vsub.s32 0, %v94
    %v96 = vrot.slane %v91, %v95
    %v99 = vsel %vm59, %v85, 0
    %v102 = vsel %vm59, %v86, 0
    %104 = vmatprep.subr.mxu0 0.0
    %105 = vmatpush1.msra.mxu0 %v87
    %106 = vmatprep.subr.mxu0 0.0
    %107 = vmatpush1.msra.mxu0 %v88
    %108 = vmatprep.subr.mxu0 0.0
    %109 = vmatpush1.msra.mxu0 %v89
    %110 = vmatprep.subr.mxu0 0.0
    %111 = vmatpush1.msra.mxu0 %v90
    %112 = vmatprep.subr.mxu0 0.0
    %113 = vmatpush1.msra.mxu0 0.0
    %114 = vmatprep.subr.mxu0 0.0
    %115 = vmatpush1.msra.mxu0 0.0
    %116 = vmatprep.subr.mxu0 0.0
    %117 = vmatpush1.msra.mxu0 0.0
    %118 = vmatprep.subr.mxu0 0.0
    %119 = vmatpush1.msra.mxu0 0.0
    %120 = vmatprep.subr.mxu0 0.0
    %121 = vmatpush1.msra.mxu0 0.0
    %122 = vmatprep.subr.mxu0 0.0
    %123 = vmatpush1.msra.mxu0 0.0
    %124 = vmatprep.subr.mxu0 0.0
    %125 = vmatpush1.msra.mxu0 0.0
    %126 = vmatprep.subr.mxu0 0.0
    %127 = vmatpush1.msra.mxu0 0.0
    %128 = vmatprep.subr.mxu0 0.0
    %129 = vmatpush1.msra.mxu0 0.0
    %130 = vmatprep.subr.mxu0 0.0
    %131 = vmatpush1.msra.mxu0 0.0
    %132 = vmatprep.subr.mxu0 0.0
    %133 = vmatpush1.msra.mxu0 0.0
    %134 = vmatprep.subr.mxu0 0.0
    %135 = vmatpush1.msra.mxu0 0.0
    %136 = vmatprep.subr.mxu0 0.0
    %137 = vmatpush1.msra.mxu0 0.0
    %138 = vmatprep.subr.mxu0 0.0
    %139 = vmatpush1.msra.mxu0 0.0
    %140 = vmatprep.subr.mxu0 0.0
    %141 = vmatpush1.msra.mxu0 0.0
    %142 = vmatprep.subr.mxu0 0.0
    %143 = vmatpush1.msra.mxu0 0.0
    %144 = vmatprep.subr.mxu0 0.0
    %145 = vmatpush1.msra.mxu0 0.0
    %146 = vmatprep.subr.mxu0 0.0
    %147 = vmatpush1.msra.mxu0 0.0
    %148 = vmatprep.subr.mxu0 0.0
    %149 = vmatpush1.msra.mxu0 0.0
    %150 = vmatprep.subr.mxu0 0.0
    %151 = vmatpush1.msra.mxu0 0.0
    %152 = vmatprep.subr.mxu0 0.0
    %153 = vmatpush1.msra.mxu0 0.0
    %154 = vmatprep.subr.mxu0 0.0
    %155 = vmatpush1.msra.mxu0 0.0
    %156 = vmatprep.subr.mxu0 0.0
    %157 = vmatpush1.msra.mxu0 0.0
    %158 = vmatprep.subr.mxu0 0.0
    %159 = vmatpush1.msra.mxu0 0.0
    %160 = vmatprep.subr.mxu0 0.0
    %161 = vmatpush1.msra.mxu0 0.0
    %162 = vmatprep.subr.mxu0 0.0
    %163 = vmatpush1.msra.mxu0 0.0
    %164 = vmatprep.subr.mxu0 0.0
    %165 = vmatpush1.msra.mxu0 0.0
    %166 = vmatprep.subr.mxu0 0.0
    %167 = vmatpush1.msra.mxu0 0.0
    %168 = vmatprep.mubr.f32.mxu0 0.0
    %169 = vmatmul.mubr.f32.gmra.mrb[0].mxu0 %v99
    %v170 = vpop.f32.mrb[0].mxu0
    %v171 = vadd.f32 %v96, %v170
    %v172 = vpop.f32.mrb[0].mxu0
    %173 = vmatprep.mubr.f32.mxu0 0.0
    %174 = vmatmul.mubr.f32.gmra.mrb[0].mxu0 %v102
    %v175 = vpop.f32.mrb[0].mxu0
    %v176 = vadd.f32 %v96, %v175
    %v177 = vpop.f32.mrb[0].mxu0
    %178 = vdwg.mxu0
    %v179 = vmul.f32 %v171, %v35
    %v180 = vmul.f32 %v176, %v36
    %v181 = vmul.f32 %v171, %v37
    %v182 = vmul.f32 %v176, %v38
    %v183 = vmul.f32 %v171, %v39
    %v184 = vmul.f32 %v176, %v40
    %v185 = vmul.f32 %v171, %v41
    %v186 = vmul.f32 %v176, %v42
    %189 = vrot.lane.b32.xlu0 %v171, 96
    %v190 = vpop.permute.xlu0 %189
    %191 = vrot.lane.b32.xlu0 %v176, 96
    %v192 = vpop.permute.xlu0 %191
    %v194 = vsel %vm59, %v179, 0
    %v197 = vsel %vm59, %v180, 0
    %v200 = vsel %vm59, %v181, 0
    %v203 = vsel %vm59, %v182, 0
    %v206 = vsel %vm59, %v183, 0
    %v209 = vsel %vm59, %v184, 0
    %v212 = vsel %vm59, %v185, 0
    %v215 = vsel %vm59, %v186, 0
    %v217 = vsel %vm59, %v190, 0
    %v219 = vsel %vm59, %v192, 0
    %221 = vmatprep.subr.mxu0 0.0
    %222 = vmatpush1.xpose.msra.mxu0 %v217
    %223 = vmatprep.subr.mxu0 0.0
    %224 = vmatpush1.xpose.msra.mxu0 %v219
    %225 = vmatprep.subr.mxu0 0.0
    %226 = vmatpush1.xpose.msra.mxu0 0.0
    %227 = vmatprep.subr.mxu0 0.0
    %228 = vmatpush1.xpose.msra.mxu0 0.0
    %229 = vmatprep.subr.mxu0 0.0
    %230 = vmatpush1.xpose.msra.mxu0 0.0
    %231 = vmatprep.subr.mxu0 0.0
    %232 = vmatpush1.xpose.msra.mxu0 0.0
    %233 = vmatprep.subr.mxu0 0.0
    %234 = vmatpush1.xpose.msra.mxu0 0.0
    %235 = vmatprep.subr.mxu0 0.0
    %236 = vmatpush1.xpose.msra.mxu0 0.0
    %237 = vmatprep.subr.mxu0 0.0
    %238 = vmatpush1.xpose.msra.mxu0 0.0
    %239 = vmatprep.subr.mxu0 0.0
    %240 = vmatpush1.xpose.msra.mxu0 0.0
    %241 = vmatprep.subr.mxu0 0.0
    %242 = vmatpush1.xpose.msra.mxu0 0.0
    %243 = vmatprep.subr.mxu0 0.0
    %244 = vmatpush1.xpose.msra.mxu0 0.0
    %245 = vmatprep.subr.mxu0 0.0
    %246 = vmatpush1.xpose.msra.mxu0 0.0
    %247 = vmatprep.subr.mxu0 0.0
    %248 = vmatpush1.xpose.msra.mxu0 0.0
    %249 = vmatprep.subr.mxu0 0.0
    %250 = vmatpush1.xpose.msra.mxu0 0.0
    %251 = vmatprep.subr.mxu0 0.0
    %252 = vmatpush1.xpose.msra.mxu0 0.0
    %253 = vmatprep.subr.mxu0 0.0
    %254 = vmatpush1.xpose.msra.mxu0 0.0
    %255 = vmatprep.subr.mxu0 0.0
    %256 = vmatpush1.xpose.msra.mxu0 0.0
    %257 = vmatprep.subr.mxu0 0.0
    %258 = vmatpush1.xpose.msra.mxu0 0.0
    %259 = vmatprep.subr.mxu0 0.0
    %260 = vmatpush1.xpose.msra.mxu0 0.0
    %261 = vmatprep.subr.mxu0 0.0
    %262 = vmatpush1.xpose.msra.mxu0 0.0
    %263 = vmatprep.subr.mxu0 0.0
    %264 = vmatpush1.xpose.msra.mxu0 0.0
    %265 = vmatprep.subr.mxu0 0.0
    %266 = vmatpush1.xpose.msra.mxu0 0.0
    %267 = vmatprep.subr.mxu0 0.0
    %268 = vmatpush1.xpose.msra.mxu0 0.0
    %269 = vmatprep.subr.mxu0 0.0
    %270 = vmatpush1.xpose.msra.mxu0 0.0
    %271 = vmatprep.subr.mxu0 0.0
    %272 = vmatpush1.xpose.msra.mxu0 0.0
    %273 = vmatprep.subr.mxu0 0.0
    %274 = vmatpush1.xpose.msra.mxu0 0.0
    %275 = vmatprep.subr.mxu0 0.0
    %276 = vmatpush1.xpose.msra.mxu0 0.0
    %277 = vmatprep.subr.mxu0 0.0
    %278 = vmatpush1.xpose.msra.mxu0 0.0
    %279 = vmatprep.subr.mxu0 0.0
    %280 = vmatpush1.xpose.msra.mxu0 0.0
    %281 = vmatprep.subr.mxu0 0.0
    %282 = vmatpush1.xpose.msra.mxu0 0.0
    %283 = vmatprep.subr.mxu0 0.0
    %284 = vmatpush1.xpose.msra.mxu0 0.0
    %285 = vmatprep.mubr.f32.mxu0 0.0
    %286 = vmatmul.mubr.f32.gmra.mrb[0].mxu0 %v194
    %v287 = vpop.f32.mrb[0].mxu0
    %v288 = vadd.f32 %v43, %v287
    %v289 = vpop.f32.mrb[0].mxu0
    %290 = vmatprep.mubr.f32.mxu0 0.0
    %291 = vmatmul.mubr.f32.gmra.mrb[0].mxu0 %v197
    %v292 = vpop.f32.mrb[0].mxu0
    %v293 = vadd.f32 %v44, %v292
    %v294 = vpop.f32.mrb[0].mxu0
    %295 = vmatprep.mubr.f32.mxu0 0.0
    %296 = vmatmul.mubr.f32.gmra.mrb[0].mxu0 %v200
    %v297 = vpop.f32.mrb[0].mxu0
    %v298 = vadd.f32 %v45, %v297
    %v299 = vpop.f32.mrb[0].mxu0
    %300 = vmatprep.mubr.f32.mxu0 0.0
    %301 = vmatmul.mubr.f32.gmra.mrb[0].mxu0 %v203
    %v302 = vpop.f32.mrb[0].mxu0
    %v303 = vadd.f32 %v46, %v302
    %v304 = vpop.f32.mrb[0].mxu0
    %305 = vmatprep.mubr.f32.mxu0 0.0
    %306 = vmatmul.mubr.f32.gmra.mrb[0].mxu0 %v206
    %v307 = vpop.f32.mrb[0].mxu0
    %v308 = vadd.f32 %v47, %v307
    %v309 = vpop.f32.mrb[0].mxu0
    %310 = vmatprep.mubr.f32.mxu0 0.0
    %311 = vmatmul.mubr.f32.gmra.mrb[0].mxu0 %v209
    %v312 = vpop.f32.mrb[0].mxu0
    %v313 = vadd.f32 %v48, %v312
    %v314 = vpop.f32.mrb[0].mxu0
    %315 = vmatprep.mubr.f32.mxu0 0.0
    %316 = vmatmul.mubr.f32.gmra.mrb[0].mxu0 %v212
    %v317 = vpop.f32.mrb[0].mxu0
    %v318 = vadd.f32 %v49, %v317
    %v319 = vpop.f32.mrb[0].mxu0
    %320 = vmatprep.mubr.f32.mxu0 0.0
    %321 = vmatmul.mubr.f32.gmra.mrb[0].mxu0 %v215
    %v322 = vpop.f32.mrb[0].mxu0
    %v323 = vadd.f32 %v50, %v322
    %v324 = vpop.f32.mrb[0].mxu0
    %325 = vdwg.mxu0
    %vm326 = vcmask 130048
    %v327 = vsel %vm326, %v288, -inf
    %328 = vmax.xlane.f32.xlu0 %v327
    %v329 = vpop.xlane.xlu0 %328
    %v330 = vsel %vm326, %v293, -inf
    %331 = vmax.xlane.f32.xlu0 %v330
    %v332 = vpop.xlane.xlu0 %331
    %v333 = vsel %vm326, %v298, -inf
    %334 = vmax.xlane.f32.xlu0 %v333
    %v335 = vpop.xlane.xlu0 %334
    %v336 = vsel %vm326, %v303, -inf
    %337 = vmax.xlane.f32.xlu0 %v336
    %v338 = vpop.xlane.xlu0 %337
    %v339 = vsel %vm326, %v308, -inf
    %340 = vmax.xlane.f32.xlu0 %v339
    %v341 = vpop.xlane.xlu0 %340
    %v342 = vsel %vm326, %v313, -inf
    %343 = vmax.xlane.f32.xlu0 %v342
    %v344 = vpop.xlane.xlu0 %343
    %v345 = vsel %vm326, %v318, -inf
    %346 = vmax.xlane.f32.xlu0 %v345
    %v347 = vpop.xlane.xlu0 %346
    %v348 = vsel %vm326, %v323, -inf
    %349 = vmax.xlane.f32.xlu0 %v348
    %v350 = vpop.xlane.xlu0 %349
    %v351 = vsub.f32 %v288, %v329
    %v352 = vsub.f32 %v293, %v332
    %v353 = vsub.f32 %v298, %v335
    %v354 = vsub.f32 %v303, %v338
    %v355 = vsub.f32 %v308, %v341
    %v356 = vsub.f32 %v313, %v344
    %v357 = vsub.f32 %v318, %v347
    %v358 = vsub.f32 %v323, %v350
    %v359 = vmul.f32 %v351, 1.442695
    %v360 = vpow.pop %v359
    %v361 = vmul.f32 %v352, 1.442695
    %v362 = vpow.pop %v361
    %v363 = vmul.f32 %v353, 1.442695
    %v364 = vpow.pop %v363
    %v365 = vmul.f32 %v354, 1.442695
    %v366 = vpow.pop %v365
    %v367 = vmul.f32 %v355, 1.442695
    %v368 = vpow.pop %v367
    %v369 = vmul.f32 %v356, 1.442695
    %v370 = vpow.pop %v369
    %v371 = vmul.f32 %v357, 1.442695
    %v372 = vpow.pop %v371
    %v373 = vmul.f32 %v358, 1.442695
    %v374 = vpow.pop %v373
    %v375 = vsel %vm326, %v360, 0.0
    %376 = vadd.xlane.f32.xlu0 %v375
    %v377 = vpop.xlane.xlu0 %376
    %v378 = vsel %vm326, %v362, 0.0
    %379 = vadd.xlane.f32.xlu0 %v378
    %v380 = vpop.xlane.xlu0 %379
    %v381 = vsel %vm326, %v364, 0.0
    %382 = vadd.xlane.f32.xlu0 %v381
    %v383 = vpop.xlane.xlu0 %382
    %v384 = vsel %vm326, %v366, 0.0
    %385 = vadd.xlane.f32.xlu0 %v384
    %v386 = vpop.xlane.xlu0 %385
    %v387 = vsel %vm326, %v368, 0.0
    %388 = vadd.xlane.f32.xlu0 %v387
    %v389 = vpop.xlane.xlu0 %388
    %v390 = vsel %vm326, %v370, 0.0
    %391 = vadd.xlane.f32.xlu0 %v390
    %v392 = vpop.xlane.xlu0 %391
    %v393 = vsel %vm326, %v372, 0.0
    %394 = vadd.xlane.f32.xlu0 %v393
    %v395 = vpop.xlane.xlu0 %394
    %v396 = vsel %vm326, %v374, 0.0
    %397 = vadd.xlane.f32.xlu0 %v396
    %v398 = vpop.xlane.xlu0 %397
    %v399 = vrcp.pop %v377
    %v400 = vrcp.pop %v380
    %v401 = vrcp.pop %v383
    %v402 = vrcp.pop %v386
    %v403 = vrcp.pop %v389
    %v404 = vrcp.pop %v392
    %v405 = vrcp.pop %v395
    %v406 = vrcp.pop %v398
    %v407 = vmul.f32 %v360, %v399
    %v408 = vmul.f32 %v362, %v400
    %v409 = vmul.f32 %v364, %v401
    %v410 = vmul.f32 %v366, %v402
    %v411 = vmul.f32 %v368, %v403
    %v412 = vmul.f32 %v370, %v404
    %v413 = vmul.f32 %v372, %v405
    %v414 = vmul.f32 %v374, %v406
    %415 = vrot.lane.b32.xlu0 %v171, 64
    %v416 = vpop.permute.xlu0 %415
    %417 = vrot.lane.b32.xlu0 %v176, 64
    %v418 = vpop.permute.xlu0 %417
    %v422 = vsel %vm326, %v407, 0
    %v425 = vsel %vm326, %v408, 0
    %v428 = vsel %vm326, %v409, 0
    %v431 = vsel %vm326, %v410, 0
    %v434 = vsel %vm326, %v411, 0
    %v437 = vsel %vm326, %v412, 0
    %v440 = vsel %vm326, %v413, 0
    %v443 = vsel %vm326, %v414, 0
    %445 = vmatprep.subr.mxu0 0.0
    %446 = vmatpush1.msra.mxu0 %v416
    %447 = vmatprep.subr.mxu0 0.0
    %448 = vmatpush1.msra.mxu0 %v418
    %449 = vmatprep.subr.mxu0 0.0
    %450 = vmatpush1.msra.mxu0 0.0
    %451 = vmatprep.subr.mxu0 0.0
    %452 = vmatpush1.msra.mxu0 0.0
    %453 = vmatprep.subr.mxu0 0.0
    %454 = vmatpush1.msra.mxu0 0.0
    %455 = vmatprep.subr.mxu0 0.0
    %456 = vmatpush1.msra.mxu0 0.0
    %457 = vmatprep.subr.mxu0 0.0
    %458 = vmatpush1.msra.mxu0 0.0
    %459 = vmatprep.subr.mxu0 0.0
    %460 = vmatpush1.msra.mxu0 0.0
    %461 = vmatprep.subr.mxu0 0.0
    %462 = vmatpush1.msra.mxu0 0.0
    %463 = vmatprep.subr.mxu0 0.0
    %464 = vmatpush1.msra.mxu0 0.0
    %465 = vmatprep.subr.mxu0 0.0
    %466 = vmatpush1.msra.mxu0 0.0
    %467 = vmatprep.subr.mxu0 0.0
    %468 = vmatpush1.msra.mxu0 0.0
    %469 = vmatprep.subr.mxu0 0.0
    %470 = vmatpush1.msra.mxu0 0.0
    %471 = vmatprep.subr.mxu0 0.0
    %472 = vmatpush1.msra.mxu0 0.0
    %473 = vmatprep.subr.mxu0 0.0
    %474 = vmatpush1.msra.mxu0 0.0
    %475 = vmatprep.subr.mxu0 0.0
    %476 = vmatpush1.msra.mxu0 0.0
    %477 = vmatprep.subr.mxu0 0.0
    %478 = vmatpush1.msra.mxu0 0.0
    %479 = vmatprep.subr.mxu0 0.0
    %480 = vmatpush1.msra.mxu0 0.0
    %481 = vmatprep.subr.mxu0 0.0
    %482 = vmatpush1.msra.mxu0 0.0
    %483 = vmatprep.subr.mxu0 0.0
    %484 = vmatpush1.msra.mxu0 0.0
    %485 = vmatprep.subr.mxu0 0.0
    %486 = vmatpush1.msra.mxu0 0.0
    %487 = vmatprep.subr.mxu0 0.0
    %488 = vmatpush1.msra.mxu0 0.0
    %489 = vmatprep.subr.mxu0 0.0
    %490 = vmatpush1.msra.mxu0 0.0
    %491 = vmatprep.subr.mxu0 0.0
    %492 = vmatpush1.msra.mxu0 0.0
    %493 = vmatprep.subr.mxu0 0.0
    %494 = vmatpush1.msra.mxu0 0.0
    %495 = vmatprep.subr.mxu0 0.0
    %496 = vmatpush1.msra.mxu0 0.0
    %497 = vmatprep.subr.mxu0 0.0
    %498 = vmatpush1.msra.mxu0 0.0
    %499 = vmatprep.subr.mxu0 0.0
    %500 = vmatpush1.msra.mxu0 0.0
    %501 = vmatprep.subr.mxu0 0.0
    %502 = vmatpush1.msra.mxu0 0.0
    %503 = vmatprep.subr.mxu0 0.0
    %504 = vmatpush1.msra.mxu0 0.0
    %505 = vmatprep.subr.mxu0 0.0
    %506 = vmatpush1.msra.mxu0 0.0
    %507 = vmatprep.subr.mxu0 0.0
    %508 = vmatpush1.msra.mxu0 0.0
    %509 = vmatprep.mubr.f32.mxu0 0.0
    %510 = vmatmul.mubr.f32.gmra.mrb[0].mxu0 %v422
    %v511 = vpop.f32.mrb[0].mxu0
    %v512 = vadd.f32 0.0, %v511
    %v513 = vpop.f32.mrb[0].mxu0
    %514 = vmatprep.mubr.f32.mxu0 0.0
    %515 = vmatmul.mubr.f32.gmra.mrb[0].mxu0 %v425
    %v516 = vpop.f32.mrb[0].mxu0
    %v517 = vadd.f32 0.0, %v516
    %v518 = vpop.f32.mrb[0].mxu0
    %519 = vmatprep.mubr.f32.mxu0 0.0
    %520 = vmatmul.mubr.f32.gmra.mrb[0].mxu0 %v428
    %v521 = vpop.f32.mrb[0].mxu0
    %v522 = vadd.f32 0.0, %v521
    %v523 = vpop.f32.mrb[0].mxu0
    %524 = vmatprep.mubr.f32.mxu0 0.0
    %525 = vmatmul.mubr.f32.gmra.mrb[0].mxu0 %v431
    %v526 = vpop.f32.mrb[0].mxu0
    %v527 = vadd.f32 0.0, %v526
    %v528 = vpop.f32.mrb[0].mxu0
    %529 = vmatprep.mubr.f32.mxu0 0.0
    %530 = vmatmul.mubr.f32.gmra.mrb[0].mxu0 %v434
    %v531 = vpop.f32.mrb[0].mxu0
    %v532 = vadd.f32 0.0, %v531
    %v533 = vpop.f32.mrb[0].mxu0
    %534 = vmatprep.mubr.f32.mxu0 0.0
    %535 = vmatmul.mubr.f32.gmra.mrb[0].mxu0 %v437
    %v536 = vpop.f32.mrb[0].mxu0
    %v537 = vadd.f32 0.0, %v536
    %v538 = vpop.f32.mrb[0].mxu0
    %539 = vmatprep.mubr.f32.mxu0 0.0
    %540 = vmatmul.mubr.f32.gmra.mrb[0].mxu0 %v440
    %v541 = vpop.f32.mrb[0].mxu0
    %v542 = vadd.f32 0.0, %v541
    %v543 = vpop.f32.mrb[0].mxu0
    %544 = vmatprep.mubr.f32.mxu0 0.0
    %545 = vmatmul.mubr.f32.gmra.mrb[0].mxu0 %v443
    %v546 = vpop.f32.mrb[0].mxu0
    %v547 = vadd.f32 0.0, %v546
    %v548 = vpop.f32.mrb[0].mxu0
    %549 = vdwg.mxu0
    %v550 = vmul.f32 %v512, %v35
    %v551 = vmul.f32 %v517, %v36
    %v552 = vmul.f32 %v522, %v37
    %v553 = vmul.f32 %v527, %v38
    %v554 = vmul.f32 %v532, %v39
    %v555 = vmul.f32 %v537, %v40
    %v556 = vmul.f32 %v542, %v41
    %v557 = vmul.f32 %v547, %v42
    %v558 = vadd.f32 %v550, %v552
    %v559 = vadd.f32 %v551, %v553
    %v560 = vadd.f32 %v558, %v554
    %v561 = vadd.f32 %v559, %v555
    %v562 = vadd.f32 %v560, %v556
    %v563 = vadd.f32 %v561, %v557
    %v564 = vld [vmem:[%s5 + $0x8] sm:$0xff]
    %v565 = vld [vmem:[%s5 + $0x38] sm:$0xff]
    %v566 = vld [vmem:[%s5 + $0x68] sm:$0xff]
    %v567 = vld [vmem:[%s5 + $0x98] sm:$0xff]
    %v568 = vld [vmem:[%s7 + $0x1] sm:$0x1]
    %v570 = vlaneseq
    %v571 = vshrl.u32 %v570, 7
    %v572 = vsub.s32 0, %v571
    %v573 = vrot.slane %v568, %v572
    %v576 = vsel %vm59, %v562, 0
    %v579 = vsel %vm59, %v563, 0
    %581 = vmatprep.subr.mxu0 0.0
    %582 = vmatpush1.msra.mxu0 %v564
    %583 = vmatprep.subr.mxu0 0.0
    %584 = vmatpush1.msra.mxu0 %v565
    %585 = vmatprep.subr.mxu0 0.0
    %586 = vmatpush1.msra.mxu0 %v566
    %587 = vmatprep.subr.mxu0 0.0
    %588 = vmatpush1.msra.mxu0 %v567
    %589 = vmatprep.subr.mxu0 0.0
    %590 = vmatpush1.msra.mxu0 0.0
    %591 = vmatprep.subr.mxu0 0.0
    %592 = vmatpush1.msra.mxu0 0.0
    %593 = vmatprep.subr.mxu0 0.0
    %594 = vmatpush1.msra.mxu0 0.0
    %595 = vmatprep.subr.mxu0 0.0
    %596 = vmatpush1.msra.mxu0 0.0
    %597 = vmatprep.subr.mxu0 0.0
    %598 = vmatpush1.msra.mxu0 0.0
    %599 = vmatprep.subr.mxu0 0.0
    %600 = vmatpush1.msra.mxu0 0.0
    %601 = vmatprep.subr.mxu0 0.0
    %602 = vmatpush1.msra.mxu0 0.0
    %603 = vmatprep.subr.mxu0 0.0
    %604 = vmatpush1.msra.mxu0 0.0
    %605 = vmatprep.subr.mxu0 0.0
    %606 = vmatpush1.msra.mxu0 0.0
    %607 = vmatprep.subr.mxu0 0.0
    %608 = vmatpush1.msra.mxu0 0.0
    %609 = vmatprep.subr.mxu0 0.0
    %610 = vmatpush1.msra.mxu0 0.0
    %611 = vmatprep.subr.mxu0 0.0
    %612 = vmatpush1.msra.mxu0 0.0
    %613 = vmatprep.subr.mxu0 0.0
    %614 = vmatpush1.msra.mxu0 0.0
    %615 = vmatprep.subr.mxu0 0.0
    %616 = vmatpush1.msra.mxu0 0.0
    %617 = vmatprep.subr.mxu0 0.0
    %618 = vmatpush1.msra.mxu0 0.0
    %619 = vmatprep.subr.mxu0 0.0
    %620 = vmatpush1.msra.mxu0 0.0
    %621 = vmatprep.subr.mxu0 0.0
    %622 = vmatpush1.msra.mxu0 0.0
    %623 = vmatprep.subr.mxu0 0.0
    %624 = vmatpush1.msra.mxu0 0.0
    %625 = vmatprep.subr.mxu0 0.0
    %626 = vmatpush1.msra.mxu0 0.0
    %627 = vmatprep.subr.mxu0 0.0
    %628 = vmatpush1.msra.mxu0 0.0
    %629 = vmatprep.subr.mxu0 0.0
    %630 = vmatpush1.msra.mxu0 0.0
    %631 = vmatprep.subr.mxu0 0.0
    %632 = vmatpush1.msra.mxu0 0.0
    %633 = vmatprep.subr.mxu0 0.0
    %634 = vmatpush1.msra.mxu0 0.0
    %635 = vmatprep.subr.mxu0 0.0
    %636 = vmatpush1.msra.mxu0 0.0
    %637 = vmatprep.subr.mxu0 0.0
    %638 = vmatpush1.msra.mxu0 0.0
    %639 = vmatprep.subr.mxu0 0.0
    %640 = vmatpush1.msra.mxu0 0.0
    %641 = vmatprep.subr.mxu0 0.0
    %642 = vmatpush1.msra.mxu0 0.0
    %643 = vmatprep.subr.mxu0 0.0
    %644 = vmatpush1.msra.mxu0 0.0
    %645 = vmatprep.mubr.f32.mxu0 0.0
    %646 = vmatmul.mubr.f32.gmra.mrb[0].mxu0 %v576
    %v647 = vpop.f32.mrb[0].mxu0
    %v648 = vadd.f32 %v573, %v647
    %v649 = vpop.f32.mrb[0].mxu0
    %650 = vmatprep.mubr.f32.mxu0 0.0
    %651 = vmatmul.mubr.f32.gmra.mrb[0].mxu0 %v579
    %v652 = vpop.f32.mrb[0].mxu0
    %v653 = vadd.f32 %v573, %v652
    %v654 = vpop.f32.mrb[0].mxu0
    %655 = vdwg.mxu0
    %v656 = vadd.f32 %v30, %v648
    %v657 = vadd.f32 %v31, %v653
    %v658 = vsel %vm59, %v656, 0.0
    %659 = vadd.xlane.f32.xlu0 %v658
    %v660 = vpop.xlane.xlu0 %659
    %v661 = vsel %vm59, %v657, 0.0
    %662 = vadd.xlane.f32.xlu0 %v661
    %v663 = vpop.xlane.xlu0 %662
    %v664 = vmul.f32 %v660, %v66
    %v665 = vmul.f32 %v663, %v66
    %v666 = vsub.f32 %v656, %v664
    %v667 = vsub.f32 %v657, %v665
    %v668 = vmul.f32 %v666, %v666
    %v669 = vmul.f32 %v667, %v667
    %v670 = vsel %vm59, %v668, 0.0
    %671 = vadd.xlane.f32.xlu0 %v670
    %v672 = vpop.xlane.xlu0 %671
    %v673 = vsel %vm59, %v669, 0.0
    %674 = vadd.xlane.f32.xlu0 %v673
    %v675 = vpop.xlane.xlu0 %674
    %v676 = vmul.f32 %v672, %v66
    %v677 = vmul.f32 %v675, %v66
    %v678 = vadd.f32 %v676, 1e-05
    %v679 = vadd.f32 %v677, 1e-05
    %v680 = vrsqrt.pop %v678
    %v681 = vrsqrt.pop %v679
    %v682 = vmul.f32 %v666, %v680
    %v683 = vmul.f32 %v667, %v681
    %v684 = vld [vmem:[%s5 + $0x10] sm:$0xff]
    %v685 = vld [vmem:[%s5 + $0x40] sm:$0xff]
    %v686 = vld [vmem:[%s5 + $0x70] sm:$0xff]
    %v687 = vld [vmem:[%s5 + $0xa0] sm:$0xff]
    %v688 = vld [vmem:[%s7 + $0x2] sm:$0x1]
    %v690 = vlaneseq
    %v691 = vshrl.u32 %v690, 7
    %v692 = vsub.s32 0, %v691
    %v693 = vrot.slane %v688, %v692
    %v696 = vsel %vm59, %v682, 0
    %v699 = vsel %vm59, %v683, 0
    %701 = vmatprep.subr.mxu0 0.0
    %702 = vmatpush1.msra.mxu0 %v684
    %703 = vmatprep.subr.mxu0 0.0
    %704 = vmatpush1.msra.mxu0 %v685
    %705 = vmatprep.subr.mxu0 0.0
    %706 = vmatpush1.msra.mxu0 %v686
    %707 = vmatprep.subr.mxu0 0.0
    %708 = vmatpush1.msra.mxu0 %v687
    %709 = vmatprep.subr.mxu0 0.0
    %710 = vmatpush1.msra.mxu0 0.0
    %711 = vmatprep.subr.mxu0 0.0
    %712 = vmatpush1.msra.mxu0 0.0
    %713 = vmatprep.subr.mxu0 0.0
    %714 = vmatpush1.msra.mxu0 0.0
    %715 = vmatprep.subr.mxu0 0.0
    %716 = vmatpush1.msra.mxu0 0.0
    %717 = vmatprep.subr.mxu0 0.0
    %718 = vmatpush1.msra.mxu0 0.0
    %719 = vmatprep.subr.mxu0 0.0
    %720 = vmatpush1.msra.mxu0 0.0
    %721 = vmatprep.subr.mxu0 0.0
    %722 = vmatpush1.msra.mxu0 0.0
    %723 = vmatprep.subr.mxu0 0.0
    %724 = vmatpush1.msra.mxu0 0.0
    %725 = vmatprep.subr.mxu0 0.0
    %726 = vmatpush1.msra.mxu0 0.0
    %727 = vmatprep.subr.mxu0 0.0
    %728 = vmatpush1.msra.mxu0 0.0
    %729 = vmatprep.subr.mxu0 0.0
    %730 = vmatpush1.msra.mxu0 0.0
    %731 = vmatprep.subr.mxu0 0.0
    %732 = vmatpush1.msra.mxu0 0.0
    %733 = vmatprep.subr.mxu0 0.0
    %734 = vmatpush1.msra.mxu0 0.0
    %735 = vmatprep.subr.mxu0 0.0
    %736 = vmatpush1.msra.mxu0 0.0
    %737 = vmatprep.subr.mxu0 0.0
    %738 = vmatpush1.msra.mxu0 0.0
    %739 = vmatprep.subr.mxu0 0.0
    %740 = vmatpush1.msra.mxu0 0.0
    %741 = vmatprep.subr.mxu0 0.0
    %742 = vmatpush1.msra.mxu0 0.0
    %743 = vmatprep.subr.mxu0 0.0
    %744 = vmatpush1.msra.mxu0 0.0
    %745 = vmatprep.subr.mxu0 0.0
    %746 = vmatpush1.msra.mxu0 0.0
    %747 = vmatprep.subr.mxu0 0.0
    %748 = vmatpush1.msra.mxu0 0.0
    %749 = vmatprep.subr.mxu0 0.0
    %750 = vmatpush1.msra.mxu0 0.0
    %751 = vmatprep.subr.mxu0 0.0
    %752 = vmatpush1.msra.mxu0 0.0
    %753 = vmatprep.subr.mxu0 0.0
    %754 = vmatpush1.msra.mxu0 0.0
    %755 = vmatprep.subr.mxu0 0.0
    %756 = vmatpush1.msra.mxu0 0.0
    %757 = vmatprep.subr.mxu0 0.0
    %758 = vmatpush1.msra.mxu0 0.0
    %759 = vmatprep.subr.mxu0 0.0
    %760 = vmatpush1.msra.mxu0 0.0
    %761 = vmatprep.subr.mxu0 0.0
    %762 = vmatpush1.msra.mxu0 0.0
    %763 = vmatprep.subr.mxu0 0.0
    %764 = vmatpush1.msra.mxu0 0.0
    %765 = vmatprep.mubr.f32.mxu0 0.0
    %766 = vmatmul.mubr.f32.gmra.mrb[0].mxu0 %v696
    %v767 = vpop.f32.mrb[0].mxu0
    %v768 = vadd.f32 %v693, %v767
    %v769 = vpop.f32.mrb[0].mxu0
    %770 = vmatprep.mubr.f32.mxu0 0.0
    %771 = vmatmul.mubr.f32.gmra.mrb[0].mxu0 %v699
    %v772 = vpop.f32.mrb[0].mxu0
    %v773 = vadd.f32 %v693, %v772
    %v774 = vpop.f32.mrb[0].mxu0
    %775 = vdwg.mxu0
    %v776 = vld [vmem:[%s5 + $0x18] sm:$0xff]
    %v777 = vld [vmem:[%s5 + $0x48] sm:$0xff]
    %v778 = vld [vmem:[%s5 + $0x78] sm:$0xff]
    %v779 = vld [vmem:[%s5 + $0xa8] sm:$0xff]
    %v780 = vld [vmem:[%s7 + $0x3] sm:$0x1]
    %v782 = vlaneseq
    %v783 = vshrl.u32 %v782, 7
    %v784 = vsub.s32 0, %v783
    %v785 = vrot.slane %v780, %v784
    %v788 = vsel %vm59, %v32, 0
    %v791 = vsel %vm59, %v33, 0
    %v794 = vsel %vm59, %v34, 0
    %796 = vmatprep.subr.mxu0 0.0
    %797 = vmatpush1.msra.mxu0 %v776
    %798 = vmatprep.subr.mxu0 0.0
    %799 = vmatpush1.msra.mxu0 %v777
    %800 = vmatprep.subr.mxu0 0.0
    %801 = vmatpush1.msra.mxu0 %v778
    %802 = vmatprep.subr.mxu0 0.0
    %803 = vmatpush1.msra.mxu0 %v779
    %804 = vmatprep.subr.mxu0 0.0
    %805 = vmatpush1.msra.mxu0 0.0
    %806 = vmatprep.subr.mxu0 0.0
    %807 = vmatpush1.msra.mxu0 0.0
    %808 = vmatprep.subr.mxu0 0.0
    %809 = vmatpush1.msra.mxu0 0.0
    %810 = vmatprep.subr.mxu0 0.0
    %811 = vmatpush1.msra.mxu0 0.0
    %812 = vmatprep.subr.mxu0 0.0
    %813 = vmatpush1.msra.mxu0 0.0
    %814 = vmatprep.subr.mxu0 0.0
    %815 = vmatpush1.msra.mxu0 0.0
    %816 = vmatprep.subr.mxu0 0.0
    %817 = vmatpush1.msra.mxu0 0.0
    %818 = vmatprep.subr.mxu0 0.0
    %819 = vmatpush1.msra.mxu0 0.0
    %820 = vmatprep.subr.mxu0 0.0
    %821 = vmatpush1.msra.mxu0 0.0
    %822 = vmatprep.subr.mxu0 0.0
    %823 = vmatpush1.msra.mxu0 0.0
    %824 = vmatprep.subr.mxu0 0.0
    %825 = vmatpush1.msra.mxu0 0.0
    %826 = vmatprep.subr.mxu0 0.0
    %827 = vmatpush1.msra.mxu0 0.0
    %828 = vmatprep.subr.mxu0 0.0
    %829 = vmatpush1.msra.mxu0 0.0
    %830 = vmatprep.subr.mxu0 0.0
    %831 = vmatpush1.msra.mxu0 0.0
    %832 = vmatprep.subr.mxu0 0.0
    %833 = vmatpush1.msra.mxu0 0.0
    %834 = vmatprep.subr.mxu0 0.0
    %835 = vmatpush1.msra.mxu0 0.0
    %836 = vmatprep.subr.mxu0 0.0
    %837 = vmatpush1.msra.mxu0 0.0
    %838 = vmatprep.subr.mxu0 0.0
    %839 = vmatpush1.msra.mxu0 0.0
    %840 = vmatprep.subr.mxu0 0.0
    %841 = vmatpush1.msra.mxu0 0.0
    %842 = vmatprep.subr.mxu0 0.0
    %843 = vmatpush1.msra.mxu0 0.0
    %844 = vmatprep.subr.mxu0 0.0
    %845 = vmatpush1.msra.mxu0 0.0
    %846 = vmatprep.subr.mxu0 0.0
    %847 = vmatpush1.msra.mxu0 0.0
    %848 = vmatprep.subr.mxu0 0.0
    %849 = vmatpush1.msra.mxu0 0.0
    %850 = vmatprep.subr.mxu0 0.0
    %851 = vmatpush1.msra.mxu0 0.0
    %852 = vmatprep.subr.mxu0 0.0
    %853 = vmatpush1.msra.mxu0 0.0
    %854 = vmatprep.subr.mxu0 0.0
    %855 = vmatpush1.msra.mxu0 0.0
    %856 = vmatprep.subr.mxu0 0.0
    %857 = vmatpush1.msra.mxu0 0.0
    %858 = vmatprep.subr.mxu0 0.0
    %859 = vmatpush1.msra.mxu0 0.0
    %860 = vmatprep.mubr.f32.mxu0 0.0
    %861 = vmatmul.mubr.f32.gmra.mrb[0].mxu0 %v788
    %v862 = vpop.f32.mrb[0].mxu0
    %v863 = vadd.f32 %v785, %v862
    %v864 = vpop.f32.mrb[0].mxu0
    %865 = vmatprep.mubr.f32.mxu0 0.0
    %866 = vmatmul.mubr.f32.gmra.mrb[0].mxu0 %v791
    %v867 = vpop.f32.mrb[0].mxu0
    %v868 = vadd.f32 %v785, %v867
    %v869 = vpop.f32.mrb[0].mxu0
    %870 = vmatprep.mubr.f32.mxu0 0.0
    %871 = vmatmul.mubr.f32.gmra.mrb[0].mxu0 %v794
    %v872 = vpop.f32.mrb[0].mxu0
    %v873 = vadd.f32 %v785, %v872
    %v874 = vpop.f32.mrb[0].mxu0
    %875 = vdwg.mxu0
    %v876 = vmul.f32 %v768, %v35
    %v877 = vmul.f32 %v773, %v36
    %v878 = vmul.f32 %v768, %v37
    %v879 = vmul.f32 %v773, %v38
    %v880 = vmul.f32 %v768, %v39
    %v881 = vmul.f32 %v773, %v40
    %v882 = vmul.f32 %v768, %v41
    %v883 = vmul.f32 %v773, %v42
    %v885 = vsel %vm59, %v876, 0
    %v888 = vsel %vm59, %v877, 0
    %v891 = vsel %vm59, %v878, 0
    %v894 = vsel %vm59, %v879, 0
    %v897 = vsel %vm59, %v880, 0
    %v900 = vsel %vm59, %v881, 0
    %v903 = vsel %vm59, %v882, 0
    %v906 = vsel %vm59, %v883, 0
    %v909 = vsel %vm59, %v863, 0
    %v912 = vsel %vm59, %v868, 0
    %v915 = vsel %vm59, %v873, 0
    %917 = vmatprep.subr.mxu0 0.0
    %918 = vmatpush1.xpose.msra.mxu0 %v909
    %919 = vmatprep.subr.mxu0 0.0
    %920 = vmatpush1.xpose.msra.mxu0 %v912
    %921 = vmatprep.subr.mxu0 0.0
    %922 = vmatpush1.xpose.msra.mxu0 %v915
    %923 = vmatprep.subr.mxu0 0.0
    %924 = vmatpush1.xpose.msra.mxu0 0.0
    %925 = vmatprep.subr.mxu0 0.0
    %926 = vmatpush1.xpose.msra.mxu0 0.0
    %927 = vmatprep.subr.mxu0 0.0
    %928 = vmatpush1.xpose.msra.mxu0 0.0
    %929 = vmatprep.subr.mxu0 0.0
    %930 = vmatpush1.xpose.msra.mxu0 0.0
    %931 = vmatprep.subr.mxu0 0.0
    %932 = vmatpush1.xpose.msra.mxu0 0.0
    %933 = vmatprep.subr.mxu0 0.0
    %934 = vmatpush1.xpose.msra.mxu0 0.0
    %935 = vmatprep.subr.mxu0 0.0
    %936 = vmatpush1.xpose.msra.mxu0 0.0
    %937 = vmatprep.subr.mxu0 0.0
    %938 = vmatpush1.xpose.msra.mxu0 0.0
    %939 = vmatprep.subr.mxu0 0.0
    %940 = vmatpush1.xpose.msra.mxu0 0.0
    %941 = vmatprep.subr.mxu0 0.0
    %942 = vmatpush1.xpose.msra.mxu0 0.0
    %943 = vmatprep.subr.mxu0 0.0
    %944 = vmatpush1.xpose.msra.mxu0 0.0
    %945 = vmatprep.subr.mxu0 0.0
    %946 = vmatpush1.xpose.msra.mxu0 0.0
    %947 = vmatprep.subr.mxu0 0.0
    %948 = vmatpush1.xpose.msra.mxu0 0.0
    %949 = vmatprep.subr.mxu0 0.0
    %950 = vmatpush1.xpose.msra.mxu0 0.0
    %951 = vmatprep.subr.mxu0 0.0
    %952 = vmatpush1.xpose.msra.mxu0 0.0
    %953 = vmatprep.subr.mxu0 0.0
    %954 = vmatpush1.xpose.msra.mxu0 0.0
    %955 = vmatprep.subr.mxu0 0.0
    %956 = vmatpush1.xpose.msra.mxu0 0.0
    %957 = vmatprep.subr.mxu0 0.0
    %958 = vmatpush1.xpose.msra.mxu0 0.0
    %959 = vmatprep.subr.mxu0 0.0
    %960 = vmatpush1.xpose.msra.mxu0 0.0
    %961 = vmatprep.subr.mxu0 0.0
    %962 = vmatpush1.xpose.msra.mxu0 0.0
    %963 = vmatprep.subr.mxu0 0.0
    %964 = vmatpush1.xpose.msra.mxu0 0.0
    %965 = vmatprep.subr.mxu0 0.0
    %966 = vmatpush1.xpose.msra.mxu0 0.0
    %967 = vmatprep.subr.mxu0 0.0
    %968 = vmatpush1.xpose.msra.mxu0 0.0
    %969 = vmatprep.subr.mxu0 0.0
    %970 = vmatpush1.xpose.msra.mxu0 0.0
    %971 = vmatprep.subr.mxu0 0.0
    %972 = vmatpush1.xpose.msra.mxu0 0.0
    %973 = vmatprep.subr.mxu0 0.0
    %974 = vmatpush1.xpose.msra.mxu0 0.0
    %975 = vmatprep.subr.mxu0 0.0
    %976 = vmatpush1.xpose.msra.mxu0 0.0
    %977 = vmatprep.subr.mxu0 0.0
    %978 = vmatpush1.xpose.msra.mxu0 0.0
    %979 = vmatprep.subr.mxu0 0.0
    %980 = vmatpush1.xpose.msra.mxu0 0.0
    %981 = vmatprep.mubr.f32.mxu0 0.0
    %982 = vmatmul.mubr.f32.gmra.mrb[0].mxu0 %v885
    %v983 = vpop.f32.mrb[0].mxu0
    %v984 = vadd.f32 %v51, %v983
    %v985 = vpop.f32.mrb[0].mxu0
    %986 = vmatprep.mubr.f32.mxu0 0.0
    %987 = vmatmul.mubr.f32.gmra.mrb[0].mxu0 %v888
    %v988 = vpop.f32.mrb[0].mxu0
    %v989 = vadd.f32 %v52, %v988
    %v990 = vpop.f32.mrb[0].mxu0
    %991 = vmatprep.mubr.f32.mxu0 0.0
    %992 = vmatmul.mubr.f32.gmra.mrb[0].mxu0 %v891
    %v993 = vpop.f32.mrb[0].mxu0
    %v994 = vadd.f32 %v53, %v993
    %v995 = vpop.f32.mrb[0].mxu0
    %996 = vmatprep.mubr.f32.mxu0 0.0
    %997 = vmatmul.mubr.f32.gmra.mrb[0].mxu0 %v894
    %v998 = vpop.f32.mrb[0].mxu0
    %v999 = vadd.f32 %v54, %v998
    %v1000 = vpop.f32.mrb[0].mxu0
    %1001 = vmatprep.mubr.f32.mxu0 0.0
    %1002 = vmatmul.mubr.f32.gmra.mrb[0].mxu0 %v897
    %v1003 = vpop.f32.mrb[0].mxu0
    %v1004 = vadd.f32 %v55, %v1003
    %v1005 = vpop.f32.mrb[0].mxu0
    %1006 = vmatprep.mubr.f32.mxu0 0.0
    %1007 = vmatmul.mubr.f32.gmra.mrb[0].mxu0 %v900
    %v1008 = vpop.f32.mrb[0].mxu0
    %v1009 = vadd.f32 %v56, %v1008
    %v1010 = vpop.f32.mrb[0].mxu0
    %1011 = vmatprep.mubr.f32.mxu0 0.0
    %1012 = vmatmul.mubr.f32.gmra.mrb[0].mxu0 %v903
    %v1013 = vpop.f32.mrb[0].mxu0
    %v1014 = vadd.f32 %v57, %v1013
    %v1015 = vpop.f32.mrb[0].mxu0
    %1016 = vmatprep.mubr.f32.mxu0 0.0
    %1017 = vmatmul.mubr.f32.gmra.mrb[0].mxu0 %v906
    %v1018 = vpop.f32.mrb[0].mxu0
    %v1019 = vadd.f32 %v58, %v1018
    %v1020 = vpop.f32.mrb[0].mxu0
    %1021 = vdwg.mxu0
    %vm1022 = vcmask 195584
    %v1023 = vsel %vm1022, %v984, -inf
    %1024 = vmax.xlane.f32.xlu0 %v1023
    %v1025 = vpop.xlane.xlu0 %1024
    %v1026 = vsel %vm1022, %v989, -inf
    %1027 = vmax.xlane.f32.xlu0 %v1026
    %v1028 = vpop.xlane.xlu0 %1027
    %v1029 = vsel %vm1022, %v994, -inf
    %1030 = vmax.xlane.f32.xlu0 %v1029
    %v1031 = vpop.xlane.xlu0 %1030
    %v1032 = vsel %vm1022, %v999, -inf
    %1033 = vmax.xlane.f32.xlu0 %v1032
    %v1034 = vpop.xlane.xlu0 %1033
    %v1035 = vsel %vm1022, %v1004, -inf
    %1036 = vmax.xlane.f32.xlu0 %v1035
    %v1037 = vpop.xlane.xlu0 %1036
    %v1038 = vsel %vm1022, %v1009, -inf
    %1039 = vmax.xlane.f32.xlu0 %v1038
    %v1040 = vpop.xlane.xlu0 %1039
    %v1041 = vsel %vm1022, %v1014, -inf
    %1042 = vmax.xlane.f32.xlu0 %v1041
    %v1043 = vpop.xlane.xlu0 %1042
    %v1044 = vsel %vm1022, %v1019, -inf
    %1045 = vmax.xlane.f32.xlu0 %v1044
    %v1046 = vpop.xlane.xlu0 %1045
    %v1047 = vsub.f32 %v984, %v1025
    %v1048 = vsub.f32 %v989, %v1028
    %v1049 = vsub.f32 %v994, %v1031
    %v1050 = vsub.f32 %v999, %v1034
    %v1051 = vsub.f32 %v1004, %v1037
    %v1052 = vsub.f32 %v1009, %v1040
    %v1053 = vsub.f32 %v1014, %v1043
    %v1054 = vsub.f32 %v1019, %v1046
    %v1055 = vmul.f32 %v1047, 1.442695
    %v1056 = vpow.pop %v1055
    %v1057 = vmul.f32 %v1048, 1.442695
    %v1058 = vpow.pop %v1057
    %v1059 = vmul.f32 %v1049, 1.442695
    %v1060 = vpow.pop %v1059
    %v1061 = vmul.f32 %v1050, 1.442695
    %v1062 = vpow.pop %v1061
    %v1063 = vmul.f32 %v1051, 1.442695
    %v1064 = vpow.pop %v1063
    %v1065 = vmul.f32 %v1052, 1.442695
    %v1066 = vpow.pop %v1065
    %v1067 = vmul.f32 %v1053, 1.442695
    %v1068 = vpow.pop %v1067
    %v1069 = vmul.f32 %v1054, 1.442695
    %v1070 = vpow.pop %v1069
    %v1071 = vsel %vm1022, %v1056, 0.0
    %1072 = vadd.xlane.f32.xlu0 %v1071
    %v1073 = vpop.xlane.xlu0 %1072
    %v1074 = vsel %vm1022, %v1058, 0.0
    %1075 = vadd.xlane.f32.xlu0 %v1074
    %v1076 = vpop.xlane.xlu0 %1075
    %v1077 = vsel %vm1022, %v1060, 0.0
    %1078 = vadd.xlane.f32.xlu0 %v1077
    %v1079 = vpop.xlane.xlu0 %1078
    %v1080 = vsel %vm1022, %v1062, 0.0
    %1081 = vadd.xlane.f32.xlu0 %v1080
    %v1082 = vpop.xlane.xlu0 %1081
    %v1083 = vsel %vm1022, %v1064, 0.0
    %1084 = vadd.xlane.f32.xlu0 %v1083
    %v1085 = vpop.xlane.xlu0 %1084
    %v1086 = vsel %vm1022, %v1066, 0.0
    %1087 = vadd.xlane.f32.xlu0 %v1086
    %v1088 = vpop.xlane.xlu0 %1087
    %v1089 = vsel %vm1022, %v1068, 0.0
    %1090 = vadd.xlane.f32.xlu0 %v1089
    %v1091 = vpop.xlane.xlu0 %1090
    %v1092 = vsel %vm1022, %v1070, 0.0
    %1093 = vadd.xlane.f32.xlu0 %v1092
    %v1094 = vpop.xlane.xlu0 %1093
    %v1095 = vrcp.pop %v1073
    %v1096 = vrcp.pop %v1076
    %v1097 = vrcp.pop %v1079
    %v1098 = vrcp.pop %v1082
    %v1099 = vrcp.pop %v1085
    %v1100 = vrcp.pop %v1088
    %v1101 = vrcp.pop %v1091
    %v1102 = vrcp.pop %v1094
    %v1103 = vmul.f32 %v1056, %v1095
    %v1104 = vmul.f32 %v1058, %v1096
    %v1105 = vmul.f32 %v1060, %v1097
    %v1106 = vmul.f32 %v1062, %v1098
    %v1107 = vmul.f32 %v1064, %v1099
    %v1108 = vmul.f32 %v1066, %v1100
    %v1109 = vmul.f32 %v1068, %v1101
    %v1110 = vmul.f32 %v1070, %v1102
    %1111 = vrot.lane.b32.xlu0 %v863, 96
    %v1112 = vpop.permute.xlu0 %1111
    %1113 = vrot.lane.b32.xlu0 %v868, 96
    %v1114 = vpop.permute.xlu0 %1113
    %1115 = vrot.lane.b32.xlu0 %v873, 96
    %v1116 = vpop.permute.xlu0 %1115
    %v1121 = vsel %vm1022, %v1103, 0
    %v1124 = vsel %vm1022, %v1104, 0
    %v1127 = vsel %vm1022, %v1105, 0
    %v1130 = vsel %vm1022, %v1106, 0
    %v1133 = vsel %vm1022, %v1107, 0
    %v1136 = vsel %vm1022, %v1108, 0
    %v1139 = vsel %vm1022, %v1109, 0
    %v1142 = vsel %vm1022, %v1110, 0
    %1144 = vmatprep.subr.mxu0 0.0
    %1145 = vmatpush1.msra.mxu0 %v1112
    %1146 = vmatprep.subr.mxu0 0.0
    %1147 = vmatpush1.msra.mxu0 %v1114
    %1148 = vmatprep.subr.mxu0 0.0
    %1149 = vmatpush1.msra.mxu0 %v1116
    %1150 = vmatprep.subr.mxu0 0.0
    %1151 = vmatpush1.msra.mxu0 0.0
    %1152 = vmatprep.subr.mxu0 0.0
    %1153 = vmatpush1.msra.mxu0 0.0
    %1154 = vmatprep.subr.mxu0 0.0
    %1155 = vmatpush1.msra.mxu0 0.0
    %1156 = vmatprep.subr.mxu0 0.0
    %1157 = vmatpush1.msra.mxu0 0.0
    %1158 = vmatprep.subr.mxu0 0.0
    %1159 = vmatpush1.msra.mxu0 0.0
    %1160 = vmatprep.subr.mxu0 0.0
    %1161 = vmatpush1.msra.mxu0 0.0
    %1162 = vmatprep.subr.mxu0 0.0
    %1163 = vmatpush1.msra.mxu0 0.0
    %1164 = vmatprep.subr.mxu0 0.0
    %1165 = vmatpush1.msra.mxu0 0.0
    %1166 = vmatprep.subr.mxu0 0.0
    %1167 = vmatpush1.msra.mxu0 0.0
    %1168 = vmatprep.subr.mxu0 0.0
    %1169 = vmatpush1.msra.mxu0 0.0
    %1170 = vmatprep.subr.mxu0 0.0
    %1171 = vmatpush1.msra.mxu0 0.0
    %1172 = vmatprep.subr.mxu0 0.0
    %1173 = vmatpush1.msra.mxu0 0.0
    %1174 = vmatprep.subr.mxu0 0.0
    %1175 = vmatpush1.msra.mxu0 0.0
    %1176 = vmatprep.subr.mxu0 0.0
    %1177 = vmatpush1.msra.mxu0 0.0
    %1178 = vmatprep.subr.mxu0 0.0
    %1179 = vmatpush1.msra.mxu0 0.0
    %1180 = vmatprep.subr.mxu0 0.0
    %1181 = vmatpush1.msra.mxu0 0.0
    %1182 = vmatprep.subr.mxu0 0.0
    %1183 = vmatpush1.msra.mxu0 0.0
    %1184 = vmatprep.subr.mxu0 0.0
    %1185 = vmatpush1.msra.mxu0 0.0
    %1186 = vmatprep.subr.mxu0 0.0
    %1187 = vmatpush1.msra.mxu0 0.0
    %1188 = vmatprep.subr.mxu0 0.0
    %1189 = vmatpush1.msra.mxu0 0.0
    %1190 = vmatprep.subr.mxu0 0.0
    %1191 = vmatpush1.msra.mxu0 0.0
    %1192 = vmatprep.subr.mxu0 0.0
    %1193 = vmatpush1.msra.mxu0 0.0
    %1194 = vmatprep.subr.mxu0 0.0
    %1195 = vmatpush1.msra.mxu0 0.0
    %1196 = vmatprep.subr.mxu0 0.0
    %1197 = vmatpush1.msra.mxu0 0.0
    %1198 = vmatprep.subr.mxu0 0.0
    %1199 = vmatpush1.msra.mxu0 0.0
    %1200 = vmatprep.subr.mxu0 0.0
    %1201 = vmatpush1.msra.mxu0 0.0
    %1202 = vmatprep.subr.mxu0 0.0
    %1203 = vmatpush1.msra.mxu0 0.0
    %1204 = vmatprep.subr.mxu0 0.0
    %1205 = vmatpush1.msra.mxu0 0.0
    %1206 = vmatprep.subr.mxu0 0.0
    %1207 = vmatpush1.msra.mxu0 0.0
    %1208 = vmatprep.mubr.f32.mxu0 0.0
    %1209 = vmatmul.mubr.f32.gmra.mrb[0].mxu0 %v1121
    %v1210 = vpop.f32.mrb[0].mxu0
    %v1211 = vadd.f32 0.0, %v1210
    %v1212 = vpop.f32.mrb[0].mxu0
    %1213 = vmatprep.mubr.f32.mxu0 0.0
    %1214 = vmatmul.mubr.f32.gmra.mrb[0].mxu0 %v1124
    %v1215 = vpop.f32.mrb[0].mxu0
    %v1216 = vadd.f32 0.0, %v1215
    %v1217 = vpop.f32.mrb[0].mxu0
    %1218 = vmatprep.mubr.f32.mxu0 0.0
    %1219 = vmatmul.mubr.f32.gmra.mrb[0].mxu0 %v1127
    %v1220 = vpop.f32.mrb[0].mxu0
    %v1221 = vadd.f32 0.0, %v1220
    %v1222 = vpop.f32.mrb[0].mxu0
    %1223 = vmatprep.mubr.f32.mxu0 0.0
    %1224 = vmatmul.mubr.f32.gmra.mrb[0].mxu0 %v1130
    %v1225 = vpop.f32.mrb[0].mxu0
    %v1226 = vadd.f32 0.0, %v1225
    %v1227 = vpop.f32.mrb[0].mxu0
    %1228 = vmatprep.mubr.f32.mxu0 0.0
    %1229 = vmatmul.mubr.f32.gmra.mrb[0].mxu0 %v1133
    %v1230 = vpop.f32.mrb[0].mxu0
    %v1231 = vadd.f32 0.0, %v1230
    %v1232 = vpop.f32.mrb[0].mxu0
    %1233 = vmatprep.mubr.f32.mxu0 0.0
    %1234 = vmatmul.mubr.f32.gmra.mrb[0].mxu0 %v1136
    %v1235 = vpop.f32.mrb[0].mxu0
    %v1236 = vadd.f32 0.0, %v1235
    %v1237 = vpop.f32.mrb[0].mxu0
    %1238 = vmatprep.mubr.f32.mxu0 0.0
    %1239 = vmatmul.mubr.f32.gmra.mrb[0].mxu0 %v1139
    %v1240 = vpop.f32.mrb[0].mxu0
    %v1241 = vadd.f32 0.0, %v1240
    %v1242 = vpop.f32.mrb[0].mxu0
    %1243 = vmatprep.mubr.f32.mxu0 0.0
    %1244 = vmatmul.mubr.f32.gmra.mrb[0].mxu0 %v1142
    %v1245 = vpop.f32.mrb[0].mxu0
    %v1246 = vadd.f32 0.0, %v1245
    %v1247 = vpop.f32.mrb[0].mxu0
    %1248 = vdwg.mxu0
    %v1249 = vmul.f32 %v1211, %v35
    %v1250 = vmul.f32 %v1216, %v36
    %v1251 = vmul.f32 %v1221, %v37
    %v1252 = vmul.f32 %v1226, %v38
    %v1253 = vmul.f32 %v1231, %v39
    %v1254 = vmul.f32 %v1236, %v40
    %v1255 = vmul.f32 %v1241, %v41
    %v1256 = vmul.f32 %v1246, %v42
    %v1257 = vadd.f32 %v1249, %v1251
    %v1258 = vadd.f32 %v1250, %v1252
    %v1259 = vadd.f32 %v1257, %v1253
    %v1260 = vadd.f32 %v1258, %v1254
    %v1261 = vadd.f32 %v1259, %v1255
    %v1262 = vadd.f32 %v1260, %v1256
    %v1263 = vld [vmem:[%s5 + $0x20] sm:$0xff]
    %v1264 = vld [vmem:[%s5 + $0x50] sm:$0xff]
    %v1265 = vld [vmem:[%s5 + $0x80] sm:$0xff]
    %v1266 = vld [vmem:[%s5 + $0xb0] sm:$0xff]
    %v1267 = vld [vmem:[%s7 + $0x4] sm:$0x1]
    %v1269 = vlaneseq
    %v1270 = vshrl.u32 %v1269, 7
    %v1271 = vsub.s32 0, %v1270
    %v1272 = vrot.slane %v1267, %v1271
    %v1275 = vsel %vm59, %v1261, 0
    %v1278 = vsel %vm59, %v1262, 0
    %1280 = vmatprep.subr.mxu0 0.0
    %1281 = vmatpush1.msra.mxu0 %v1263
    %1282 = vmatprep.subr.mxu0 0.0
    %1283 = vmatpush1.msra.mxu0 %v1264
    %1284 = vmatprep.subr.mxu0 0.0
    %1285 = vmatpush1.msra.mxu0 %v1265
    %1286 = vmatprep.subr.mxu0 0.0
    %1287 = vmatpush1.msra.mxu0 %v1266
    %1288 = vmatprep.subr.mxu0 0.0
    %1289 = vmatpush1.msra.mxu0 0.0
    %1290 = vmatprep.subr.mxu0 0.0
    %1291 = vmatpush1.msra.mxu0 0.0
    %1292 = vmatprep.subr.mxu0 0.0
    %1293 = vmatpush1.msra.mxu0 0.0
    %1294 = vmatprep.subr.mxu0 0.0
    %1295 = vmatpush1.msra.mxu0 0.0
    %1296 = vmatprep.subr.mxu0 0.0
    %1297 = vmatpush1.msra.mxu0 0.0
    %1298 = vmatprep.subr.mxu0 0.0
    %1299 = vmatpush1.msra.mxu0 0.0
    %1300 = vmatprep.subr.mxu0 0.0
    %1301 = vmatpush1.msra.mxu0 0.0
    %1302 = vmatprep.subr.mxu0 0.0
    %1303 = vmatpush1.msra.mxu0 0.0
    %1304 = vmatprep.subr.mxu0 0.0
    %1305 = vmatpush1.msra.mxu0 0.0
    %1306 = vmatprep.subr.mxu0 0.0
    %1307 = vmatpush1.msra.mxu0 0.0
    %1308 = vmatprep.subr.mxu0 0.0
    %1309 = vmatpush1.msra.mxu0 0.0
    %1310 = vmatprep.subr.mxu0 0.0
    %1311 = vmatpush1.msra.mxu0 0.0
    %1312 = vmatprep.subr.mxu0 0.0
    %1313 = vmatpush1.msra.mxu0 0.0
    %1314 = vmatprep.subr.mxu0 0.0
    %1315 = vmatpush1.msra.mxu0 0.0
    %1316 = vmatprep.subr.mxu0 0.0
    %1317 = vmatpush1.msra.mxu0 0.0
    %1318 = vmatprep.subr.mxu0 0.0
    %1319 = vmatpush1.msra.mxu0 0.0
    %1320 = vmatprep.subr.mxu0 0.0
    %1321 = vmatpush1.msra.mxu0 0.0
    %1322 = vmatprep.subr.mxu0 0.0
    %1323 = vmatpush1.msra.mxu0 0.0
    %1324 = vmatprep.subr.mxu0 0.0
    %1325 = vmatpush1.msra.mxu0 0.0
    %1326 = vmatprep.subr.mxu0 0.0
    %1327 = vmatpush1.msra.mxu0 0.0
    %1328 = vmatprep.subr.mxu0 0.0
    %1329 = vmatpush1.msra.mxu0 0.0
    %1330 = vmatprep.subr.mxu0 0.0
    %1331 = vmatpush1.msra.mxu0 0.0
    %1332 = vmatprep.subr.mxu0 0.0
    %1333 = vmatpush1.msra.mxu0 0.0
    %1334 = vmatprep.subr.mxu0 0.0
    %1335 = vmatpush1.msra.mxu0 0.0
    %1336 = vmatprep.subr.mxu0 0.0
    %1337 = vmatpush1.msra.mxu0 0.0
    %1338 = vmatprep.subr.mxu0 0.0
    %1339 = vmatpush1.msra.mxu0 0.0
    %1340 = vmatprep.subr.mxu0 0.0
    %1341 = vmatpush1.msra.mxu0 0.0
    %1342 = vmatprep.subr.mxu0 0.0
    %1343 = vmatpush1.msra.mxu0 0.0
    %1344 = vmatprep.mubr.f32.mxu0 0.0
    %1345 = vmatmul.mubr.f32.gmra.mrb[0].mxu0 %v1275
    %v1346 = vpop.f32.mrb[0].mxu0
    %v1347 = vadd.f32 %v1272, %v1346
    %v1348 = vpop.f32.mrb[0].mxu0
    %1349 = vmatprep.mubr.f32.mxu0 0.0
    %1350 = vmatmul.mubr.f32.gmra.mrb[0].mxu0 %v1278
    %v1351 = vpop.f32.mrb[0].mxu0
    %v1352 = vadd.f32 %v1272, %v1351
    %v1353 = vpop.f32.mrb[0].mxu0
    %1354 = vdwg.mxu0
    %v1355 = vadd.f32 %v656, %v1347
    %v1356 = vadd.f32 %v657, %v1352
    %v1357 = vsel %vm59, %v1355, 0.0
    %1358 = vadd.xlane.f32.xlu0 %v1357
    %v1359 = vpop.xlane.xlu0 %1358
    %v1360 = vsel %vm59, %v1356, 0.0
    %1361 = vadd.xlane.f32.xlu0 %v1360
    %v1362 = vpop.xlane.xlu0 %1361
    %v1363 = vmul.f32 %v1359, %v66
    %v1364 = vmul.f32 %v1362, %v66
    %v1365 = vsub.f32 %v1355, %v1363
    %v1366 = vsub.f32 %v1356, %v1364
    %v1367 = vmul.f32 %v1365, %v1365
    %v1368 = vmul.f32 %v1366, %v1366
    %v1369 = vsel %vm59, %v1367, 0.0
    %1370 = vadd.xlane.f32.xlu0 %v1369
    %v1371 = vpop.xlane.xlu0 %1370
    %v1372 = vsel %vm59, %v1368, 0.0
    %1373 = vadd.xlane.f32.xlu0 %v1372
    %v1374 = vpop.xlane.xlu0 %1373
    %v1375 = vmul.f32 %v1371, %v66
    %v1376 = vmul.f32 %v1374, %v66
    %v1377 = vadd.f32 %v1375, 1e-05
    %v1378 = vadd.f32 %v1376, 1e-05
    %v1379 = vrsqrt.pop %v1377
    %v1380 = vrsqrt.pop %v1378
    %v1381 = vmul.f32 %v1365, %v1379
    %v1382 = vmul.f32 %v1366, %v1380
    %v1383 = vld [vmem:[%s5 + $0x28] sm:$0xff]
    %v1384 = vld [vmem:[%s5 + $0x58] sm:$0xff]
    %v1385 = vld [vmem:[%s5 + $0x88] sm:$0xff]
    %v1386 = vld [vmem:[%s5 + $0xb8] sm:$0xff]
    %v1387 = vld [vmem:[%s7 + $0x5] sm:$0x1]
    %v1389 = vlaneseq
    %v1390 = vshrl.u32 %v1389, 7
    %v1391 = vsub.s32 0, %v1390
    %v1392 = vrot.slane %v1387, %v1391
    %v1395 = vsel %vm59, %v1381, 0
    %v1398 = vsel %vm59, %v1382, 0
    %1400 = vmatprep.subr.mxu0 0.0
    %1401 = vmatpush1.msra.mxu0 %v1383
    %1402 = vmatprep.subr.mxu0 0.0
    %1403 = vmatpush1.msra.mxu0 %v1384
    %1404 = vmatprep.subr.mxu0 0.0
    %1405 = vmatpush1.msra.mxu0 %v1385
    %1406 = vmatprep.subr.mxu0 0.0
    %1407 = vmatpush1.msra.mxu0 %v1386
    %1408 = vmatprep.subr.mxu0 0.0
    %1409 = vmatpush1.msra.mxu0 0.0
    %1410 = vmatprep.subr.mxu0 0.0
    %1411 = vmatpush1.msra.mxu0 0.0
    %1412 = vmatprep.subr.mxu0 0.0
    %1413 = vmatpush1.msra.mxu0 0.0
    %1414 = vmatprep.subr.mxu0 0.0
    %1415 = vmatpush1.msra.mxu0 0.0
    %1416 = vmatprep.subr.mxu0 0.0
    %1417 = vmatpush1.msra.mxu0 0.0
    %1418 = vmatprep.subr.mxu0 0.0
    %1419 = vmatpush1.msra.mxu0 0.0
    %1420 = vmatprep.subr.mxu0 0.0
    %1421 = vmatpush1.msra.mxu0 0.0
    %1422 = vmatprep.subr.mxu0 0.0
    %1423 = vmatpush1.msra.mxu0 0.0
    %1424 = vmatprep.subr.mxu0 0.0
    %1425 = vmatpush1.msra.mxu0 0.0
    %1426 = vmatprep.subr.mxu0 0.0
    %1427 = vmatpush1.msra.mxu0 0.0
    %1428 = vmatprep.subr.mxu0 0.0
    %1429 = vmatpush1.msra.mxu0 0.0
    %1430 = vmatprep.subr.mxu0 0.0
    %1431 = vmatpush1.msra.mxu0 0.0
    %1432 = vmatprep.subr.mxu0 0.0
    %1433 = vmatpush1.msra.mxu0 0.0
    %1434 = vmatprep.subr.mxu0 0.0
    %1435 = vmatpush1.msra.mxu0 0.0
    %1436 = vmatprep.subr.mxu0 0.0
    %1437 = vmatpush1.msra.mxu0 0.0
    %1438 = vmatprep.subr.mxu0 0.0
    %1439 = vmatpush1.msra.mxu0 0.0
    %1440 = vmatprep.subr.mxu0 0.0
    %1441 = vmatpush1.msra.mxu0 0.0
    %1442 = vmatprep.subr.mxu0 0.0
    %1443 = vmatpush1.msra.mxu0 0.0
    %1444 = vmatprep.subr.mxu0 0.0
    %1445 = vmatpush1.msra.mxu0 0.0
    %1446 = vmatprep.subr.mxu0 0.0
    %1447 = vmatpush1.msra.mxu0 0.0
    %1448 = vmatprep.subr.mxu0 0.0
    %1449 = vmatpush1.msra.mxu0 0.0
    %1450 = vmatprep.subr.mxu0 0.0
    %1451 = vmatpush1.msra.mxu0 0.0
    %1452 = vmatprep.subr.mxu0 0.0
    %1453 = vmatpush1.msra.mxu0 0.0
    %1454 = vmatprep.subr.mxu0 0.0
    %1455 = vmatpush1.msra.mxu0 0.0
    %1456 = vmatprep.subr.mxu0 0.0
    %1457 = vmatpush1.msra.mxu0 0.0
    %1458 = vmatprep.subr.mxu0 0.0
    %1459 = vmatpush1.msra.mxu0 0.0
    %1460 = vmatprep.subr.mxu0 0.0
    %1461 = vmatpush1.msra.mxu0 0.0
    %1462 = vmatprep.subr.mxu0 0.0
    %1463 = vmatpush1.msra.mxu0 0.0
    %1464 = vmatprep.mubr.f32.mxu0 0.0
    %1465 = vmatmul.mubr.f32.gmra.mrb[0].mxu0 %v1395
    %v1466 = vpop.f32.mrb[0].mxu0
    %v1467 = vadd.f32 %v1392, %v1466
    %v1468 = vpop.f32.mrb[0].mxu0
    %1469 = vmatprep.mubr.f32.mxu0 0.0
    %1470 = vmatmul.mubr.f32.gmra.mrb[0].mxu0 %v1398
    %v1471 = vpop.f32.mrb[0].mxu0
    %v1472 = vadd.f32 %v1392, %v1471
    %v1473 = vpop.f32.mrb[0].mxu0
    %1474 = vdwg.mxu0
    %v1475 = vmax.f32 %v1467, 0.0
    %v1476 = vmax.f32 %v1472, 0.0
    %v1477 = vld [vmem:[%s6] sm:$0xff]
    %v1478 = vld [vmem:[%s6 + $0x8] sm:$0xff]
    %v1479 = vld [vmem:[%s6 + $0x10] sm:$0xff]
    %v1480 = vld [vmem:[%s6 + $0x18] sm:$0xff]
    %v1481 = vld [vmem:[%s6 + $0x20] sm:$0xff]
    %v1482 = vld [vmem:[%s6 + $0x28] sm:$0xff]
    %v1483 = vld [vmem:[%s6 + $0x30] sm:$0xff]
    %v1484 = vld [vmem:[%s6 + $0x38] sm:$0xff]
    %v1485 = vld [vmem:[%s7 + $0x6] sm:$0x1]
    %v1487 = vlaneseq
    %v1488 = vshrl.u32 %v1487, 7
    %v1489 = vsub.s32 0, %v1488
    %v1490 = vrot.slane %v1485, %v1489
    %vm1492 = vcmask 523264
    %v1494 = vsel %vm1492, %v1475, 0
    %v1497 = vsel %vm1492, %v1476, 0
    %1499 = vmatprep.subr.mxu0 0.0
    %1500 = vmatpush1.msra.mxu0 %v1477
    %1501 = vmatprep.subr.mxu0 0.0
    %1502 = vmatpush1.msra.mxu0 %v1478
    %1503 = vmatprep.subr.mxu0 0.0
    %1504 = vmatpush1.msra.mxu0 %v1479
    %1505 = vmatprep.subr.mxu0 0.0
    %1506 = vmatpush1.msra.mxu0 %v1480
    %1507 = vmatprep.subr.mxu0 0.0
    %1508 = vmatpush1.msra.mxu0 %v1481
    %1509 = vmatprep.subr.mxu0 0.0
    %1510 = vmatpush1.msra.mxu0 %v1482
    %1511 = vmatprep.subr.mxu0 0.0
    %1512 = vmatpush1.msra.mxu0 %v1483
    %1513 = vmatprep.subr.mxu0 0.0
    %1514 = vmatpush1.msra.mxu0 %v1484
    %1515 = vmatprep.subr.mxu0 0.0
    %1516 = vmatpush1.msra.mxu0 0.0
    %1517 = vmatprep.subr.mxu0 0.0
    %1518 = vmatpush1.msra.mxu0 0.0
    %1519 = vmatprep.subr.mxu0 0.0
    %1520 = vmatpush1.msra.mxu0 0.0
    %1521 = vmatprep.subr.mxu0 0.0
    %1522 = vmatpush1.msra.mxu0 0.0
    %1523 = vmatprep.subr.mxu0 0.0
    %1524 = vmatpush1.msra.mxu0 0.0
    %1525 = vmatprep.subr.mxu0 0.0
    %1526 = vmatpush1.msra.mxu0 0.0
    %1527 = vmatprep.subr.mxu0 0.0
    %1528 = vmatpush1.msra.mxu0 0.0
    %1529 = vmatprep.subr.mxu0 0.0
    %1530 = vmatpush1.msra.mxu0 0.0
    %1531 = vmatprep.subr.mxu0 0.0
    %1532 = vmatpush1.msra.mxu0 0.0
    %1533 = vmatprep.subr.mxu0 0.0
    %1534 = vmatpush1.msra.mxu0 0.0
    %1535 = vmatprep.subr.mxu0 0.0
    %1536 = vmatpush1.msra.mxu0 0.0
    %1537 = vmatprep.subr.mxu0 0.0
    %1538 = vmatpush1.msra.mxu0 0.0
    %1539 = vmatprep.subr.mxu0 0.0
    %1540 = vmatpush1.msra.mxu0 0.0
    %1541 = vmatprep.subr.mxu0 0.0
    %1542 = vmatpush1.msra.mxu0 0.0
    %1543 = vmatprep.subr.mxu0 0.0
    %1544 = vmatpush1.msra.mxu0 0.0
    %1545 = vmatprep.subr.mxu0 0.0
    %1546 = vmatpush1.msra.mxu0 0.0
    %1547 = vmatprep.subr.mxu0 0.0
    %1548 = vmatpush1.msra.mxu0 0.0
    %1549 = vmatprep.subr.mxu0 0.0
    %1550 = vmatpush1.msra.mxu0 0.0
    %1551 = vmatprep.subr.mxu0 0.0
    %1552 = vmatpush1.msra.mxu0 0.0
    %1553 = vmatprep.subr.mxu0 0.0
    %1554 = vmatpush1.msra.mxu0 0.0
    %1555 = vmatprep.subr.mxu0 0.0
    %1556 = vmatpush1.msra.mxu0 0.0
    %1557 = vmatprep.subr.mxu0 0.0
    %1558 = vmatpush1.msra.mxu0 0.0
    %1559 = vmatprep.subr.mxu0 0.0
    %1560 = vmatpush1.msra.mxu0 0.0
    %1561 = vmatprep.subr.mxu0 0.0
    %1562 = vmatpush1.msra.mxu0 0.0
    %1563 = vmatprep.mubr.f32.mxu0 0.0
    %1564 = vmatmul.mubr.f32.gmra.mrb[0].mxu0 %v1494
    %v1565 = vpop.f32.mrb[0].mxu0
    %v1566 = vadd.f32 %v1490, %v1565
    %v1567 = vpop.f32.mrb[0].mxu0
    %1568 = vmatprep.mubr.f32.mxu0 0.0
    %1569 = vmatmul.mubr.f32.gmra.mrb[0].mxu0 %v1497
    %v1570 = vpop.f32.mrb[0].mxu0
    %v1571 = vadd.f32 %v1490, %v1570
    %v1572 = vpop.f32.mrb[0].mxu0
    %1573 = vdwg.mxu0
    %v1574 = vadd.f32 %v1355, %v1566
    %v1575 = vadd.f32 %v1356, %v1571
    %v1576 = vsel %vm59, %v1574, 0.0
    %1577 = vadd.xlane.f32.xlu0 %v1576
    %v1578 = vpop.xlane.xlu0 %1577
    %v1579 = vsel %vm59, %v1575, 0.0
    %1580 = vadd.xlane.f32.xlu0 %v1579
    %v1581 = vpop.xlane.xlu0 %1580
    %v1582 = vmul.f32 %v1578, %v66
    %v1583 = vmul.f32 %v1581, %v66
    %v1584 = vsub.f32 %v1574, %v1582
    %v1585 = vsub.f32 %v1575, %v1583
    %v1586 = vmul.f32 %v1584, %v1584
    %v1587 = vmul.f32 %v1585, %v1585
    %v1588 = vsel %vm59, %v1586, 0.0
    %1589 = vadd.xlane.f32.xlu0 %v1588
    %v1590 = vpop.xlane.xlu0 %1589
    %v1591 = vsel %vm59, %v1587, 0.0
    %1592 = vadd.xlane.f32.xlu0 %v1591
    %v1593 = vpop.xlane.xlu0 %1592
    %v1594 = vmul.f32 %v1590, %v66
    %v1595 = vmul.f32 %v1593, %v66
    %v1596 = vadd.f32 %v1594, 1e-05
    %v1597 = vadd.f32 %v1595, 1e-05
    %v1598 = vrsqrt.pop %v1596
    %v1599 = vrsqrt.pop %v1597
    %v1600 = vmul.f32 %v1584, %v1598
    %v1601 = vmul.f32 %v1585, %v1599
    %s1602 = scalar_lea.vmem %s5, 192
    %v1603 = vld [vmem:[%s1602] sm:$0xff]
    %v1604 = vld [vmem:[%s1602 + $0x30] sm:$0xff]
    %v1605 = vld [vmem:[%s1602 + $0x60] sm:$0xff]
    %v1606 = vld [vmem:[%s1602 + $0x90] sm:$0xff]
    %s1607 = scalar_lea.vmem %s7, 7
    %v1608 = vld [vmem:[%s1607] sm:$0x1]
    %v1610 = vlaneseq
    %v1611 = vshrl.u32 %v1610, 7
    %v1612 = vsub.s32 0, %v1611
    %v1613 = vrot.slane %v1608, %v1612
    %v1616 = vsel %vm59, %v1600, 0
    %v1619 = vsel %vm59, %v1601, 0
    %1621 = vmatprep.subr.mxu0 0.0
    %1622 = vmatpush1.msra.mxu0 %v1603
    %1623 = vmatprep.subr.mxu0 0.0
    %1624 = vmatpush1.msra.mxu0 %v1604
    %1625 = vmatprep.subr.mxu0 0.0
    %1626 = vmatpush1.msra.mxu0 %v1605
    %1627 = vmatprep.subr.mxu0 0.0
    %1628 = vmatpush1.msra.mxu0 %v1606
    %1629 = vmatprep.subr.mxu0 0.0
    %1630 = vmatpush1.msra.mxu0 0.0
    %1631 = vmatprep.subr.mxu0 0.0
    %1632 = vmatpush1.msra.mxu0 0.0
    %1633 = vmatprep.subr.mxu0 0.0
    %1634 = vmatpush1.msra.mxu0 0.0
    %1635 = vmatprep.subr.mxu0 0.0
    %1636 = vmatpush1.msra.mxu0 0.0
    %1637 = vmatprep.subr.mxu0 0.0
    %1638 = vmatpush1.msra.mxu0 0.0
    %1639 = vmatprep.subr.mxu0 0.0
    %1640 = vmatpush1.msra.mxu0 0.0
    %1641 = vmatprep.subr.mxu0 0.0
    %1642 = vmatpush1.msra.mxu0 0.0
    %1643 = vmatprep.subr.mxu0 0.0
    %1644 = vmatpush1.msra.mxu0 0.0
    %1645 = vmatprep.subr.mxu0 0.0
    %1646 = vmatpush1.msra.mxu0 0.0
    %1647 = vmatprep.subr.mxu0 0.0
    %1648 = vmatpush1.msra.mxu0 0.0
    %1649 = vmatprep.subr.mxu0 0.0
    %1650 = vmatpush1.msra.mxu0 0.0
    %1651 = vmatprep.subr.mxu0 0.0
    %1652 = vmatpush1.msra.mxu0 0.0
    %1653 = vmatprep.subr.mxu0 0.0
    %1654 = vmatpush1.msra.mxu0 0.0
    %1655 = vmatprep.subr.mxu0 0.0
    %1656 = vmatpush1.msra.mxu0 0.0
    %1657 = vmatprep.subr.mxu0 0.0
    %1658 = vmatpush1.msra.mxu0 0.0
    %1659 = vmatprep.subr.mxu0 0.0
    %1660 = vmatpush1.msra.mxu0 0.0
    %1661 = vmatprep.subr.mxu0 0.0
    %1662 = vmatpush1.msra.mxu0 0.0
    %1663 = vmatprep.subr.mxu0 0.0
    %1664 = vmatpush1.msra.mxu0 0.0
    %1665 = vmatprep.subr.mxu0 0.0
    %1666 = vmatpush1.msra.mxu0 0.0
    %1667 = vmatprep.subr.mxu0 0.0
    %1668 = vmatpush1.msra.mxu0 0.0
    %1669 = vmatprep.subr.mxu0 0.0
    %1670 = vmatpush1.msra.mxu0 0.0
    %1671 = vmatprep.subr.mxu0 0.0
    %1672 = vmatpush1.msra.mxu0 0.0
    %1673 = vmatprep.subr.mxu0 0.0
    %1674 = vmatpush1.msra.mxu0 0.0
    %1675 = vmatprep.subr.mxu0 0.0
    %1676 = vmatpush1.msra.mxu0 0.0
    %1677 = vmatprep.subr.mxu0 0.0
    %1678 = vmatpush1.msra.mxu0 0.0
    %1679 = vmatprep.subr.mxu0 0.0
    %1680 = vmatpush1.msra.mxu0 0.0
    %1681 = vmatprep.subr.mxu0 0.0
    %1682 = vmatpush1.msra.mxu0 0.0
    %1683 = vmatprep.subr.mxu0 0.0
    %1684 = vmatpush1.msra.mxu0 0.0
    %1685 = vmatprep.mubr.f32.mxu0 0.0
    %1686 = vmatmul.mubr.f32.gmra.mrb[0].mxu0 %v1616
    %v1687 = vpop.f32.mrb[0].mxu0
    %v1688 = vadd.f32 %v1613, %v1687
    %v1689 = vpop.f32.mrb[0].mxu0
    %1690 = vmatprep.mubr.f32.mxu0 0.0
    %1691 = vmatmul.mubr.f32.gmra.mrb[0].mxu0 %v1619
    %v1692 = vpop.f32.mrb[0].mxu0
    %v1693 = vadd.f32 %v1613, %v1692
    %v1694 = vpop.f32.mrb[0].mxu0
    %1695 = vdwg.mxu0
    %v1696 = vmul.f32 %v1688, %v35
    %v1697 = vmul.f32 %v1693, %v36
    %v1698 = vmul.f32 %v1688, %v37
    %v1699 = vmul.f32 %v1693, %v38
    %v1700 = vmul.f32 %v1688, %v39
    %v1701 = vmul.f32 %v1693, %v40
    %v1702 = vmul.f32 %v1688, %v41
    %v1703 = vmul.f32 %v1693, %v42
    %1706 = vrot.lane.b32.xlu0 %v1688, 96
    %v1707 = vpop.permute.xlu0 %1706
    %1708 = vrot.lane.b32.xlu0 %v1693, 96
    %v1709 = vpop.permute.xlu0 %1708
    %v1711 = vsel %vm59, %v1696, 0
    %v1714 = vsel %vm59, %v1697, 0
    %v1717 = vsel %vm59, %v1698, 0
    %v1720 = vsel %vm59, %v1699, 0
    %v1723 = vsel %vm59, %v1700, 0
    %v1726 = vsel %vm59, %v1701, 0
    %v1729 = vsel %vm59, %v1702, 0
    %v1732 = vsel %vm59, %v1703, 0
    %v1734 = vsel %vm59, %v1707, 0
    %v1736 = vsel %vm59, %v1709, 0
    %1738 = vmatprep.subr.mxu0 0.0
    %1739 = vmatpush1.xpose.msra.mxu0 %v1734
    %1740 = vmatprep.subr.mxu0 0.0
    %1741 = vmatpush1.xpose.msra.mxu0 %v1736
    %1742 = vmatprep.subr.mxu0 0.0
    %1743 = vmatpush1.xpose.msra.mxu0 0.0
    %1744 = vmatprep.subr.mxu0 0.0
    %1745 = vmatpush1.xpose.msra.mxu0 0.0
    %1746 = vmatprep.subr.mxu0 0.0
    %1747 = vmatpush1.xpose.msra.mxu0 0.0
    %1748 = vmatprep.subr.mxu0 0.0
    %1749 = vmatpush1.xpose.msra.mxu0 0.0
    %1750 = vmatprep.subr.mxu0 0.0
    %1751 = vmatpush1.xpose.msra.mxu0 0.0
    %1752 = vmatprep.subr.mxu0 0.0
    %1753 = vmatpush1.xpose.msra.mxu0 0.0
    %1754 = vmatprep.subr.mxu0 0.0
    %1755 = vmatpush1.xpose.msra.mxu0 0.0
    %1756 = vmatprep.subr.mxu0 0.0
    %1757 = vmatpush1.xpose.msra.mxu0 0.0
    %1758 = vmatprep.subr.mxu0 0.0
    %1759 = vmatpush1.xpose.msra.mxu0 0.0
    %1760 = vmatprep.subr.mxu0 0.0
    %1761 = vmatpush1.xpose.msra.mxu0 0.0
    %1762 = vmatprep.subr.mxu0 0.0
    %1763 = vmatpush1.xpose.msra.mxu0 0.0
    %1764 = vmatprep.subr.mxu0 0.0
    %1765 = vmatpush1.xpose.msra.mxu0 0.0
    %1766 = vmatprep.subr.mxu0 0.0
    %1767 = vmatpush1.xpose.msra.mxu0 0.0
    %1768 = vmatprep.subr.mxu0 0.0
    %1769 = vmatpush1.xpose.msra.mxu0 0.0
    %1770 = vmatprep.subr.mxu0 0.0
    %1771 = vmatpush1.xpose.msra.mxu0 0.0
    %1772 = vmatprep.subr.mxu0 0.0
    %1773 = vmatpush1.xpose.msra.mxu0 0.0
    %1774 = vmatprep.subr.mxu0 0.0
    %1775 = vmatpush1.xpose.msra.mxu0 0.0
    %1776 = vmatprep.subr.mxu0 0.0
    %1777 = vmatpush1.xpose.msra.mxu0 0.0
    %1778 = vmatprep.subr.mxu0 0.0
    %1779 = vmatpush1.xpose.msra.mxu0 0.0
    %1780 = vmatprep.subr.mxu0 0.0
    %1781 = vmatpush1.xpose.msra.mxu0 0.0
    %1782 = vmatprep.subr.mxu0 0.0
    %1783 = vmatpush1.xpose.msra.mxu0 0.0
    %1784 = vmatprep.subr.mxu0 0.0
    %1785 = vmatpush1.xpose.msra.mxu0 0.0
    %1786 = vmatprep.subr.mxu0 0.0
    %1787 = vmatpush1.xpose.msra.mxu0 0.0
    %1788 = vmatprep.subr.mxu0 0.0
    %1789 = vmatpush1.xpose.msra.mxu0 0.0
    %1790 = vmatprep.subr.mxu0 0.0
    %1791 = vmatpush1.xpose.msra.mxu0 0.0
    %1792 = vmatprep.subr.mxu0 0.0
    %1793 = vmatpush1.xpose.msra.mxu0 0.0
    %1794 = vmatprep.subr.mxu0 0.0
    %1795 = vmatpush1.xpose.msra.mxu0 0.0
    %1796 = vmatprep.subr.mxu0 0.0
    %1797 = vmatpush1.xpose.msra.mxu0 0.0
    %1798 = vmatprep.subr.mxu0 0.0
    %1799 = vmatpush1.xpose.msra.mxu0 0.0
    %1800 = vmatprep.subr.mxu0 0.0
    %1801 = vmatpush1.xpose.msra.mxu0 0.0
    %1802 = vmatprep.mubr.f32.mxu0 0.0
    %1803 = vmatmul.mubr.f32.gmra.mrb[0].mxu0 %v1711
    %v1804 = vpop.f32.mrb[0].mxu0
    %v1805 = vadd.f32 %v43, %v1804
    %v1806 = vpop.f32.mrb[0].mxu0
    %1807 = vmatprep.mubr.f32.mxu0 0.0
    %1808 = vmatmul.mubr.f32.gmra.mrb[0].mxu0 %v1714
    %v1809 = vpop.f32.mrb[0].mxu0
    %v1810 = vadd.f32 %v44, %v1809
    %v1811 = vpop.f32.mrb[0].mxu0
    %1812 = vmatprep.mubr.f32.mxu0 0.0
    %1813 = vmatmul.mubr.f32.gmra.mrb[0].mxu0 %v1717
    %v1814 = vpop.f32.mrb[0].mxu0
    %v1815 = vadd.f32 %v45, %v1814
    %v1816 = vpop.f32.mrb[0].mxu0
    %1817 = vmatprep.mubr.f32.mxu0 0.0
    %1818 = vmatmul.mubr.f32.gmra.mrb[0].mxu0 %v1720
    %v1819 = vpop.f32.mrb[0].mxu0
    %v1820 = vadd.f32 %v46, %v1819
    %v1821 = vpop.f32.mrb[0].mxu0
    %1822 = vmatprep.mubr.f32.mxu0 0.0
    %1823 = vmatmul.mubr.f32.gmra.mrb[0].mxu0 %v1723
    %v1824 = vpop.f32.mrb[0].mxu0
    %v1825 = vadd.f32 %v47, %v1824
    %v1826 = vpop.f32.mrb[0].mxu0
    %1827 = vmatprep.mubr.f32.mxu0 0.0
    %1828 = vmatmul.mubr.f32.gmra.mrb[0].mxu0 %v1726
    %v1829 = vpop.f32.mrb[0].mxu0
    %v1830 = vadd.f32 %v48, %v1829
    %v1831 = vpop.f32.mrb[0].mxu0
    %1832 = vmatprep.mubr.f32.mxu0 0.0
    %1833 = vmatmul.mubr.f32.gmra.mrb[0].mxu0 %v1729
    %v1834 = vpop.f32.mrb[0].mxu0
    %v1835 = vadd.f32 %v49, %v1834
    %v1836 = vpop.f32.mrb[0].mxu0
    %1837 = vmatprep.mubr.f32.mxu0 0.0
    %1838 = vmatmul.mubr.f32.gmra.mrb[0].mxu0 %v1732
    %v1839 = vpop.f32.mrb[0].mxu0
    %v1840 = vadd.f32 %v50, %v1839
    %v1841 = vpop.f32.mrb[0].mxu0
    %1842 = vdwg.mxu0
    %v1843 = vsel %vm326, %v1805, -inf
    %1844 = vmax.xlane.f32.xlu0 %v1843
    %v1845 = vpop.xlane.xlu0 %1844
    %v1846 = vsel %vm326, %v1810, -inf
    %1847 = vmax.xlane.f32.xlu0 %v1846
    %v1848 = vpop.xlane.xlu0 %1847
    %v1849 = vsel %vm326, %v1815, -inf
    %1850 = vmax.xlane.f32.xlu0 %v1849
    %v1851 = vpop.xlane.xlu0 %1850
    %v1852 = vsel %vm326, %v1820, -inf
    %1853 = vmax.xlane.f32.xlu0 %v1852
    %v1854 = vpop.xlane.xlu0 %1853
    %v1855 = vsel %vm326, %v1825, -inf
    %1856 = vmax.xlane.f32.xlu0 %v1855
    %v1857 = vpop.xlane.xlu0 %1856
    %v1858 = vsel %vm326, %v1830, -inf
    %1859 = vmax.xlane.f32.xlu0 %v1858
    %v1860 = vpop.xlane.xlu0 %1859
    %v1861 = vsel %vm326, %v1835, -inf
    %1862 = vmax.xlane.f32.xlu0 %v1861
    %v1863 = vpop.xlane.xlu0 %1862
    %v1864 = vsel %vm326, %v1840, -inf
    %1865 = vmax.xlane.f32.xlu0 %v1864
    %v1866 = vpop.xlane.xlu0 %1865
    %v1867 = vsub.f32 %v1805, %v1845
    %v1868 = vsub.f32 %v1810, %v1848
    %v1869 = vsub.f32 %v1815, %v1851
    %v1870 = vsub.f32 %v1820, %v1854
    %v1871 = vsub.f32 %v1825, %v1857
    %v1872 = vsub.f32 %v1830, %v1860
    %v1873 = vsub.f32 %v1835, %v1863
    %v1874 = vsub.f32 %v1840, %v1866
    %v1875 = vmul.f32 %v1867, 1.442695
    %v1876 = vpow.pop %v1875
    %v1877 = vmul.f32 %v1868, 1.442695
    %v1878 = vpow.pop %v1877
    %v1879 = vmul.f32 %v1869, 1.442695
    %v1880 = vpow.pop %v1879
    %v1881 = vmul.f32 %v1870, 1.442695
    %v1882 = vpow.pop %v1881
    %v1883 = vmul.f32 %v1871, 1.442695
    %v1884 = vpow.pop %v1883
    %v1885 = vmul.f32 %v1872, 1.442695
    %v1886 = vpow.pop %v1885
    %v1887 = vmul.f32 %v1873, 1.442695
    %v1888 = vpow.pop %v1887
    %v1889 = vmul.f32 %v1874, 1.442695
    %v1890 = vpow.pop %v1889
    %v1891 = vsel %vm326, %v1876, 0.0
    %1892 = vadd.xlane.f32.xlu0 %v1891
    %v1893 = vpop.xlane.xlu0 %1892
    %v1894 = vsel %vm326, %v1878, 0.0
    %1895 = vadd.xlane.f32.xlu0 %v1894
    %v1896 = vpop.xlane.xlu0 %1895
    %v1897 = vsel %vm326, %v1880, 0.0
    %1898 = vadd.xlane.f32.xlu0 %v1897
    %v1899 = vpop.xlane.xlu0 %1898
    %v1900 = vsel %vm326, %v1882, 0.0
    %1901 = vadd.xlane.f32.xlu0 %v1900
    %v1902 = vpop.xlane.xlu0 %1901
    %v1903 = vsel %vm326, %v1884, 0.0
    %1904 = vadd.xlane.f32.xlu0 %v1903
    %v1905 = vpop.xlane.xlu0 %1904
    %v1906 = vsel %vm326, %v1886, 0.0
    %1907 = vadd.xlane.f32.xlu0 %v1906
    %v1908 = vpop.xlane.xlu0 %1907
    %v1909 = vsel %vm326, %v1888, 0.0
    %1910 = vadd.xlane.f32.xlu0 %v1909
    %v1911 = vpop.xlane.xlu0 %1910
    %v1912 = vsel %vm326, %v1890, 0.0
    %1913 = vadd.xlane.f32.xlu0 %v1912
    %v1914 = vpop.xlane.xlu0 %1913
    %v1915 = vrcp.pop %v1893
    %v1916 = vrcp.pop %v1896
    %v1917 = vrcp.pop %v1899
    %v1918 = vrcp.pop %v1902
    %v1919 = vrcp.pop %v1905
    %v1920 = vrcp.pop %v1908
    %v1921 = vrcp.pop %v1911
    %v1922 = vrcp.pop %v1914
    %v1923 = vmul.f32 %v1876, %v1915
    %v1924 = vmul.f32 %v1878, %v1916
    %v1925 = vmul.f32 %v1880, %v1917
    %v1926 = vmul.f32 %v1882, %v1918
    %v1927 = vmul.f32 %v1884, %v1919
    %v1928 = vmul.f32 %v1886, %v1920
    %v1929 = vmul.f32 %v1888, %v1921
    %v1930 = vmul.f32 %v1890, %v1922
    %1931 = vrot.lane.b32.xlu0 %v1688, 64
    %v1932 = vpop.permute.xlu0 %1931
    %1933 = vrot.lane.b32.xlu0 %v1693, 64
    %v1934 = vpop.permute.xlu0 %1933
    %v1938 = vsel %vm326, %v1923, 0
    %v1941 = vsel %vm326, %v1924, 0
    %v1944 = vsel %vm326, %v1925, 0
    %v1947 = vsel %vm326, %v1926, 0
    %v1950 = vsel %vm326, %v1927, 0
    %v1953 = vsel %vm326, %v1928, 0
    %v1956 = vsel %vm326, %v1929, 0
    %v1959 = vsel %vm326, %v1930, 0
    %1961 = vmatprep.subr.mxu0 0.0
    %1962 = vmatpush1.msra.mxu0 %v1932
    %1963 = vmatprep.subr.mxu0 0.0
    %1964 = vmatpush1.msra.mxu0 %v1934
    %1965 = vmatprep.subr.mxu0 0.0
    %1966 = vmatpush1.msra.mxu0 0.0
    %1967 = vmatprep.subr.mxu0 0.0
    %1968 = vmatpush1.msra.mxu0 0.0
    %1969 = vmatprep.subr.mxu0 0.0
    %1970 = vmatpush1.msra.mxu0 0.0
    %1971 = vmatprep.subr.mxu0 0.0
    %1972 = vmatpush1.msra.mxu0 0.0
    %1973 = vmatprep.subr.mxu0 0.0
    %1974 = vmatpush1.msra.mxu0 0.0
    %1975 = vmatprep.subr.mxu0 0.0
    %1976 = vmatpush1.msra.mxu0 0.0
    %1977 = vmatprep.subr.mxu0 0.0
    %1978 = vmatpush1.msra.mxu0 0.0
    %1979 = vmatprep.subr.mxu0 0.0
    %1980 = vmatpush1.msra.mxu0 0.0
    %1981 = vmatprep.subr.mxu0 0.0
    %1982 = vmatpush1.msra.mxu0 0.0
    %1983 = vmatprep.subr.mxu0 0.0
    %1984 = vmatpush1.msra.mxu0 0.0
    %1985 = vmatprep.subr.mxu0 0.0
    %1986 = vmatpush1.msra.mxu0 0.0
    %1987 = vmatprep.subr.mxu0 0.0
    %1988 = vmatpush1.msra.mxu0 0.0
    %1989 = vmatprep.subr.mxu0 0.0
    %1990 = vmatpush1.msra.mxu0 0.0
    %1991 = vmatprep.subr.mxu0 0.0
    %1992 = vmatpush1.msra.mxu0 0.0
    %1993 = vmatprep.subr.mxu0 0.0
    %1994 = vmatpush1.msra.mxu0 0.0
    %1995 = vmatprep.subr.mxu0 0.0
    %1996 = vmatpush1.msra.mxu0 0.0
    %1997 = vmatprep.subr.mxu0 0.0
    %1998 = vmatpush1.msra.mxu0 0.0
    %1999 = vmatprep.subr.mxu0 0.0
    %2000 = vmatpush1.msra.mxu0 0.0
    %2001 = vmatprep.subr.mxu0 0.0
    %2002 = vmatpush1.msra.mxu0 0.0
    %2003 = vmatprep.subr.mxu0 0.0
    %2004 = vmatpush1.msra.mxu0 0.0
    %2005 = vmatprep.subr.mxu0 0.0
    %2006 = vmatpush1.msra.mxu0 0.0
    %2007 = vmatprep.subr.mxu0 0.0
    %2008 = vmatpush1.msra.mxu0 0.0
    %2009 = vmatprep.subr.mxu0 0.0
    %2010 = vmatpush1.msra.mxu0 0.0
    %2011 = vmatprep.subr.mxu0 0.0
    %2012 = vmatpush1.msra.mxu0 0.0
    %2013 = vmatprep.subr.mxu0 0.0
    %2014 = vmatpush1.msra.mxu0 0.0
    %2015 = vmatprep.subr.mxu0 0.0
    %2016 = vmatpush1.msra.mxu0 0.0
    %2017 = vmatprep.subr.mxu0 0.0
    %2018 = vmatpush1.msra.mxu0 0.0
    %2019 = vmatprep.subr.mxu0 0.0
    %2020 = vmatpush1.msra.mxu0 0.0
    %2021 = vmatprep.subr.mxu0 0.0
    %2022 = vmatpush1.msra.mxu0 0.0
    %2023 = vmatprep.subr.mxu0 0.0
    %2024 = vmatpush1.msra.mxu0 0.0
    %2025 = vmatprep.mubr.f32.mxu0 0.0
    %2026 = vmatmul.mubr.f32.gmra.mrb[0].mxu0 %v1938
    %v2027 = vpop.f32.mrb[0].mxu0
    %v2028 = vadd.f32 0.0, %v2027
    %v2029 = vpop.f32.mrb[0].mxu0
    %2030 = vmatprep.mubr.f32.mxu0 0.0
    %2031 = vmatmul.mubr.f32.gmra.mrb[0].mxu0 %v1941
    %v2032 = vpop.f32.mrb[0].mxu0
    %v2033 = vadd.f32 0.0, %v2032
    %v2034 = vpop.f32.mrb[0].mxu0
    %2035 = vmatprep.mubr.f32.mxu0 0.0
    %2036 = vmatmul.mubr.f32.gmra.mrb[0].mxu0 %v1944
    %v2037 = vpop.f32.mrb[0].mxu0
    %v2038 = vadd.f32 0.0, %v2037
    %v2039 = vpop.f32.mrb[0].mxu0
    %2040 = vmatprep.mubr.f32.mxu0 0.0
    %2041 = vmatmul.mubr.f32.gmra.mrb[0].mxu0 %v1947
    %v2042 = vpop.f32.mrb[0].mxu0
    %v2043 = vadd.f32 0.0, %v2042
    %v2044 = vpop.f32.mrb[0].mxu0
    %2045 = vmatprep.mubr.f32.mxu0 0.0
    %2046 = vmatmul.mubr.f32.gmra.mrb[0].mxu0 %v1950
    %v2047 = vpop.f32.mrb[0].mxu0
    %v2048 = vadd.f32 0.0, %v2047
    %v2049 = vpop.f32.mrb[0].mxu0
    %2050 = vmatprep.mubr.f32.mxu0 0.0
    %2051 = vmatmul.mubr.f32.gmra.mrb[0].mxu0 %v1953
    %v2052 = vpop.f32.mrb[0].mxu0
    %v2053 = vadd.f32 0.0, %v2052
    %v2054 = vpop.f32.mrb[0].mxu0
    %2055 = vmatprep.mubr.f32.mxu0 0.0
    %2056 = vmatmul.mubr.f32.gmra.mrb[0].mxu0 %v1956
    %v2057 = vpop.f32.mrb[0].mxu0
    %v2058 = vadd.f32 0.0, %v2057
    %v2059 = vpop.f32.mrb[0].mxu0
    %2060 = vmatprep.mubr.f32.mxu0 0.0
    %2061 = vmatmul.mubr.f32.gmra.mrb[0].mxu0 %v1959
    %v2062 = vpop.f32.mrb[0].mxu0
    %v2063 = vadd.f32 0.0, %v2062
    %v2064 = vpop.f32.mrb[0].mxu0
    %2065 = vdwg.mxu0
    %v2066 = vmul.f32 %v2028, %v35
    %v2067 = vmul.f32 %v2033, %v36
    %v2068 = vmul.f32 %v2038, %v37
    %v2069 = vmul.f32 %v2043, %v38
    %v2070 = vmul.f32 %v2048, %v39
    %v2071 = vmul.f32 %v2053, %v40
    %v2072 = vmul.f32 %v2058, %v41
    %v2073 = vmul.f32 %v2063, %v42
    %v2074 = vadd.f32 %v2066, %v2068
    %v2075 = vadd.f32 %v2067, %v2069
    %v2076 = vadd.f32 %v2074, %v2070
    %v2077 = vadd.f32 %v2075, %v2071
    %v2078 = vadd.f32 %v2076, %v2072
    %v2079 = vadd.f32 %v2077, %v2073
    %v2080 = vld [vmem:[%s1602 + $0x8] sm:$0xff]
    %v2081 = vld [vmem:[%s1602 + $0x38] sm:$0xff]
    %v2082 = vld [vmem:[%s1602 + $0x68] sm:$0xff]
    %v2083 = vld [vmem:[%s1602 + $0x98] sm:$0xff]
    %v2084 = vld [vmem:[%s1607 + $0x1] sm:$0x1]
    %v2086 = vlaneseq
    %v2087 = vshrl.u32 %v2086, 7
    %v2088 = vsub.s32 0, %v2087
    %v2089 = vrot.slane %v2084, %v2088
    %v2092 = vsel %vm59, %v2078, 0
    %v2095 = vsel %vm59, %v2079, 0
    %2097 = vmatprep.subr.mxu0 0.0
    %2098 = vmatpush1.msra.mxu0 %v2080
    %2099 = vmatprep.subr.mxu0 0.0
    %2100 = vmatpush1.msra.mxu0 %v2081
    %2101 = vmatprep.subr.mxu0 0.0
    %2102 = vmatpush1.msra.mxu0 %v2082
    %2103 = vmatprep.subr.mxu0 0.0
    %2104 = vmatpush1.msra.mxu0 %v2083
    %2105 = vmatprep.subr.mxu0 0.0
    %2106 = vmatpush1.msra.mxu0 0.0
    %2107 = vmatprep.subr.mxu0 0.0
    %2108 = vmatpush1.msra.mxu0 0.0
    %2109 = vmatprep.subr.mxu0 0.0
    %2110 = vmatpush1.msra.mxu0 0.0
    %2111 = vmatprep.subr.mxu0 0.0
    %2112 = vmatpush1.msra.mxu0 0.0
    %2113 = vmatprep.subr.mxu0 0.0
    %2114 = vmatpush1.msra.mxu0 0.0
    %2115 = vmatprep.subr.mxu0 0.0
    %2116 = vmatpush1.msra.mxu0 0.0
    %2117 = vmatprep.subr.mxu0 0.0
    %2118 = vmatpush1.msra.mxu0 0.0
    %2119 = vmatprep.subr.mxu0 0.0
    %2120 = vmatpush1.msra.mxu0 0.0
    %2121 = vmatprep.subr.mxu0 0.0
    %2122 = vmatpush1.msra.mxu0 0.0
    %2123 = vmatprep.subr.mxu0 0.0
    %2124 = vmatpush1.msra.mxu0 0.0
    %2125 = vmatprep.subr.mxu0 0.0
    %2126 = vmatpush1.msra.mxu0 0.0
    %2127 = vmatprep.subr.mxu0 0.0
    %2128 = vmatpush1.msra.mxu0 0.0
    %2129 = vmatprep.subr.mxu0 0.0
    %2130 = vmatpush1.msra.mxu0 0.0
    %2131 = vmatprep.subr.mxu0 0.0
    %2132 = vmatpush1.msra.mxu0 0.0
    %2133 = vmatprep.subr.mxu0 0.0
    %2134 = vmatpush1.msra.mxu0 0.0
    %2135 = vmatprep.subr.mxu0 0.0
    %2136 = vmatpush1.msra.mxu0 0.0
    %2137 = vmatprep.subr.mxu0 0.0
    %2138 = vmatpush1.msra.mxu0 0.0
    %2139 = vmatprep.subr.mxu0 0.0
    %2140 = vmatpush1.msra.mxu0 0.0
    %2141 = vmatprep.subr.mxu0 0.0
    %2142 = vmatpush1.msra.mxu0 0.0
    %2143 = vmatprep.subr.mxu0 0.0
    %2144 = vmatpush1.msra.mxu0 0.0
    %2145 = vmatprep.subr.mxu0 0.0
    %2146 = vmatpush1.msra.mxu0 0.0
    %2147 = vmatprep.subr.mxu0 0.0
    %2148 = vmatpush1.msra.mxu0 0.0
    %2149 = vmatprep.subr.mxu0 0.0
    %2150 = vmatpush1.msra.mxu0 0.0
    %2151 = vmatprep.subr.mxu0 0.0
    %2152 = vmatpush1.msra.mxu0 0.0
    %2153 = vmatprep.subr.mxu0 0.0
    %2154 = vmatpush1.msra.mxu0 0.0
    %2155 = vmatprep.subr.mxu0 0.0
    %2156 = vmatpush1.msra.mxu0 0.0
    %2157 = vmatprep.subr.mxu0 0.0
    %2158 = vmatpush1.msra.mxu0 0.0
    %2159 = vmatprep.subr.mxu0 0.0
    %2160 = vmatpush1.msra.mxu0 0.0
    %2161 = vmatprep.mubr.f32.mxu0 0.0
    %2162 = vmatmul.mubr.f32.gmra.mrb[0].mxu0 %v2092
    %v2163 = vpop.f32.mrb[0].mxu0
    %v2164 = vadd.f32 %v2089, %v2163
    %v2165 = vpop.f32.mrb[0].mxu0
    %2166 = vmatprep.mubr.f32.mxu0 0.0
    %2167 = vmatmul.mubr.f32.gmra.mrb[0].mxu0 %v2095
    %v2168 = vpop.f32.mrb[0].mxu0
    %v2169 = vadd.f32 %v2089, %v2168
    %v2170 = vpop.f32.mrb[0].mxu0
    %2171 = vdwg.mxu0
    %v2172 = vadd.f32 %v1574, %v2164
    %v2173 = vadd.f32 %v1575, %v2169
    %v2174 = vsel %vm59, %v2172, 0.0
    %2175 = vadd.xlane.f32.xlu0 %v2174
    %v2176 = vpop.xlane.xlu0 %2175
    %v2177 = vsel %vm59, %v2173, 0.0
    %2178 = vadd.xlane.f32.xlu0 %v2177
    %v2179 = vpop.xlane.xlu0 %2178
    %v2180 = vmul.f32 %v2176, %v66
    %v2181 = vmul.f32 %v2179, %v66
    %v2182 = vsub.f32 %v2172, %v2180
    %v2183 = vsub.f32 %v2173, %v2181
    %v2184 = vmul.f32 %v2182, %v2182
    %v2185 = vmul.f32 %v2183, %v2183
    %v2186 = vsel %vm59, %v2184, 0.0
    %2187 = vadd.xlane.f32.xlu0 %v2186
    %v2188 = vpop.xlane.xlu0 %2187
    %v2189 = vsel %vm59, %v2185, 0.0
    %2190 = vadd.xlane.f32.xlu0 %v2189
    %v2191 = vpop.xlane.xlu0 %2190
    %v2192 = vmul.f32 %v2188, %v66
    %v2193 = vmul.f32 %v2191, %v66
    %v2194 = vadd.f32 %v2192, 1e-05
    %v2195 = vadd.f32 %v2193, 1e-05
    %v2196 = vrsqrt.pop %v2194
    %v2197 = vrsqrt.pop %v2195
    %v2198 = vmul.f32 %v2182, %v2196
    %v2199 = vmul.f32 %v2183, %v2197
    %v2200 = vld [vmem:[%s1602 + $0x10] sm:$0xff]
    %v2201 = vld [vmem:[%s1602 + $0x40] sm:$0xff]
    %v2202 = vld [vmem:[%s1602 + $0x70] sm:$0xff]
    %v2203 = vld [vmem:[%s1602 + $0xa0] sm:$0xff]
    %v2204 = vld [vmem:[%s1607 + $0x2] sm:$0x1]
    %v2206 = vlaneseq
    %v2207 = vshrl.u32 %v2206, 7
    %v2208 = vsub.s32 0, %v2207
    %v2209 = vrot.slane %v2204, %v2208
    %v2212 = vsel %vm59, %v2198, 0
    %v2215 = vsel %vm59, %v2199, 0
    %2217 = vmatprep.subr.mxu0 0.0
    %2218 = vmatpush1.msra.mxu0 %v2200
    %2219 = vmatprep.subr.mxu0 0.0
    %2220 = vmatpush1.msra.mxu0 %v2201
    %2221 = vmatprep.subr.mxu0 0.0
    %2222 = vmatpush1.msra.mxu0 %v2202
    %2223 = vmatprep.subr.mxu0 0.0
    %2224 = vmatpush1.msra.mxu0 %v2203
    %2225 = vmatprep.subr.mxu0 0.0
    %2226 = vmatpush1.msra.mxu0 0.0
    %2227 = vmatprep.subr.mxu0 0.0
    %2228 = vmatpush1.msra.mxu0 0.0
    %2229 = vmatprep.subr.mxu0 0.0
    %2230 = vmatpush1.msra.mxu0 0.0
    %2231 = vmatprep.subr.mxu0 0.0
    %2232 = vmatpush1.msra.mxu0 0.0
    %2233 = vmatprep.subr.mxu0 0.0
    %2234 = vmatpush1.msra.mxu0 0.0
    %2235 = vmatprep.subr.mxu0 0.0
    %2236 = vmatpush1.msra.mxu0 0.0
    %2237 = vmatprep.subr.mxu0 0.0
    %2238 = vmatpush1.msra.mxu0 0.0
    %2239 = vmatprep.subr.mxu0 0.0
    %2240 = vmatpush1.msra.mxu0 0.0
    %2241 = vmatprep.subr.mxu0 0.0
    %2242 = vmatpush1.msra.mxu0 0.0
    %2243 = vmatprep.subr.mxu0 0.0
    %2244 = vmatpush1.msra.mxu0 0.0
    %2245 = vmatprep.subr.mxu0 0.0
    %2246 = vmatpush1.msra.mxu0 0.0
    %2247 = vmatprep.subr.mxu0 0.0
    %2248 = vmatpush1.msra.mxu0 0.0
    %2249 = vmatprep.subr.mxu0 0.0
    %2250 = vmatpush1.msra.mxu0 0.0
    %2251 = vmatprep.subr.mxu0 0.0
    %2252 = vmatpush1.msra.mxu0 0.0
    %2253 = vmatprep.subr.mxu0 0.0
    %2254 = vmatpush1.msra.mxu0 0.0
    %2255 = vmatprep.subr.mxu0 0.0
    %2256 = vmatpush1.msra.mxu0 0.0
    %2257 = vmatprep.subr.mxu0 0.0
    %2258 = vmatpush1.msra.mxu0 0.0
    %2259 = vmatprep.subr.mxu0 0.0
    %2260 = vmatpush1.msra.mxu0 0.0
    %2261 = vmatprep.subr.mxu0 0.0
    %2262 = vmatpush1.msra.mxu0 0.0
    %2263 = vmatprep.subr.mxu0 0.0
    %2264 = vmatpush1.msra.mxu0 0.0
    %2265 = vmatprep.subr.mxu0 0.0
    %2266 = vmatpush1.msra.mxu0 0.0
    %2267 = vmatprep.subr.mxu0 0.0
    %2268 = vmatpush1.msra.mxu0 0.0
    %2269 = vmatprep.subr.mxu0 0.0
    %2270 = vmatpush1.msra.mxu0 0.0
    %2271 = vmatprep.subr.mxu0 0.0
    %2272 = vmatpush1.msra.mxu0 0.0
    %2273 = vmatprep.subr.mxu0 0.0
    %2274 = vmatpush1.msra.mxu0 0.0
    %2275 = vmatprep.subr.mxu0 0.0
    %2276 = vmatpush1.msra.mxu0 0.0
    %2277 = vmatprep.subr.mxu0 0.0
    %2278 = vmatpush1.msra.mxu0 0.0
    %2279 = vmatprep.subr.mxu0 0.0
    %2280 = vmatpush1.msra.mxu0 0.0
    %2281 = vmatprep.mubr.f32.mxu0 0.0
    %2282 = vmatmul.mubr.f32.gmra.mrb[0].mxu0 %v2212
    %v2283 = vpop.f32.mrb[0].mxu0
    %v2284 = vadd.f32 %v2209, %v2283
    %v2285 = vpop.f32.mrb[0].mxu0
    %2286 = vmatprep.mubr.f32.mxu0 0.0
    %2287 = vmatmul.mubr.f32.gmra.mrb[0].mxu0 %v2215
    %v2288 = vpop.f32.mrb[0].mxu0
    %v2289 = vadd.f32 %v2209, %v2288
    %v2290 = vpop.f32.mrb[0].mxu0
    %2291 = vdwg.mxu0
    %v2292 = vld [vmem:[%s1602 + $0x18] sm:$0xff]
    %v2293 = vld [vmem:[%s1602 + $0x48] sm:$0xff]
    %v2294 = vld [vmem:[%s1602 + $0x78] sm:$0xff]
    %v2295 = vld [vmem:[%s1602 + $0xa8] sm:$0xff]
    %v2296 = vld [vmem:[%s1607 + $0x3] sm:$0x1]
    %v2298 = vlaneseq
    %v2299 = vshrl.u32 %v2298, 7
    %v2300 = vsub.s32 0, %v2299
    %v2301 = vrot.slane %v2296, %v2300
    %2303 = vmatprep.subr.mxu0 0.0
    %2304 = vmatpush1.msra.mxu0 %v2292
    %2305 = vmatprep.subr.mxu0 0.0
    %2306 = vmatpush1.msra.mxu0 %v2293
    %2307 = vmatprep.subr.mxu0 0.0
    %2308 = vmatpush1.msra.mxu0 %v2294
    %2309 = vmatprep.subr.mxu0 0.0
    %2310 = vmatpush1.msra.mxu0 %v2295
    %2311 = vmatprep.subr.mxu0 0.0
    %2312 = vmatpush1.msra.mxu0 0.0
    %2313 = vmatprep.subr.mxu0 0.0
    %2314 = vmatpush1.msra.mxu0 0.0
    %2315 = vmatprep.subr.mxu0 0.0
    %2316 = vmatpush1.msra.mxu0 0.0
    %2317 = vmatprep.subr.mxu0 0.0
    %2318 = vmatpush1.msra.mxu0 0.0
    %2319 = vmatprep.subr.mxu0 0.0
    %2320 = vmatpush1.msra.mxu0 0.0
    %2321 = vmatprep.subr.mxu0 0.0
    %2322 = vmatpush1.msra.mxu0 0.0
    %2323 = vmatprep.subr.mxu0 0.0
    %2324 = vmatpush1.msra.mxu0 0.0
    %2325 = vmatprep.subr.mxu0 0.0
    %2326 = vmatpush1.msra.mxu0 0.0
    %2327 = vmatprep.subr.mxu0 0.0
    %2328 = vmatpush1.msra.mxu0 0.0
    %2329 = vmatprep.subr.mxu0 0.0
    %2330 = vmatpush1.msra.mxu0 0.0
    %2331 = vmatprep.subr.mxu0 0.0
    %2332 = vmatpush1.msra.mxu0 0.0
    %2333 = vmatprep.subr.mxu0 0.0
    %2334 = vmatpush1.msra.mxu0 0.0
    %2335 = vmatprep.subr.mxu0 0.0
    %2336 = vmatpush1.msra.mxu0 0.0
    %2337 = vmatprep.subr.mxu0 0.0
    %2338 = vmatpush1.msra.mxu0 0.0
    %2339 = vmatprep.subr.mxu0 0.0
    %2340 = vmatpush1.msra.mxu0 0.0
    %2341 = vmatprep.subr.mxu0 0.0
    %2342 = vmatpush1.msra.mxu0 0.0
    %2343 = vmatprep.subr.mxu0 0.0
    %2344 = vmatpush1.msra.mxu0 0.0
    %2345 = vmatprep.subr.mxu0 0.0
    %2346 = vmatpush1.msra.mxu0 0.0
    %2347 = vmatprep.subr.mxu0 0.0
    %2348 = vmatpush1.msra.mxu0 0.0
    %2349 = vmatprep.subr.mxu0 0.0
    %2350 = vmatpush1.msra.mxu0 0.0
    %2351 = vmatprep.subr.mxu0 0.0
    %2352 = vmatpush1.msra.mxu0 0.0
    %2353 = vmatprep.subr.mxu0 0.0
    %2354 = vmatpush1.msra.mxu0 0.0
    %2355 = vmatprep.subr.mxu0 0.0
    %2356 = vmatpush1.msra.mxu0 0.0
    %2357 = vmatprep.subr.mxu0 0.0
    %2358 = vmatpush1.msra.mxu0 0.0
    %2359 = vmatprep.subr.mxu0 0.0
    %2360 = vmatpush1.msra.mxu0 0.0
    %2361 = vmatprep.subr.mxu0 0.0
    %2362 = vmatpush1.msra.mxu0 0.0
    %2363 = vmatprep.subr.mxu0 0.0
    %2364 = vmatpush1.msra.mxu0 0.0
    %2365 = vmatprep.subr.mxu0 0.0
    %2366 = vmatpush1.msra.mxu0 0.0
    %2367 = vmatprep.mubr.f32.mxu0 0.0
    %2368 = vmatmul.mubr.f32.gmra.mrb[0].mxu0 %v788
    %v2369 = vpop.f32.mrb[0].mxu0
    %v2370 = vadd.f32 %v2301, %v2369
    %v2371 = vpop.f32.mrb[0].mxu0
    %2372 = vmatprep.mubr.f32.mxu0 0.0
    %2373 = vmatmul.mubr.f32.gmra.mrb[0].mxu0 %v791
    %v2374 = vpop.f32.mrb[0].mxu0
    %v2375 = vadd.f32 %v2301, %v2374
    %v2376 = vpop.f32.mrb[0].mxu0
    %2377 = vmatprep.mubr.f32.mxu0 0.0
    %2378 = vmatmul.mubr.f32.gmra.mrb[0].mxu0 %v794
    %v2379 = vpop.f32.mrb[0].mxu0
    %v2380 = vadd.f32 %v2301, %v2379
    %v2381 = vpop.f32.mrb[0].mxu0
    %2382 = vdwg.mxu0
    %v2383 = vmul.f32 %v2284, %v35
    %v2384 = vmul.f32 %v2289, %v36
    %v2385 = vmul.f32 %v2284, %v37
    %v2386 = vmul.f32 %v2289, %v38
    %v2387 = vmul.f32 %v2284, %v39
    %v2388 = vmul.f32 %v2289, %v40
    %v2389 = vmul.f32 %v2284, %v41
    %v2390 = vmul.f32 %v2289, %v42
    %v2392 = vsel %vm59, %v2383, 0
    %v2395 = vsel %vm59, %v2384, 0
    %v2398 = vsel %vm59, %v2385, 0
    %v2401 = vsel %vm59, %v2386, 0
    %v2404 = vsel %vm59, %v2387, 0
    %v2407 = vsel %vm59, %v2388, 0
    %v2410 = vsel %vm59, %v2389, 0
    %v2413 = vsel %vm59, %v2390, 0
    %v2416 = vsel %vm59, %v2370, 0
    %v2419 = vsel %vm59, %v2375, 0
    %v2422 = vsel %vm59, %v2380, 0
    %2424 = vmatprep.subr.mxu0 0.0
    %2425 = vmatpush1.xpose.msra.mxu0 %v2416
    %2426 = vmatprep.subr.mxu0 0.0
    %2427 = vmatpush1.xpose.msra.mxu0 %v2419
    %2428 = vmatprep.subr.mxu0 0.0
    %2429 = vmatpush1.xpose.msra.mxu0 %v2422
    %2430 = vmatprep.subr.mxu0 0.0
    %2431 = vmatpush1.xpose.msra.mxu0 0.0
    %2432 = vmatprep.subr.mxu0 0.0
    %2433 = vmatpush1.xpose.msra.mxu0 0.0
    %2434 = vmatprep.subr.mxu0 0.0
    %2435 = vmatpush1.xpose.msra.mxu0 0.0
    %2436 = vmatprep.subr.mxu0 0.0
    %2437 = vmatpush1.xpose.msra.mxu0 0.0
    %2438 = vmatprep.subr.mxu0 0.0
    %2439 = vmatpush1.xpose.msra.mxu0 0.0
    %2440 = vmatprep.subr.mxu0 0.0
    %2441 = vmatpush1.xpose.msra.mxu0 0.0
    %2442 = vmatprep.subr.mxu0 0.0
    %2443 = vmatpush1.xpose.msra.mxu0 0.0
    %2444 = vmatprep.subr.mxu0 0.0
    %2445 = vmatpush1.xpose.msra.mxu0 0.0
    %2446 = vmatprep.subr.mxu0 0.0
    %2447 = vmatpush1.xpose.msra.mxu0 0.0
    %2448 = vmatprep.subr.mxu0 0.0
    %2449 = vmatpush1.xpose.msra.mxu0 0.0
    %2450 = vmatprep.subr.mxu0 0.0
    %2451 = vmatpush1.xpose.msra.mxu0 0.0
    %2452 = vmatprep.subr.mxu0 0.0
    %2453 = vmatpush1.xpose.msra.mxu0 0.0
    %2454 = vmatprep.subr.mxu0 0.0
    %2455 = vmatpush1.xpose.msra.mxu0 0.0
    %2456 = vmatprep.subr.mxu0 0.0
    %2457 = vmatpush1.xpose.msra.mxu0 0.0
    %2458 = vmatprep.subr.mxu0 0.0
    %2459 = vmatpush1.xpose.msra.mxu0 0.0
    %2460 = vmatprep.subr.mxu0 0.0
    %2461 = vmatpush1.xpose.msra.mxu0 0.0
    %2462 = vmatprep.subr.mxu0 0.0
    %2463 = vmatpush1.xpose.msra.mxu0 0.0
    %2464 = vmatprep.subr.mxu0 0.0
    %2465 = vmatpush1.xpose.msra.mxu0 0.0
    %2466 = vmatprep.subr.mxu0 0.0
    %2467 = vmatpush1.xpose.msra.mxu0 0.0
    %2468 = vmatprep.subr.mxu0 0.0
    %2469 = vmatpush1.xpose.msra.mxu0 0.0
    %2470 = vmatprep.subr.mxu0 0.0
    %2471 = vmatpush1.xpose.msra.mxu0 0.0
    %2472 = vmatprep.subr.mxu0 0.0
    %2473 = vmatpush1.xpose.msra.mxu0 0.0
    %2474 = vmatprep.subr.mxu0 0.0
    %2475 = vmatpush1.xpose.msra.mxu0 0.0
    %2476 = vmatprep.subr.mxu0 0.0
    %2477 = vmatpush1.xpose.msra.mxu0 0.0
    %2478 = vmatprep.subr.mxu0 0.0
    %2479 = vmatpush1.xpose.msra.mxu0 0.0
    %2480 = vmatprep.subr.mxu0 0.0
    %2481 = vmatpush1.xpose.msra.mxu0 0.0
    %2482 = vmatprep.subr.mxu0 0.0
    %2483 = vmatpush1.xpose.msra.mxu0 0.0
    %2484 = vmatprep.subr.mxu0 0.0
    %2485 = vmatpush1.xpose.msra.mxu0 0.0
    %2486 = vmatprep.subr.mxu0 0.0
    %2487 = vmatpush1.xpose.msra.mxu0 0.0
    %2488 = vmatprep.mubr.f32.mxu0 0.0
    %2489 = vmatmul.mubr.f32.gmra.mrb[0].mxu0 %v2392
    %v2490 = vpop.f32.mrb[0].mxu0
    %v2491 = vadd.f32 %v51, %v2490
    %v2492 = vpop.f32.mrb[0].mxu0
    %2493 = vmatprep.mubr.f32.mxu0 0.0
    %2494 = vmatmul.mubr.f32.gmra.mrb[0].mxu0 %v2395
    %v2495 = vpop.f32.mrb[0].mxu0
    %v2496 = vadd.f32 %v52, %v2495
    %v2497 = vpop.f32.mrb[0].mxu0
    %2498 = vmatprep.mubr.f32.mxu0 0.0
    %2499 = vmatmul.mubr.f32.gmra.mrb[0].mxu0 %v2398
    %v2500 = vpop.f32.mrb[0].mxu0
    %v2501 = vadd.f32 %v53, %v2500
    %v2502 = vpop.f32.mrb[0].mxu0
    %2503 = vmatprep.mubr.f32.mxu0 0.0
    %2504 = vmatmul.mubr.f32.gmra.mrb[0].mxu0 %v2401
    %v2505 = vpop.f32.mrb[0].mxu0
    %v2506 = vadd.f32 %v54, %v2505
    %v2507 = vpop.f32.mrb[0].mxu0
    %2508 = vmatprep.mubr.f32.mxu0 0.0
    %2509 = vmatmul.mubr.f32.gmra.mrb[0].mxu0 %v2404
    %v2510 = vpop.f32.mrb[0].mxu0
    %v2511 = vadd.f32 %v55, %v2510
    %v2512 = vpop.f32.mrb[0].mxu0
    %2513 = vmatprep.mubr.f32.mxu0 0.0
    %2514 = vmatmul.mubr.f32.gmra.mrb[0].mxu0 %v2407
    %v2515 = vpop.f32.mrb[0].mxu0
    %v2516 = vadd.f32 %v56, %v2515
    %v2517 = vpop.f32.mrb[0].mxu0
    %2518 = vmatprep.mubr.f32.mxu0 0.0
    %2519 = vmatmul.mubr.f32.gmra.mrb[0].mxu0 %v2410
    %v2520 = vpop.f32.mrb[0].mxu0
    %v2521 = vadd.f32 %v57, %v2520
    %v2522 = vpop.f32.mrb[0].mxu0
    %2523 = vmatprep.mubr.f32.mxu0 0.0
    %2524 = vmatmul.mubr.f32.gmra.mrb[0].mxu0 %v2413
    %v2525 = vpop.f32.mrb[0].mxu0
    %v2526 = vadd.f32 %v58, %v2525
    %v2527 = vpop.f32.mrb[0].mxu0
    %2528 = vdwg.mxu0
    %v2529 = vsel %vm1022, %v2491, -inf
    %2530 = vmax.xlane.f32.xlu0 %v2529
    %v2531 = vpop.xlane.xlu0 %2530
    %v2532 = vsel %vm1022, %v2496, -inf
    %2533 = vmax.xlane.f32.xlu0 %v2532
    %v2534 = vpop.xlane.xlu0 %2533
    %v2535 = vsel %vm1022, %v2501, -inf
    %2536 = vmax.xlane.f32.xlu0 %v2535
    %v2537 = vpop.xlane.xlu0 %2536
    %v2538 = vsel %vm1022, %v2506, -inf
    %2539 = vmax.xlane.f32.xlu0 %v2538
    %v2540 = vpop.xlane.xlu0 %2539
    %v2541 = vsel %vm1022, %v2511, -inf
    %2542 = vmax.xlane.f32.xlu0 %v2541
    %v2543 = vpop.xlane.xlu0 %2542
    %v2544 = vsel %vm1022, %v2516, -inf
    %2545 = vmax.xlane.f32.xlu0 %v2544
    %v2546 = vpop.xlane.xlu0 %2545
    %v2547 = vsel %vm1022, %v2521, -inf
    %2548 = vmax.xlane.f32.xlu0 %v2547
    %v2549 = vpop.xlane.xlu0 %2548
    %v2550 = vsel %vm1022, %v2526, -inf
    %2551 = vmax.xlane.f32.xlu0 %v2550
    %v2552 = vpop.xlane.xlu0 %2551
    %v2553 = vsub.f32 %v2491, %v2531
    %v2554 = vsub.f32 %v2496, %v2534
    %v2555 = vsub.f32 %v2501, %v2537
    %v2556 = vsub.f32 %v2506, %v2540
    %v2557 = vsub.f32 %v2511, %v2543
    %v2558 = vsub.f32 %v2516, %v2546
    %v2559 = vsub.f32 %v2521, %v2549
    %v2560 = vsub.f32 %v2526, %v2552
    %v2561 = vmul.f32 %v2553, 1.442695
    %v2562 = vpow.pop %v2561
    %v2563 = vmul.f32 %v2554, 1.442695
    %v2564 = vpow.pop %v2563
    %v2565 = vmul.f32 %v2555, 1.442695
    %v2566 = vpow.pop %v2565
    %v2567 = vmul.f32 %v2556, 1.442695
    %v2568 = vpow.pop %v2567
    %v2569 = vmul.f32 %v2557, 1.442695
    %v2570 = vpow.pop %v2569
    %v2571 = vmul.f32 %v2558, 1.442695
    %v2572 = vpow.pop %v2571
    %v2573 = vmul.f32 %v2559, 1.442695
    %v2574 = vpow.pop %v2573
    %v2575 = vmul.f32 %v2560, 1.442695
    %v2576 = vpow.pop %v2575
    %v2577 = vsel %vm1022, %v2562, 0.0
    %2578 = vadd.xlane.f32.xlu0 %v2577
    %v2579 = vpop.xlane.xlu0 %2578
    %v2580 = vsel %vm1022, %v2564, 0.0
    %2581 = vadd.xlane.f32.xlu0 %v2580
    %v2582 = vpop.xlane.xlu0 %2581
    %v2583 = vsel %vm1022, %v2566, 0.0
    %2584 = vadd.xlane.f32.xlu0 %v2583
    %v2585 = vpop.xlane.xlu0 %2584
    %v2586 = vsel %vm1022, %v2568, 0.0
    %2587 = vadd.xlane.f32.xlu0 %v2586
    %v2588 = vpop.xlane.xlu0 %2587
    %v2589 = vsel %vm1022, %v2570, 0.0
    %2590 = vadd.xlane.f32.xlu0 %v2589
    %v2591 = vpop.xlane.xlu0 %2590
    %v2592 = vsel %vm1022, %v2572, 0.0
    %2593 = vadd.xlane.f32.xlu0 %v2592
    %v2594 = vpop.xlane.xlu0 %2593
    %v2595 = vsel %vm1022, %v2574, 0.0
    %2596 = vadd.xlane.f32.xlu0 %v2595
    %v2597 = vpop.xlane.xlu0 %2596
    %v2598 = vsel %vm1022, %v2576, 0.0
    %2599 = vadd.xlane.f32.xlu0 %v2598
    %v2600 = vpop.xlane.xlu0 %2599
    %v2601 = vrcp.pop %v2579
    %v2602 = vrcp.pop %v2582
    %v2603 = vrcp.pop %v2585
    %v2604 = vrcp.pop %v2588
    %v2605 = vrcp.pop %v2591
    %v2606 = vrcp.pop %v2594
    %v2607 = vrcp.pop %v2597
    %v2608 = vrcp.pop %v2600
    %v2609 = vmul.f32 %v2562, %v2601
    %v2610 = vmul.f32 %v2564, %v2602
    %v2611 = vmul.f32 %v2566, %v2603
    %v2612 = vmul.f32 %v2568, %v2604
    %v2613 = vmul.f32 %v2570, %v2605
    %v2614 = vmul.f32 %v2572, %v2606
    %v2615 = vmul.f32 %v2574, %v2607
    %v2616 = vmul.f32 %v2576, %v2608
    %2617 = vrot.lane.b32.xlu0 %v2370, 96
    %v2618 = vpop.permute.xlu0 %2617
    %2619 = vrot.lane.b32.xlu0 %v2375, 96
    %v2620 = vpop.permute.xlu0 %2619
    %2621 = vrot.lane.b32.xlu0 %v2380, 96
    %v2622 = vpop.permute.xlu0 %2621
    %v2627 = vsel %vm1022, %v2609, 0
    %v2630 = vsel %vm1022, %v2610, 0
    %v2633 = vsel %vm1022, %v2611, 0
    %v2636 = vsel %vm1022, %v2612, 0
    %v2639 = vsel %vm1022, %v2613, 0
    %v2642 = vsel %vm1022, %v2614, 0
    %v2645 = vsel %vm1022, %v2615, 0
    %v2648 = vsel %vm1022, %v2616, 0
    %2650 = vmatprep.subr.mxu0 0.0
    %2651 = vmatpush1.msra.mxu0 %v2618
    %2652 = vmatprep.subr.mxu0 0.0
    %2653 = vmatpush1.msra.mxu0 %v2620
    %2654 = vmatprep.subr.mxu0 0.0
    %2655 = vmatpush1.msra.mxu0 %v2622
    %2656 = vmatprep.subr.mxu0 0.0
    %2657 = vmatpush1.msra.mxu0 0.0
    %2658 = vmatprep.subr.mxu0 0.0
    %2659 = vmatpush1.msra.mxu0 0.0
    %2660 = vmatprep.subr.mxu0 0.0
    %2661 = vmatpush1.msra.mxu0 0.0
    %2662 = vmatprep.subr.mxu0 0.0
    %2663 = vmatpush1.msra.mxu0 0.0
    %2664 = vmatprep.subr.mxu0 0.0
    %2665 = vmatpush1.msra.mxu0 0.0
    %2666 = vmatprep.subr.mxu0 0.0
    %2667 = vmatpush1.msra.mxu0 0.0
    %2668 = vmatprep.subr.mxu0 0.0
    %2669 = vmatpush1.msra.mxu0 0.0
    %2670 = vmatprep.subr.mxu0 0.0
    %2671 = vmatpush1.msra.mxu0 0.0
    %2672 = vmatprep.subr.mxu0 0.0
    %2673 = vmatpush1.msra.mxu0 0.0
    %2674 = vmatprep.subr.mxu0 0.0
    %2675 = vmatpush1.msra.mxu0 0.0
    %2676 = vmatprep.subr.mxu0 0.0
    %2677 = vmatpush1.msra.mxu0 0.0
    %2678 = vmatprep.subr.mxu0 0.0
    %2679 = vmatpush1.msra.mxu0 0.0
    %2680 = vmatprep.subr.mxu0 0.0
    %2681 = vmatpush1.msra.mxu0 0.0
    %2682 = vmatprep.subr.mxu0 0.0
    %2683 = vmatpush1.msra.mxu0 0.0
    %2684 = vmatprep.subr.mxu0 0.0
    %2685 = vmatpush1.msra.mxu0 0.0
    %2686 = vmatprep.subr.mxu0 0.0
    %2687 = vmatpush1.msra.mxu0 0.0
    %2688 = vmatprep.subr.mxu0 0.0
    %2689 = vmatpush1.msra.mxu0 0.0
    %2690 = vmatprep.subr.mxu0 0.0
    %2691 = vmatpush1.msra.mxu0 0.0
    %2692 = vmatprep.subr.mxu0 0.0
    %2693 = vmatpush1.msra.mxu0 0.0
    %2694 = vmatprep.subr.mxu0 0.0
    %2695 = vmatpush1.msra.mxu0 0.0
    %2696 = vmatprep.subr.mxu0 0.0
    %2697 = vmatpush1.msra.mxu0 0.0
    %2698 = vmatprep.subr.mxu0 0.0
    %2699 = vmatpush1.msra.mxu0 0.0
    %2700 = vmatprep.subr.mxu0 0.0
    %2701 = vmatpush1.msra.mxu0 0.0
    %2702 = vmatprep.subr.mxu0 0.0
    %2703 = vmatpush1.msra.mxu0 0.0
    %2704 = vmatprep.subr.mxu0 0.0
    %2705 = vmatpush1.msra.mxu0 0.0
    %2706 = vmatprep.subr.mxu0 0.0
    %2707 = vmatpush1.msra.mxu0 0.0
    %2708 = vmatprep.subr.mxu0 0.0
    %2709 = vmatpush1.msra.mxu0 0.0
    %2710 = vmatprep.subr.mxu0 0.0
    %2711 = vmatpush1.msra.mxu0 0.0
    %2712 = vmatprep.subr.mxu0 0.0
    %2713 = vmatpush1.msra.mxu0 0.0
    %2714 = vmatprep.mubr.f32.mxu0 0.0
    %2715 = vmatmul.mubr.f32.gmra.mrb[0].mxu0 %v2627
    %v2716 = vpop.f32.mrb[0].mxu0
    %v2717 = vadd.f32 0.0, %v2716
    %v2718 = vpop.f32.mrb[0].mxu0
    %2719 = vmatprep.mubr.f32.mxu0 0.0
    %2720 = vmatmul.mubr.f32.gmra.mrb[0].mxu0 %v2630
    %v2721 = vpop.f32.mrb[0].mxu0
    %v2722 = vadd.f32 0.0, %v2721
    %v2723 = vpop.f32.mrb[0].mxu0
    %2724 = vmatprep.mubr.f32.mxu0 0.0
    %2725 = vmatmul.mubr.f32.gmra.mrb[0].mxu0 %v2633
    %v2726 = vpop.f32.mrb[0].mxu0
    %v2727 = vadd.f32 0.0, %v2726
    %v2728 = vpop.f32.mrb[0].mxu0
    %2729 = vmatprep.mubr.f32.mxu0 0.0
    %2730 = vmatmul.mubr.f32.gmra.mrb[0].mxu0 %v2636
    %v2731 = vpop.f32.mrb[0].mxu0
    %v2732 = vadd.f32 0.0, %v2731
    %v2733 = vpop.f32.mrb[0].mxu0
    %2734 = vmatprep.mubr.f32.mxu0 0.0
    %2735 = vmatmul.mubr.f32.gmra.mrb[0].mxu0 %v2639
    %v2736 = vpop.f32.mrb[0].mxu0
    %v2737 = vadd.f32 0.0, %v2736
    %v2738 = vpop.f32.mrb[0].mxu0
    %2739 = vmatprep.mubr.f32.mxu0 0.0
    %2740 = vmatmul.mubr.f32.gmra.mrb[0].mxu0 %v2642
    %v2741 = vpop.f32.mrb[0].mxu0
    %v2742 = vadd.f32 0.0, %v2741
    %v2743 = vpop.f32.mrb[0].mxu0
    %2744 = vmatprep.mubr.f32.mxu0 0.0
    %2745 = vmatmul.mubr.f32.gmra.mrb[0].mxu0 %v2645
    %v2746 = vpop.f32.mrb[0].mxu0
    %v2747 = vadd.f32 0.0, %v2746
    %v2748 = vpop.f32.mrb[0].mxu0
    %2749 = vmatprep.mubr.f32.mxu0 0.0
    %2750 = vmatmul.mubr.f32.gmra.mrb[0].mxu0 %v2648
    %v2751 = vpop.f32.mrb[0].mxu0
    %v2752 = vadd.f32 0.0, %v2751
    %v2753 = vpop.f32.mrb[0].mxu0
    %2754 = vdwg.mxu0
    %v2755 = vmul.f32 %v2717, %v35
    %v2756 = vmul.f32 %v2722, %v36
    %v2757 = vmul.f32 %v2727, %v37
    %v2758 = vmul.f32 %v2732, %v38
    %v2759 = vmul.f32 %v2737, %v39
    %v2760 = vmul.f32 %v2742, %v40
    %v2761 = vmul.f32 %v2747, %v41
    %v2762 = vmul.f32 %v2752, %v42
    %v2763 = vadd.f32 %v2755, %v2757
    %v2764 = vadd.f32 %v2756, %v2758
    %v2765 = vadd.f32 %v2763, %v2759
    %v2766 = vadd.f32 %v2764, %v2760
    %v2767 = vadd.f32 %v2765, %v2761
    %v2768 = vadd.f32 %v2766, %v2762
    %v2769 = vld [vmem:[%s1602 + $0x20] sm:$0xff]
    %v2770 = vld [vmem:[%s1602 + $0x50] sm:$0xff]
    %v2771 = vld [vmem:[%s1602 + $0x80] sm:$0xff]
    %v2772 = vld [vmem:[%s1602 + $0xb0] sm:$0xff]
    %v2773 = vld [vmem:[%s1607 + $0x4] sm:$0x1]
    %v2775 = vlaneseq
    %v2776 = vshrl.u32 %v2775, 7
    %v2777 = vsub.s32 0, %v2776
    %v2778 = vrot.slane %v2773, %v2777
    %v2781 = vsel %vm59, %v2767, 0
    %v2784 = vsel %vm59, %v2768, 0
    %2786 = vmatprep.subr.mxu0 0.0
    %2787 = vmatpush1.msra.mxu0 %v2769
    %2788 = vmatprep.subr.mxu0 0.0
    %2789 = vmatpush1.msra.mxu0 %v2770
    %2790 = vmatprep.subr.mxu0 0.0
    %2791 = vmatpush1.msra.mxu0 %v2771
    %2792 = vmatprep.subr.mxu0 0.0
    %2793 = vmatpush1.msra.mxu0 %v2772
    %2794 = vmatprep.subr.mxu0 0.0
    %2795 = vmatpush1.msra.mxu0 0.0
    %2796 = vmatprep.subr.mxu0 0.0
    %2797 = vmatpush1.msra.mxu0 0.0
    %2798 = vmatprep.subr.mxu0 0.0
    %2799 = vmatpush1.msra.mxu0 0.0
    %2800 = vmatprep.subr.mxu0 0.0
    %2801 = vmatpush1.msra.mxu0 0.0
    %2802 = vmatprep.subr.mxu0 0.0
    %2803 = vmatpush1.msra.mxu0 0.0
    %2804 = vmatprep.subr.mxu0 0.0
    %2805 = vmatpush1.msra.mxu0 0.0
    %2806 = vmatprep.subr.mxu0 0.0
    %2807 = vmatpush1.msra.mxu0 0.0
    %2808 = vmatprep.subr.mxu0 0.0
    %2809 = vmatpush1.msra.mxu0 0.0
    %2810 = vmatprep.subr.mxu0 0.0
    %2811 = vmatpush1.msra.mxu0 0.0
    %2812 = vmatprep.subr.mxu0 0.0
    %2813 = vmatpush1.msra.mxu0 0.0
    %2814 = vmatprep.subr.mxu0 0.0
    %2815 = vmatpush1.msra.mxu0 0.0
    %2816 = vmatprep.subr.mxu0 0.0
    %2817 = vmatpush1.msra.mxu0 0.0
    %2818 = vmatprep.subr.mxu0 0.0
    %2819 = vmatpush1.msra.mxu0 0.0
    %2820 = vmatprep.subr.mxu0 0.0
    %2821 = vmatpush1.msra.mxu0 0.0
    %2822 = vmatprep.subr.mxu0 0.0
    %2823 = vmatpush1.msra.mxu0 0.0
    %2824 = vmatprep.subr.mxu0 0.0
    %2825 = vmatpush1.msra.mxu0 0.0
    %2826 = vmatprep.subr.mxu0 0.0
    %2827 = vmatpush1.msra.mxu0 0.0
    %2828 = vmatprep.subr.mxu0 0.0
    %2829 = vmatpush1.msra.mxu0 0.0
    %2830 = vmatprep.subr.mxu0 0.0
    %2831 = vmatpush1.msra.mxu0 0.0
    %2832 = vmatprep.subr.mxu0 0.0
    %2833 = vmatpush1.msra.mxu0 0.0
    %2834 = vmatprep.subr.mxu0 0.0
    %2835 = vmatpush1.msra.mxu0 0.0
    %2836 = vmatprep.subr.mxu0 0.0
    %2837 = vmatpush1.msra.mxu0 0.0
    %2838 = vmatprep.subr.mxu0 0.0
    %2839 = vmatpush1.msra.mxu0 0.0
    %2840 = vmatprep.subr.mxu0 0.0
    %2841 = vmatpush1.msra.mxu0 0.0
    %2842 = vmatprep.subr.mxu0 0.0
    %2843 = vmatpush1.msra.mxu0 0.0
    %2844 = vmatprep.subr.mxu0 0.0
    %2845 = vmatpush1.msra.mxu0 0.0
    %2846 = vmatprep.subr.mxu0 0.0
    %2847 = vmatpush1.msra.mxu0 0.0
    %2848 = vmatprep.subr.mxu0 0.0
    %2849 = vmatpush1.msra.mxu0 0.0
    %2850 = vmatprep.mubr.f32.mxu0 0.0
    %2851 = vmatmul.mubr.f32.gmra.mrb[0].mxu0 %v2781
    %v2852 = vpop.f32.mrb[0].mxu0
    %v2853 = vadd.f32 %v2778, %v2852
    %v2854 = vpop.f32.mrb[0].mxu0
    %2855 = vmatprep.mubr.f32.mxu0 0.0
    %2856 = vmatmul.mubr.f32.gmra.mrb[0].mxu0 %v2784
    %v2857 = vpop.f32.mrb[0].mxu0
    %v2858 = vadd.f32 %v2778, %v2857
    %v2859 = vpop.f32.mrb[0].mxu0
    %2860 = vdwg.mxu0
    %v2861 = vadd.f32 %v2172, %v2853
    %v2862 = vadd.f32 %v2173, %v2858
    %v2863 = vsel %vm59, %v2861, 0.0
    %2864 = vadd.xlane.f32.xlu0 %v2863
    %v2865 = vpop.xlane.xlu0 %2864
    %v2866 = vsel %vm59, %v2862, 0.0
    %2867 = vadd.xlane.f32.xlu0 %v2866
    %v2868 = vpop.xlane.xlu0 %2867
    %v2869 = vmul.f32 %v2865, %v66
    %v2870 = vmul.f32 %v2868, %v66
    %v2871 = vsub.f32 %v2861, %v2869
    %v2872 = vsub.f32 %v2862, %v2870
    %v2873 = vmul.f32 %v2871, %v2871
    %v2874 = vmul.f32 %v2872, %v2872
    %v2875 = vsel %vm59, %v2873, 0.0
    %2876 = vadd.xlane.f32.xlu0 %v2875
    %v2877 = vpop.xlane.xlu0 %2876
    %v2878 = vsel %vm59, %v2874, 0.0
    %2879 = vadd.xlane.f32.xlu0 %v2878
    %v2880 = vpop.xlane.xlu0 %2879
    %v2881 = vmul.f32 %v2877, %v66
    %v2882 = vmul.f32 %v2880, %v66
    %v2883 = vadd.f32 %v2881, 1e-05
    %v2884 = vadd.f32 %v2882, 1e-05
    %v2885 = vrsqrt.pop %v2883
    %v2886 = vrsqrt.pop %v2884
    %v2887 = vmul.f32 %v2871, %v2885
    %v2888 = vmul.f32 %v2872, %v2886
    %v2889 = vld [vmem:[%s1602 + $0x28] sm:$0xff]
    %v2890 = vld [vmem:[%s1602 + $0x58] sm:$0xff]
    %v2891 = vld [vmem:[%s1602 + $0x88] sm:$0xff]
    %v2892 = vld [vmem:[%s1602 + $0xb8] sm:$0xff]
    %v2893 = vld [vmem:[%s1607 + $0x5] sm:$0x1]
    %v2895 = vlaneseq
    %v2896 = vshrl.u32 %v2895, 7
    %v2897 = vsub.s32 0, %v2896
    %v2898 = vrot.slane %v2893, %v2897
    %v2901 = vsel %vm59, %v2887, 0
    %v2904 = vsel %vm59, %v2888, 0
    %2906 = vmatprep.subr.mxu0 0.0
    %2907 = vmatpush1.msra.mxu0 %v2889
    %2908 = vmatprep.subr.mxu0 0.0
    %2909 = vmatpush1.msra.mxu0 %v2890
    %2910 = vmatprep.subr.mxu0 0.0
    %2911 = vmatpush1.msra.mxu0 %v2891
    %2912 = vmatprep.subr.mxu0 0.0
    %2913 = vmatpush1.msra.mxu0 %v2892
    %2914 = vmatprep.subr.mxu0 0.0
    %2915 = vmatpush1.msra.mxu0 0.0
    %2916 = vmatprep.subr.mxu0 0.0
    %2917 = vmatpush1.msra.mxu0 0.0
    %2918 = vmatprep.subr.mxu0 0.0
    %2919 = vmatpush1.msra.mxu0 0.0
    %2920 = vmatprep.subr.mxu0 0.0
    %2921 = vmatpush1.msra.mxu0 0.0
    %2922 = vmatprep.subr.mxu0 0.0
    %2923 = vmatpush1.msra.mxu0 0.0
    %2924 = vmatprep.subr.mxu0 0.0
    %2925 = vmatpush1.msra.mxu0 0.0
    %2926 = vmatprep.subr.mxu0 0.0
    %2927 = vmatpush1.msra.mxu0 0.0
    %2928 = vmatprep.subr.mxu0 0.0
    %2929 = vmatpush1.msra.mxu0 0.0
    %2930 = vmatprep.subr.mxu0 0.0
    %2931 = vmatpush1.msra.mxu0 0.0
    %2932 = vmatprep.subr.mxu0 0.0
    %2933 = vmatpush1.msra.mxu0 0.0
    %2934 = vmatprep.subr.mxu0 0.0
    %2935 = vmatpush1.msra.mxu0 0.0
    %2936 = vmatprep.subr.mxu0 0.0
    %2937 = vmatpush1.msra.mxu0 0.0
    %2938 = vmatprep.subr.mxu0 0.0
    %2939 = vmatpush1.msra.mxu0 0.0
    %2940 = vmatprep.subr.mxu0 0.0
    %2941 = vmatpush1.msra.mxu0 0.0
    %2942 = vmatprep.subr.mxu0 0.0
    %2943 = vmatpush1.msra.mxu0 0.0
    %2944 = vmatprep.subr.mxu0 0.0
    %2945 = vmatpush1.msra.mxu0 0.0
    %2946 = vmatprep.subr.mxu0 0.0
    %2947 = vmatpush1.msra.mxu0 0.0
    %2948 = vmatprep.subr.mxu0 0.0
    %2949 = vmatpush1.msra.mxu0 0.0
    %2950 = vmatprep.subr.mxu0 0.0
    %2951 = vmatpush1.msra.mxu0 0.0
    %2952 = vmatprep.subr.mxu0 0.0
    %2953 = vmatpush1.msra.mxu0 0.0
    %2954 = vmatprep.subr.mxu0 0.0
    %2955 = vmatpush1.msra.mxu0 0.0
    %2956 = vmatprep.subr.mxu0 0.0
    %2957 = vmatpush1.msra.mxu0 0.0
    %2958 = vmatprep.subr.mxu0 0.0
    %2959 = vmatpush1.msra.mxu0 0.0
    %2960 = vmatprep.subr.mxu0 0.0
    %2961 = vmatpush1.msra.mxu0 0.0
    %2962 = vmatprep.subr.mxu0 0.0
    %2963 = vmatpush1.msra.mxu0 0.0
    %2964 = vmatprep.subr.mxu0 0.0
    %2965 = vmatpush1.msra.mxu0 0.0
    %2966 = vmatprep.subr.mxu0 0.0
    %2967 = vmatpush1.msra.mxu0 0.0
    %2968 = vmatprep.subr.mxu0 0.0
    %2969 = vmatpush1.msra.mxu0 0.0
    %2970 = vmatprep.mubr.f32.mxu0 0.0
    %2971 = vmatmul.mubr.f32.gmra.mrb[0].mxu0 %v2901
    %v2972 = vpop.f32.mrb[0].mxu0
    %v2973 = vadd.f32 %v2898, %v2972
    %v2974 = vpop.f32.mrb[0].mxu0
    %2975 = vmatprep.mubr.f32.mxu0 0.0
    %2976 = vmatmul.mubr.f32.gmra.mrb[0].mxu0 %v2904
    %v2977 = vpop.f32.mrb[0].mxu0
    %v2978 = vadd.f32 %v2898, %v2977
    %v2979 = vpop.f32.mrb[0].mxu0
    %2980 = vdwg.mxu0
    %v2981 = vmax.f32 %v2973, 0.0
    %v2982 = vmax.f32 %v2978, 0.0
    %s2983 = scalar_lea.vmem %s6, 64
    %v2984 = vld [vmem:[%s2983] sm:$0xff]
    %v2985 = vld [vmem:[%s2983 + $0x8] sm:$0xff]
    %v2986 = vld [vmem:[%s2983 + $0x10] sm:$0xff]
    %v2987 = vld [vmem:[%s2983 + $0x18] sm:$0xff]
    %v2988 = vld [vmem:[%s2983 + $0x20] sm:$0xff]
    %v2989 = vld [vmem:[%s2983 + $0x28] sm:$0xff]
    %v2990 = vld [vmem:[%s2983 + $0x30] sm:$0xff]
    %v2991 = vld [vmem:[%s2983 + $0x38] sm:$0xff]
    %v2992 = vld [vmem:[%s1607 + $0x6] sm:$0x1]
    %v2994 = vlaneseq
    %v2995 = vshrl.u32 %v2994, 7
    %v2996 = vsub.s32 0, %v2995
    %v2997 = vrot.slane %v2992, %v2996
    %v3000 = vsel %vm1492, %v2981, 0
    %v3003 = vsel %vm1492, %v2982, 0
    %3005 = vmatprep.subr.mxu0 0.0
    %3006 = vmatpush1.msra.mxu0 %v2984
    %3007 = vmatprep.subr.mxu0 0.0
    %3008 = vmatpush1.msra.mxu0 %v2985
    %3009 = vmatprep.subr.mxu0 0.0
    %3010 = vmatpush1.msra.mxu0 %v2986
    %3011 = vmatprep.subr.mxu0 0.0
    %3012 = vmatpush1.msra.mxu0 %v2987
    %3013 = vmatprep.subr.mxu0 0.0
    %3014 = vmatpush1.msra.mxu0 %v2988
    %3015 = vmatprep.subr.mxu0 0.0
    %3016 = vmatpush1.msra.mxu0 %v2989
    %3017 = vmatprep.subr.mxu0 0.0
    %3018 = vmatpush1.msra.mxu0 %v2990
    %3019 = vmatprep.subr.mxu0 0.0
    %3020 = vmatpush1.msra.mxu0 %v2991
    %3021 = vmatprep.subr.mxu0 0.0
    %3022 = vmatpush1.msra.mxu0 0.0
    %3023 = vmatprep.subr.mxu0 0.0
    %3024 = vmatpush1.msra.mxu0 0.0
    %3025 = vmatprep.subr.mxu0 0.0
    %3026 = vmatpush1.msra.mxu0 0.0
    %3027 = vmatprep.subr.mxu0 0.0
    %3028 = vmatpush1.msra.mxu0 0.0
    %3029 = vmatprep.subr.mxu0 0.0
    %3030 = vmatpush1.msra.mxu0 0.0
    %3031 = vmatprep.subr.mxu0 0.0
    %3032 = vmatpush1.msra.mxu0 0.0
    %3033 = vmatprep.subr.mxu0 0.0
    %3034 = vmatpush1.msra.mxu0 0.0
    %3035 = vmatprep.subr.mxu0 0.0
    %3036 = vmatpush1.msra.mxu0 0.0
    %3037 = vmatprep.subr.mxu0 0.0
    %3038 = vmatpush1.msra.mxu0 0.0
    %3039 = vmatprep.subr.mxu0 0.0
    %3040 = vmatpush1.msra.mxu0 0.0
    %3041 = vmatprep.subr.mxu0 0.0
    %3042 = vmatpush1.msra.mxu0 0.0
    %3043 = vmatprep.subr.mxu0 0.0
    %3044 = vmatpush1.msra.mxu0 0.0
    %3045 = vmatprep.subr.mxu0 0.0
    %3046 = vmatpush1.msra.mxu0 0.0
    %3047 = vmatprep.subr.mxu0 0.0
    %3048 = vmatpush1.msra.mxu0 0.0
    %3049 = vmatprep.subr.mxu0 0.0
    %3050 = vmatpush1.msra.mxu0 0.0
    %3051 = vmatprep.subr.mxu0 0.0
    %3052 = vmatpush1.msra.mxu0 0.0
    %3053 = vmatprep.subr.mxu0 0.0
    %3054 = vmatpush1.msra.mxu0 0.0
    %3055 = vmatprep.subr.mxu0 0.0
    %3056 = vmatpush1.msra.mxu0 0.0
    %3057 = vmatprep.subr.mxu0 0.0
    %3058 = vmatpush1.msra.mxu0 0.0
    %3059 = vmatprep.subr.mxu0 0.0
    %3060 = vmatpush1.msra.mxu0 0.0
    %3061 = vmatprep.subr.mxu0 0.0
    %3062 = vmatpush1.msra.mxu0 0.0
    %3063 = vmatprep.subr.mxu0 0.0
    %3064 = vmatpush1.msra.mxu0 0.0
    %3065 = vmatprep.subr.mxu0 0.0
    %3066 = vmatpush1.msra.mxu0 0.0
    %3067 = vmatprep.subr.mxu0 0.0
    %3068 = vmatpush1.msra.mxu0 0.0
    %3069 = vmatprep.mubr.f32.mxu0 0.0
    %3070 = vmatmul.mubr.f32.gmra.mrb[0].mxu0 %v3000
    %v3071 = vpop.f32.mrb[0].mxu0
    %v3072 = vadd.f32 %v2997, %v3071
    %v3073 = vpop.f32.mrb[0].mxu0
    %3074 = vmatprep.mubr.f32.mxu0 0.0
    %3075 = vmatmul.mubr.f32.gmra.mrb[0].mxu0 %v3003
    %v3076 = vpop.f32.mrb[0].mxu0
    %v3077 = vadd.f32 %v2997, %v3076
    %v3078 = vpop.f32.mrb[0].mxu0
    %3079 = vdwg.mxu0
    %v3080 = vadd.f32 %v2861, %v3072
    %v3081 = vadd.f32 %v2862, %v3077
    %v3082 = vsel %vm59, %v3080, 0.0
    %3083 = vadd.xlane.f32.xlu0 %v3082
    %v3084 = vpop.xlane.xlu0 %3083
    %v3085 = vsel %vm59, %v3081, 0.0
    %3086 = vadd.xlane.f32.xlu0 %v3085
    %v3087 = vpop.xlane.xlu0 %3086
    %v3088 = vmul.f32 %v3084, %v66
    %v3089 = vmul.f32 %v3087, %v66
    %v3090 = vsub.f32 %v3080, %v3088
    %v3091 = vsub.f32 %v3081, %v3089
    %v3092 = vmul.f32 %v3090, %v3090
    %v3093 = vmul.f32 %v3091, %v3091
    %v3094 = vsel %vm59, %v3092, 0.0
    %3095 = vadd.xlane.f32.xlu0 %v3094
    %v3096 = vpop.xlane.xlu0 %3095
    %v3097 = vsel %vm59, %v3093, 0.0
    %3098 = vadd.xlane.f32.xlu0 %v3097
    %v3099 = vpop.xlane.xlu0 %3098
    %v3100 = vmul.f32 %v3096, %v66
    %v3101 = vmul.f32 %v3099, %v66
    %v3102 = vadd.f32 %v3100, 1e-05
    %v3103 = vadd.f32 %v3101, 1e-05
    %v3104 = vrsqrt.pop %v3102
    %v3105 = vrsqrt.pop %v3103
    %v3106 = vmul.f32 %v3090, %v3104
    %v3107 = vmul.f32 %v3091, %v3105
    %s3108 = scalar_lea.vmem %s5, 384
    %v3109 = vld [vmem:[%s3108] sm:$0xff]
    %v3110 = vld [vmem:[%s3108 + $0x30] sm:$0xff]
    %v3111 = vld [vmem:[%s3108 + $0x60] sm:$0xff]
    %v3112 = vld [vmem:[%s3108 + $0x90] sm:$0xff]
    %s3113 = scalar_lea.vmem %s7, 14
    %v3114 = vld [vmem:[%s3113] sm:$0x1]
    %v3116 = vlaneseq
    %v3117 = vshrl.u32 %v3116, 7
    %v3118 = vsub.s32 0, %v3117
    %v3119 = vrot.slane %v3114, %v3118
    %v3122 = vsel %vm59, %v3106, 0
    %v3125 = vsel %vm59, %v3107, 0
    %3127 = vmatprep.subr.mxu0 0.0
    %3128 = vmatpush1.msra.mxu0 %v3109
    %3129 = vmatprep.subr.mxu0 0.0
    %3130 = vmatpush1.msra.mxu0 %v3110
    %3131 = vmatprep.subr.mxu0 0.0
    %3132 = vmatpush1.msra.mxu0 %v3111
    %3133 = vmatprep.subr.mxu0 0.0
    %3134 = vmatpush1.msra.mxu0 %v3112
    %3135 = vmatprep.subr.mxu0 0.0
    %3136 = vmatpush1.msra.mxu0 0.0
    %3137 = vmatprep.subr.mxu0 0.0
    %3138 = vmatpush1.msra.mxu0 0.0
    %3139 = vmatprep.subr.mxu0 0.0
    %3140 = vmatpush1.msra.mxu0 0.0
    %3141 = vmatprep.subr.mxu0 0.0
    %3142 = vmatpush1.msra.mxu0 0.0
    %3143 = vmatprep.subr.mxu0 0.0
    %3144 = vmatpush1.msra.mxu0 0.0
    %3145 = vmatprep.subr.mxu0 0.0
    %3146 = vmatpush1.msra.mxu0 0.0
    %3147 = vmatprep.subr.mxu0 0.0
    %3148 = vmatpush1.msra.mxu0 0.0
    %3149 = vmatprep.subr.mxu0 0.0
    %3150 = vmatpush1.msra.mxu0 0.0
    %3151 = vmatprep.subr.mxu0 0.0
    %3152 = vmatpush1.msra.mxu0 0.0
    %3153 = vmatprep.subr.mxu0 0.0
    %3154 = vmatpush1.msra.mxu0 0.0
    %3155 = vmatprep.subr.mxu0 0.0
    %3156 = vmatpush1.msra.mxu0 0.0
    %3157 = vmatprep.subr.mxu0 0.0
    %3158 = vmatpush1.msra.mxu0 0.0
    %3159 = vmatprep.subr.mxu0 0.0
    %3160 = vmatpush1.msra.mxu0 0.0
    %3161 = vmatprep.subr.mxu0 0.0
    %3162 = vmatpush1.msra.mxu0 0.0
    %3163 = vmatprep.subr.mxu0 0.0
    %3164 = vmatpush1.msra.mxu0 0.0
    %3165 = vmatprep.subr.mxu0 0.0
    %3166 = vmatpush1.msra.mxu0 0.0
    %3167 = vmatprep.subr.mxu0 0.0
    %3168 = vmatpush1.msra.mxu0 0.0
    %3169 = vmatprep.subr.mxu0 0.0
    %3170 = vmatpush1.msra.mxu0 0.0
    %3171 = vmatprep.subr.mxu0 0.0
    %3172 = vmatpush1.msra.mxu0 0.0
    %3173 = vmatprep.subr.mxu0 0.0
    %3174 = vmatpush1.msra.mxu0 0.0
    %3175 = vmatprep.subr.mxu0 0.0
    %3176 = vmatpush1.msra.mxu0 0.0
    %3177 = vmatprep.subr.mxu0 0.0
    %3178 = vmatpush1.msra.mxu0 0.0
    %3179 = vmatprep.subr.mxu0 0.0
    %3180 = vmatpush1.msra.mxu0 0.0
    %3181 = vmatprep.subr.mxu0 0.0
    %3182 = vmatpush1.msra.mxu0 0.0
    %3183 = vmatprep.subr.mxu0 0.0
    %3184 = vmatpush1.msra.mxu0 0.0
    %3185 = vmatprep.subr.mxu0 0.0
    %3186 = vmatpush1.msra.mxu0 0.0
    %3187 = vmatprep.subr.mxu0 0.0
    %3188 = vmatpush1.msra.mxu0 0.0
    %3189 = vmatprep.subr.mxu0 0.0
    %3190 = vmatpush1.msra.mxu0 0.0
    %3191 = vmatprep.mubr.f32.mxu0 0.0
    %3192 = vmatmul.mubr.f32.gmra.mrb[0].mxu0 %v3122
    %v3193 = vpop.f32.mrb[0].mxu0
    %v3194 = vadd.f32 %v3119, %v3193
    %v3195 = vpop.f32.mrb[0].mxu0
    %3196 = vmatprep.mubr.f32.mxu0 0.0
    %3197 = vmatmul.mubr.f32.gmra.mrb[0].mxu0 %v3125
    %v3198 = vpop.f32.mrb[0].mxu0
    %v3199 = vadd.f32 %v3119, %v3198
    %v3200 = vpop.f32.mrb[0].mxu0
    %3201 = vdwg.mxu0
    %3202 = vst [vmem:[#allocation2] sm:$0xff] %v3194
    %3203 = vst [vmem:[#allocation2 + $0x8] sm:$0xff] %v3199
    // Predicated region
    $region34: #{decoder_forward.1} parent=1 // pred_check
      _
    $region35: #{decoder_forward.1} parent=1 // pred_check_branch
      %3205 = sbr.rel (0) target = $region37
    $region36: #{decoder_forward.1} parent=1 // pred_region
      %s3207 = ssub.s32 256, 256
      %3208 = vsyncadd [#allocation3], %s3207
      %s3209 = sshll.u32 [#allocation2], 4
      %s3210 = int_to_ptr.vmem [resolvable:$true] %s3209
      %3215 = dma.vmem_to_hbm [thread:$0]  %s3210, 256, %s8, [#allocation3], 128, 128, 8
    $region37: #{decoder_forward.1} parent=1 // pred_fallthru
      _
    // Predicated region
    $region38: #{decoder_forward.1} parent=1 // pred_check
      _
    $region39: #{decoder_forward.1} parent=1 // pred_check_branch
      %3217 = sbr.rel (0) target = $region41
    $region40: #{decoder_forward.1} parent=1 // pred_region
      %3218 = dma.done [#allocation3], 256
    $region41: #{decoder_forward.1} parent=1 // pred_fallthru
      _
    %3219 = vsyncpa [#allocation3], 1

</llo_original>
